<compile_context>
chip_gen: v6e
topology: v6e:2x2x1
jax: 0.10.0
libtpu: 0.0.40
codegen_flags: <defaults>
</compile_context>

<pallas_src>
import numpy as np
import jax
import jax.numpy as jnp
from jax.experimental import pallas as pl
from jax.experimental.pallas import tpu as pltpu

FRAME_SIZE = 5
MOUSE_EVENT_DIM = 3
EMOTION_EMB_DIM = 8
MOUSE_EMB_DIM = 8
HIDDEN_DIM = 128
FRAME_PIXELS = FRAME_SIZE * FRAME_SIZE
FRAME_OUT_PAD = 128          # lane-dense frame output width (>=128, multiple of 128)
ENC_PAD = 128                # encoder feature dim padded 64 -> 128 lanes
DEC_INIT_C = 64
DEC_INIT_H = FRAME_SIZE // 4 + (1 if FRAME_SIZE % 4 else 0)   # 2 for FRAME_SIZE=5
DEC_INIT_W = DEC_INIT_H


# ----------------------------------------------------------------------------------
# One-time (init) lowering of convs / pools / crop into dense matrices (numpy loops).
# ----------------------------------------------------------------------------------
def _conv2d_as_matrix(w, h_in, w_in, pad):
    """Stride-1 Conv2d as flat_out = flat_in @ M.  w: (Co,Ci,kh,kw); flat layout is
    channel-major (c, y, x)."""
    co, ci, kh, kw = w.shape
    h_out, w_out = h_in + 2 * pad - kh + 1, w_in + 2 * pad - kw + 1
    m = np.zeros((ci * h_in * w_in, co * h_out * w_out), np.float32)
    for o in range(co):
        for oy in range(h_out):
            for ox in range(w_out):
                col = (o * h_out + oy) * w_out + ox
                for i in range(ci):
                    for ky in range(kh):
                        for kx in range(kw):
                            iy, ix = oy + ky - pad, ox + kx - pad
                            if 0 <= iy < h_in and 0 <= ix < w_in:
                                m[(i * h_in + iy) * w_in + ix, col] = w[o, i, ky, kx]
    return m, h_out, w_out


def _convT2d_as_matrix(w, h_in, w_in, stride, pad):
    """PyTorch ConvTranspose2d as flat_out = flat_in @ M.  w: (Ci,Co,kh,kw)."""
    ci, co, kh, kw = w.shape
    h_out = (h_in - 1) * stride - 2 * pad + kh
    w_out = (w_in - 1) * stride - 2 * pad + kw
    m = np.zeros((ci * h_in * w_in, co * h_out * w_out), np.float32)
    for i in range(ci):
        for iy in range(h_in):
            for ix in range(w_in):
                row = (i * h_in + iy) * w_in + ix
                for o in range(co):
                    for ky in range(kh):
                        for kx in range(kw):
                            oy, ox = iy * stride + ky - pad, ix * stride + kx - pad
                            if 0 <= oy < h_out and 0 <= ox < w_out:
                                m[row, (o * h_out + oy) * w_out + ox] += w[i, o, ky, kx]
    return m, h_out, w_out


def _maxpool2_taps(channels, h_in, w_in):
    """Four one-hot gather matrices (one per 2x2 window tap) for MaxPool2d(2)."""
    h_out, w_out = (h_in - 2) // 2 + 1, (w_in - 2) // 2 + 1
    taps = []
    for dy in range(2):
        for dx in range(2):
            g = np.zeros((channels * h_in * w_in, channels * h_out * w_out), np.float32)
            for c in range(channels):
                for oy in range(h_out):
                    for ox in range(w_out):
                        iy, ix = 2 * oy + dy, 2 * ox + dx
                        g[(c * h_in + iy) * w_in + ix, (c * h_out + oy) * w_out + ox] = 1.0
            taps.append(g)
    return taps, h_out, w_out


def prepare_operands(params):
    """Init-time parameter preparation: every transpose / reshape / conv-lowering /
    embedding fold / bf16 cast lives here (one-time), not in the per-call wrapper."""
    p = {k: np.asarray(v, np.float32) for k, v in params.items()}

    # Encoder: Conv2d+ReLU+MaxPool2d(2), twice.  relu commutes with one-hot gathers, so
    # conv matrix @ pool-tap gather folds into a matrix per tap; the 4 taps are then
    # concatenated along N into ONE wide matmul per layer (max taken over lane slices).
    m1, h1, w1 = _conv2d_as_matrix(p["conv1_w"], FRAME_SIZE, FRAME_SIZE, pad=1)
    b1 = np.repeat(p["conv1_b"], h1 * w1)
    g1, ph1, pw1 = _maxpool2_taps(p["conv1_w"].shape[0], h1, w1)
    enc1_w = np.concatenate([m1 @ g for g in g1], axis=1)                    # (25, 512)
    enc1_b = np.concatenate([b1 @ g for g in g1])[None, :]                   # (1, 512)

    m2, h2, w2 = _conv2d_as_matrix(p["conv2_w"], ph1, pw1, pad=1)
    b2 = np.repeat(p["conv2_b"], h2 * w2)
    g2, _, _ = _maxpool2_taps(p["conv2_w"].shape[0], h2, w2)
    enc_dim = g2[0].shape[1]                                                 # 64
    pad_n = ENC_PAD - enc_dim
    enc2_w = np.concatenate(
        [np.pad(m2 @ g, ((0, 0), (0, pad_n))) for g in g2], axis=1)          # (128, 512)
    enc2_b = np.concatenate(
        [np.pad(b2 @ g, (0, pad_n)) for g in g2])[None, :]                   # (1, 512)

    # GRU: split W_ih along the torch.cat((frame, mouse, emotion)) layout, pre-transpose,
    # fold the embedding layers into the mouse / emotion slices.
    w_ih = p["gru_w_ih"]
    assert w_ih.shape[1] == enc_dim + MOUSE_EMB_DIM + EMOTION_EMB_DIM
    wf = w_ih[:, :enc_dim].T                                                 # (64, 384)
    wm = w_ih[:, enc_dim:enc_dim + MOUSE_EMB_DIM].T                          # (8, 384)
    we = w_ih[:, enc_dim + MOUSE_EMB_DIM:].T                                 # (8, 384)
    gru_wf = np.zeros((ENC_PAD, wf.shape[1]), np.float32)
    gru_wf[:enc_dim] = wf                                                    # (128, 384)
    gru_wm = p["mouse_table"] @ wm                                           # (3, 384)
    gru_we = p["emo_w"].T @ we                                               # (1, 384)
    gru_bi = (p["gru_b_ih"] + p["emo_b"] @ we)[None, :]                      # (1, 384)
    gru_wh = np.ascontiguousarray(p["gru_w_hh"].T)                           # (128, 384)
    gru_bh = p["gru_b_hh"][None, :]

    # Decoder: initial Linear, three transposed convs lowered to matmuls, the final 5x5
    # crop folded into the last matrix, which is then padded 25 -> 128 output columns
    # so the kernel's frame store is lane-dense (unmasked vst).
    dec0_w = np.ascontiguousarray(p["dec0_w"].T)                             # (128, 256)
    t1, th1, tw1 = _convT2d_as_matrix(p["deconv1_w"], DEC_INIT_H, DEC_INIT_W, 2, 1)
    d1b = np.repeat(p["deconv1_b"], th1 * tw1)[None, :]                      # (1, 512)
    t2, th2, tw2 = _convT2d_as_matrix(p["deconv2_w"], th1, tw1, 2, 1)        # (512, 1024)
    d2b = np.repeat(p["deconv2_b"], th2 * tw2)[None, :]
    t3, th3, tw3 = _convT2d_as_matrix(p["deconv3_w"], th2, tw2, 1, 1)        # (1024, 64)
    b3 = np.repeat(p["deconv3_b"], th3 * tw3)
    assert p["deconv3_w"].shape[1] == 1   # single output channel -> simple spatial crop
    crop = np.zeros((th3 * tw3, FRAME_PIXELS), np.float32)   # sigmoid commutes with crop
    for y in range(FRAME_SIZE):
        for x in range(FRAME_SIZE):
            crop[y * tw3 + x, y * FRAME_SIZE + x] = 1.0
    dec3_w = np.pad(t3 @ crop, ((0, 0), (0, FRAME_OUT_PAD - FRAME_PIXELS)))  # (1024, 128)
    dec3_b = np.pad(b3 @ crop, (0, FRAME_OUT_PAD - FRAME_PIXELS))[None, :]   # (1, 128)

    ops = dict(
        enc1_w=enc1_w, enc1_b=enc1_b, enc2_w=enc2_w, enc2_b=enc2_b,
        gru_wf=gru_wf, gru_wm=gru_wm, gru_we=gru_we, gru_wh=gru_wh,
        gru_bi=gru_bi, gru_bh=gru_bh,
        dec0_w=dec0_w, dec0_b=p["dec0_b"][None, :],
        dec1_w=t1, dec1_b=d1b, dec2_w=t2, dec2_b=d2b, dec3_w=dec3_w, dec3_b=dec3_b,
    )
    # MXU operands (matmul RHS) in bf16; biases / folded embedding rows stay f32 (VPU adds).
    bf16_keys = {"enc1_w", "enc2_w", "gru_wf", "gru_wh",
                 "dec0_w", "dec1_w", "dec2_w", "dec3_w"}
    return {k: jnp.asarray(v, jnp.bfloat16 if k in bf16_keys else jnp.float32)
            for k, v in ops.items()}


# ----------------------------------------------------------------------------------
# Fused forward kernel (one batch tile per grid step).
# ----------------------------------------------------------------------------------
def _crnn_kernel(
    frame_ref, me_ref, h0_ref,
    enc1_w_ref, enc1_b_ref, enc2_w_ref, enc2_b_ref,
    gru_wf_ref, gru_wm_ref, gru_we_ref, gru_wh_ref, gru_bi_ref, gru_bh_ref,
    dec0_w_ref, dec0_b_ref, dec1_w_ref, dec1_b_ref, dec2_w_ref, dec2_b_ref,
    dec3_w_ref, dec3_b_ref,
    frame_out_ref, h_out_ref,
):
    f32 = jnp.float32
    bf16 = jnp.bfloat16

    def mm(a, w):
        # bf16 MXU operands, f32 accumulation.
        return jnp.dot(a.astype(bf16), w, preferred_element_type=f32)

    # ---- CNN encoder: each Conv+bias+ReLU+MaxPool layer is ONE wide matmul (all 4 pool
    # taps concatenated along N), one ReLU, then a max over 128-lane vreg-aligned slices.
    x = frame_ref[...].astype(f32)                              # (TB, 25)

    def conv_relu_pool(inp, w_ref, b_ref, lanes):
        y = jnp.maximum(mm(inp, w_ref[...]) + b_ref[...], 0.0)  # (TB, 4*lanes)
        out = y[:, 0:lanes]
        for t in range(1, 4):
            out = jnp.maximum(out, y[:, t * lanes:(t + 1) * lanes])
        return out

    h_enc = conv_relu_pool(x, enc1_w_ref, enc1_b_ref, 128)      # (TB, 128) = flat (32,2,2)
    enc = conv_relu_pool(h_enc, enc2_w_ref, enc2_b_ref, 128)    # (TB, 128), lanes 64..127 = 0

    # ---- Mouse / emotion embeddings folded into the GRU input projection:
    #   mouse: masked select over the 3 pre-multiplied (1, 3H) rows (pure VPU),
    #   emotion: scalar * pre-multiplied (1, 3H) row;  emo bias folded into gru_bi.
    me = me_ref[...]                                            # (TB, 2) f32
    mouse = me[:, 0:1]
    emo = me[:, 1:2]

    gi = mm(enc, gru_wf_ref[...]) + emo * gru_we_ref[...] + gru_bi_ref[...]   # (TB, 3H)
    for k in range(MOUSE_EVENT_DIM):
        sel = (jnp.abs(mouse - k) < 0.5).astype(f32)            # (TB, 1)
        gi = gi + sel * gru_wm_ref[pl.ds(k, 1), :]              # broadcast (1, 3H)

    # ---- GRU cell (seq_len == 1, PyTorch gate order r, z, n).
    h0 = h0_ref[...].astype(f32)                                # (TB, H)
    hd = gru_wh_ref.shape[0]                                    # H = 128
    gh = mm(h0, gru_wh_ref[...]) + gru_bh_ref[...]              # (TB, 3H)
    r = jax.nn.sigmoid(gi[:, 0:hd] + gh[:, 0:hd])
    z = jax.nn.sigmoid(gi[:, hd:2 * hd] + gh[:, hd:2 * hd])
    n = jnp.tanh(gi[:, 2 * hd:3 * hd] + r * gh[:, 2 * hd:3 * hd])
    h_new = (1.0 - z) * n + z * h0                              # (TB, H)
    h_out_ref[...] = h_new.astype(h_out_ref.dtype)

    # ---- Decoder: Linear+ReLU, three transposed convs (lowered to matmuls), sigmoid.
    # The [:, :, :5, :5] crop and the 25->128 lane padding live inside dec3_w/dec3_b.
    d = jnp.maximum(mm(h_new, dec0_w_ref[...]) + dec0_b_ref[...], 0.0)   # (TB, 256)
    d = jnp.maximum(mm(d, dec1_w_ref[...]) + dec1_b_ref[...], 0.0)       # (TB, 512)
    d = jnp.maximum(mm(d, dec2_w_ref[...]) + dec2_b_ref[...], 0.0)       # (TB, 1024)
    d = mm(d, dec3_w_ref[...]) + dec3_b_ref[...]                         # (TB, 128)
    frame_out_ref[...] = jax.nn.sigmoid(d).astype(frame_out_ref.dtype)   # lane-dense store


_PARAM_ORDER = (
    "enc1_w", "enc1_b", "enc2_w", "enc2_b",
    "gru_wf", "gru_wm", "gru_we", "gru_wh", "gru_bi", "gru_bh",
    "dec0_w", "dec0_b", "dec1_w", "dec1_b", "dec2_w", "dec2_b", "dec3_w", "dec3_b",
)


def _const_index_map(ndim):
    return lambda i: (0,) * ndim


def _round_up(x, m):
    return ((x + m - 1) // m) * m


def conditional_crnn_forward(operands, prev_frame, mouse_event, emotion_state,
                             hidden_state=None, *, batch_tile=512):
    """Fused Pallas equivalent of ConditionalCRNN.forward.

    prev_frame    : (B, 1, FRAME_SIZE, FRAME_SIZE) float
    mouse_event   : (B,) int in [0, MOUSE_EVENT_DIM)   (out-of-range -> zero embedding)
    emotion_state : (B,) float
    hidden_state  : None or (1, B, H)   (its buffer is reused in place for the new state)
    returns (next_frame (B, 1, 5, 5), hidden_state (1, B, H))
    """
    b = prev_frame.shape[0]
    hid = HIDDEN_DIM

    frame_flat = prev_frame.reshape(b, FRAME_PIXELS).astype(jnp.float32)
    # Pack mouse id (exact small ints in f32) + emotion scalar into one (B, 2) input.
    mouse_emo = jnp.concatenate(
        [mouse_event.reshape(b, 1).astype(jnp.float32),
         emotion_state.reshape(b, 1).astype(jnp.float32)], axis=1)
    h0 = (jnp.zeros((b, hid), jnp.float32) if hidden_state is None
          else hidden_state.reshape(b, hid).astype(jnp.float32))

    if b <= 8:
        tb = b                                    # tiny batch: one exact tile
    else:
        # >= 2 batch tiles so v7x megacore can shard them across both TensorCores;
        # large tiles (up to batch_tile) amortize the ~0.35us per-grid-step overhead.
        tb = min(batch_tile, _round_up(pl.cdiv(b, 2), 8))
    grid = (pl.cdiv(b, tb),)

    data_specs = [
        pl.BlockSpec((tb, FRAME_PIXELS), lambda i: (i, 0)),
        pl.BlockSpec((tb, 2), lambda i: (i, 0)),
        pl.BlockSpec((tb, hid), lambda i: (i, 0)),
    ]
    params = [operands[k] for k in _PARAM_ORDER]
    # Constant index_map -> weights stay VMEM-resident across batch tiles (no re-DMA).
    param_specs = [pl.BlockSpec(p.shape, _const_index_map(p.ndim)) for p in params]

    out_shape = (
        jax.ShapeDtypeStruct((b, FRAME_OUT_PAD), jnp.float32),   # lane-dense frame slab
        jax.ShapeDtypeStruct((b, hid), jnp.float32),
    )
    out_specs = (
        pl.BlockSpec((tb, FRAME_OUT_PAD), lambda i: (i, 0)),
        pl.BlockSpec((tb, hid), lambda i: (i, 0)),
    )

    frame_pad, h_out = pl.pallas_call(
        _crnn_kernel,
        out_shape=out_shape,
        grid=grid,
        in_specs=data_specs + param_specs,
        out_specs=out_specs,
        input_output_aliases={2: 1},   # write the new hidden state in place of h0
        compiler_params=pltpu.CompilerParams(
            dimension_semantics=("parallel",),   # batch tiles are independent (v7x megacore)
        ),
    )(frame_flat, mouse_emo, h0, *params)

    next_frame = frame_pad[:, :FRAME_PIXELS].reshape(b, 1, FRAME_SIZE, FRAME_SIZE)
    return next_frame, h_out.reshape(1, b, hid)


# ----------------------------------------------------------------------------------
# Pure-JAX f32 reference (original conv / pool / GRU ops, PyTorch semantics).
# ----------------------------------------------------------------------------------
def reference_forward(params, prev_frame, mouse_event, emotion_state, hidden_state=None):
    p = params
    dn = ("NCHW", "OIHW", "NCHW")
    hi = jax.lax.Precision.HIGHEST

    def conv(x, w, bias, pad):
        y = jax.lax.conv_general_dilated(x, w, window_strides=(1, 1),
                                         padding=((pad, pad), (pad, pad)),
                                         dimension_numbers=dn, precision=hi)
        return y + bias[None, :, None, None]

    def conv_t(x, w, bias, stride, pad):
        kh, kw = w.shape[2], w.shape[3]
        k = jnp.flip(w, axis=(2, 3)).transpose(1, 0, 2, 3)
        y = jax.lax.conv_general_dilated(x, k, window_strides=(1, 1),
                                         padding=((kh - 1 - pad, kh - 1 - pad),
                                                  (kw - 1 - pad, kw - 1 - pad)),
                                         lhs_dilation=(stride, stride),
                                         dimension_numbers=dn, precision=hi)
        return y + bias[None, :, None, None]

    def maxpool2(x):
        return jax.lax.reduce_window(x, -jnp.inf, jax.lax.max,
                                     (1, 1, 2, 2), (1, 1, 2, 2), "VALID")

    b = prev_frame.shape[0]
    hid = p["gru_w_hh"].shape[1]

    y = maxpool2(jax.nn.relu(conv(prev_frame.astype(jnp.float32),
                                  p["conv1_w"], p["conv1_b"], 1)))
    y = maxpool2(jax.nn.relu(conv(y, p["conv2_w"], p["conv2_b"], 1)))
    enc = y.reshape(b, -1)

    memb = p["mouse_table"][mouse_event]
    eemb = jnp.dot(emotion_state.astype(jnp.float32)[:, None], p["emo_w"].T,
                   precision=hi) + p["emo_b"]

    xcat = jnp.concatenate([enc, memb, eemb], axis=1)
    h0 = (jnp.zeros((b, hid), jnp.float32) if hidden_state is None
          else hidden_state.reshape(b, hid))
    gi = jnp.dot(xcat, p["gru_w_ih"].T, precision=hi) + p["gru_b_ih"]
    gh = jnp.dot(h0, p["gru_w_hh"].T, precision=hi) + p["gru_b_hh"]
    r = jax.nn.sigmoid(gi[:, :hid] + gh[:, :hid])
    z = jax.nn.sigmoid(gi[:, hid:2 * hid] + gh[:, hid:2 * hid])
    n = jnp.tanh(gi[:, 2 * hid:] + r * gh[:, 2 * hid:])
    h1 = (1.0 - z) * n + z * h0

    d = jax.nn.relu(jnp.dot(h1, p["dec0_w"].T, precision=hi) + p["dec0_b"])
    d = d.reshape(b, DEC_INIT_C, DEC_INIT_H, DEC_INIT_W)
    d = jax.nn.relu(conv_t(d, p["deconv1_w"], p["deconv1_b"], 2, 1))
    d = jax.nn.relu(conv_t(d, p["deconv2_w"], p["deconv2_b"], 2, 1))
    d = jax.nn.sigmoid(conv_t(d, p["deconv3_w"], p["deconv3_b"], 1, 1))
    return d[:, :, :FRAME_SIZE, :FRAME_SIZE], h1[None, :, :]


if __name__ == "__main__":
    key = jax.random.PRNGKey(0)
    keys = iter(jax.random.split(key, 24))

    def nrm(shape, scale):
        return scale * jax.random.normal(next(keys), shape, dtype=jnp.float32)

    B = 2
    enc_dim = DEC_INIT_C * 1 * 1                         # 64 for FRAME_SIZE == 5
    rnn_in = enc_dim + MOUSE_EMB_DIM + EMOTION_EMB_DIM   # 80
    dec0_out = DEC_INIT_C * DEC_INIT_H * DEC_INIT_W      # 256

    params = dict(
        conv1_w=nrm((32, 1, 3, 3), 0.3), conv1_b=nrm((32,), 0.1),
        conv2_w=nrm((64, 32, 3, 3), 0.08), conv2_b=nrm((64,), 0.1),
        mouse_table=nrm((MOUSE_EVENT_DIM, MOUSE_EMB_DIM), 0.5),
        emo_w=nrm((EMOTION_EMB_DIM, 1), 0.5), emo_b=nrm((EMOTION_EMB_DIM,), 0.1),
        gru_w_ih=nrm((3 * HIDDEN_DIM, rnn_in), 0.1),
        gru_w_hh=nrm((3 * HIDDEN_DIM, HIDDEN_DIM), 0.1),
        gru_b_ih=nrm((3 * HIDDEN_DIM,), 0.1), gru_b_hh=nrm((3 * HIDDEN_DIM,), 0.1),
        dec0_w=nrm((dec0_out, HIDDEN_DIM), 0.1), dec0_b=nrm((dec0_out,), 0.1),
        deconv1_w=nrm((64, 32, 4, 4), 0.08), deconv1_b=nrm((32,), 0.1),
        deconv2_w=nrm((32, 16, 4, 4), 0.08), deconv2_b=nrm((16,), 0.1),
        deconv3_w=nrm((16, 1, 3, 3), 0.15), deconv3_b=nrm((1,), 0.1),
    )

    prev_frame = jax.random.uniform(next(keys), (B, 1, FRAME_SIZE, FRAME_SIZE),
                                    dtype=jnp.float32)
    mouse_event = jax.random.randint(next(keys), (B,), 0, MOUSE_EVENT_DIM, dtype=jnp.int32)
    emotion_state = jax.random.normal(next(keys), (B,), dtype=jnp.float32)

    operands = prepare_operands(params)   # one-time parameter lowering (init, bf16 weights)

    next_frame, hidden = conditional_crnn_forward(
        operands, prev_frame, mouse_event, emotion_state, hidden_state=None)
    next_frame, hidden = jax.block_until_ready((next_frame, hidden))

    ref_frame, ref_hidden = reference_forward(params, prev_frame, mouse_event, emotion_state)

    assert next_frame.shape == (B, 1, FRAME_SIZE, FRAME_SIZE), next_frame.shape
    assert hidden.shape == (1, B, HIDDEN_DIM), hidden.shape
    # Kernel uses bf16 MXU operands (f32 accumulation) vs. an all-f32 reference, through
    # ~7 chained matmuls; outputs are sigmoid/tanh-bounded, so an absolute tolerance is
    # appropriate here.
    assert jnp.allclose(next_frame, ref_frame, atol=1e-1, rtol=0.0), \
        float(jnp.max(jnp.abs(next_frame - ref_frame)))
    assert jnp.allclose(hidden, ref_hidden, atol=8e-2, rtol=0.0), \
        float(jnp.max(jnp.abs(hidden - ref_hidden)))

    print("KERNEL_OK")
</pallas_src>

<mosaic_0001>
module attributes {stable_mosaic.version = 11 : i64} {
  func.func @_crnn_kernel(%arg0: i32, %arg1: memref<2x25xf32, #tpu.memory_space<vmem>>, %arg2: memref<2x2xf32, #tpu.memory_space<vmem>>, %arg3: memref<2x128xf32, #tpu.memory_space<vmem>>, %arg4: memref<25x512xbf16, #tpu.memory_space<vmem>>, %arg5: memref<1x512xf32, #tpu.memory_space<vmem>>, %arg6: memref<128x512xbf16, #tpu.memory_space<vmem>>, %arg7: memref<1x512xf32, #tpu.memory_space<vmem>>, %arg8: memref<128x384xbf16, #tpu.memory_space<vmem>>, %arg9: memref<3x384xf32, #tpu.memory_space<vmem>>, %arg10: memref<1x384xf32, #tpu.memory_space<vmem>>, %arg11: memref<128x384xbf16, #tpu.memory_space<vmem>>, %arg12: memref<1x384xf32, #tpu.memory_space<vmem>>, %arg13: memref<1x384xf32, #tpu.memory_space<vmem>>, %arg14: memref<128x256xbf16, #tpu.memory_space<vmem>>, %arg15: memref<1x256xf32, #tpu.memory_space<vmem>>, %arg16: memref<256x512xbf16, #tpu.memory_space<vmem>>, %arg17: memref<1x512xf32, #tpu.memory_space<vmem>>, %arg18: memref<512x1024xbf16, #tpu.memory_space<vmem>>, %arg19: memref<1x1024xf32, #tpu.memory_space<vmem>>, %arg20: memref<1024x128xbf16, #tpu.memory_space<vmem>>, %arg21: memref<1x128xf32, #tpu.memory_space<vmem>>, %arg22: memref<2x128xf32, #tpu.memory_space<vmem>>, %arg23: memref<2x128xf32, #tpu.memory_space<vmem>>) attributes {dimension_semantics = [#tpu.dimension_semantics<parallel>], iteration_bounds = array<i64: 1>, scalar_prefetch = 0 : i64, scratch_operands = 0 : i64, tpu.core_type = #tpu.core_type<tc>, window_params = [{transform_indices = @transform_0, window_bounds = array<i64: 2, 25>}, {transform_indices = @transform_1, window_bounds = array<i64: 2, 2>}, {transform_indices = @transform_2, window_bounds = array<i64: 2, 128>}, {pipeline_mode = #tpu.pipeline_mode<synchronous>, transform_indices = @transform_3, window_bounds = array<i64: 25, 512>}, {pipeline_mode = #tpu.pipeline_mode<synchronous>, transform_indices = @transform_4, window_bounds = array<i64: 1, 512>}, {pipeline_mode = #tpu.pipeline_mode<synchronous>, transform_indices = @transform_5, window_bounds = array<i64: 128, 512>}, {pipeline_mode = #tpu.pipeline_mode<synchronous>, transform_indices = @transform_6, window_bounds = array<i64: 1, 512>}, {pipeline_mode = #tpu.pipeline_mode<synchronous>, transform_indices = @transform_7, window_bounds = array<i64: 128, 384>}, {pipeline_mode = #tpu.pipeline_mode<synchronous>, transform_indices = @transform_8, window_bounds = array<i64: 3, 384>}, {pipeline_mode = #tpu.pipeline_mode<synchronous>, transform_indices = @transform_9, window_bounds = array<i64: 1, 384>}, {pipeline_mode = #tpu.pipeline_mode<synchronous>, transform_indices = @transform_10, window_bounds = array<i64: 128, 384>}, {pipeline_mode = #tpu.pipeline_mode<synchronous>, transform_indices = @transform_11, window_bounds = array<i64: 1, 384>}, {pipeline_mode = #tpu.pipeline_mode<synchronous>, transform_indices = @transform_12, window_bounds = array<i64: 1, 384>}, {pipeline_mode = #tpu.pipeline_mode<synchronous>, transform_indices = @transform_13, window_bounds = array<i64: 128, 256>}, {pipeline_mode = #tpu.pipeline_mode<synchronous>, transform_indices = @transform_14, window_bounds = array<i64: 1, 256>}, {pipeline_mode = #tpu.pipeline_mode<synchronous>, transform_indices = @transform_15, window_bounds = array<i64: 256, 512>}, {pipeline_mode = #tpu.pipeline_mode<synchronous>, transform_indices = @transform_16, window_bounds = array<i64: 1, 512>}, {pipeline_mode = #tpu.pipeline_mode<synchronous>, transform_indices = @transform_17, window_bounds = array<i64: 512, 1024>}, {pipeline_mode = #tpu.pipeline_mode<synchronous>, transform_indices = @transform_18, window_bounds = array<i64: 1, 1024>}, {pipeline_mode = #tpu.pipeline_mode<synchronous>, transform_indices = @transform_19, window_bounds = array<i64: 1024, 128>}, {pipeline_mode = #tpu.pipeline_mode<synchronous>, transform_indices = @transform_20, window_bounds = array<i64: 1, 128>}, {transform_indices = @transform_21, window_bounds = array<i64: 2, 128>}, {transform_indices = @transform_22, window_bounds = array<i64: 2, 128>}]} {
    %c0 = arith.constant 0 : index
    %c0_0 = arith.constant 0 : index
    %0 = vector.load %arg1[%c0, %c0_0] : memref<2x25xf32, #tpu.memory_space<vmem>>, vector<2x25xf32>
    %c0_1 = arith.constant 0 : index
    %c0_2 = arith.constant 0 : index
    %1 = vector.load %arg4[%c0_1, %c0_2] : memref<25x512xbf16, #tpu.memory_space<vmem>>, vector<25x512xbf16>
    %2 = arith.truncf %0 : vector<2x25xf32> to vector<2x25xbf16>
    %cst = arith.constant dense<0.000000e+00> : vector<2x512xf32>
    %3 = tpu.matmul %2, %1, %cst {dimension_numbers = #tpu.dot_dimension_numbers<[1], [0], [0], [1], [0, 0, 1, 1], [], []>} : vector<2x25xbf16>, vector<25x512xbf16>, vector<2x512xf32> -> vector<2x512xf32>
    %c0_3 = arith.constant 0 : index
    %c0_4 = arith.constant 0 : index
    %4 = vector.load %arg5[%c0_3, %c0_4] : memref<1x512xf32, #tpu.memory_space<vmem>>, vector<1x512xf32>
    %5 = vector.broadcast %4 : vector<1x512xf32> to vector<2x512xf32>
    %6 = arith.addf %3, %5 : vector<2x512xf32>
    %cst_5 = arith.constant 0.000000e+00 : f32
    %7 = vector.broadcast %cst_5 : f32 to vector<2x512xf32>
    %8 = arith.maximumf %6, %7 : vector<2x512xf32>
    %9 = vector.extract_strided_slice %8 {offsets = [0, 0], sizes = [2, 128], strides = [1, 1]} : vector<2x512xf32> to vector<2x128xf32>
    %10 = vector.extract_strided_slice %8 {offsets = [0, 128], sizes = [2, 128], strides = [1, 1]} : vector<2x512xf32> to vector<2x128xf32>
    %11 = arith.maximumf %9, %10 : vector<2x128xf32>
    %12 = vector.extract_strided_slice %8 {offsets = [0, 256], sizes = [2, 128], strides = [1, 1]} : vector<2x512xf32> to vector<2x128xf32>
    %13 = arith.maximumf %11, %12 : vector<2x128xf32>
    %14 = vector.extract_strided_slice %8 {offsets = [0, 384], sizes = [2, 128], strides = [1, 1]} : vector<2x512xf32> to vector<2x128xf32>
    %15 = arith.maximumf %13, %14 : vector<2x128xf32>
    %c0_6 = arith.constant 0 : index
    %c0_7 = arith.constant 0 : index
    %16 = vector.load %arg6[%c0_6, %c0_7] : memref<128x512xbf16, #tpu.memory_space<vmem>>, vector<128x512xbf16>
    %17 = arith.truncf %15 : vector<2x128xf32> to vector<2x128xbf16>
    %cst_8 = arith.constant dense<0.000000e+00> : vector<2x512xf32>
    %18 = tpu.matmul %17, %16, %cst_8 {dimension_numbers = #tpu.dot_dimension_numbers<[1], [0], [0], [1], [0, 0, 1, 1], [], []>} : vector<2x128xbf16>, vector<128x512xbf16>, vector<2x512xf32> -> vector<2x512xf32>
    %c0_9 = arith.constant 0 : index
    %c0_10 = arith.constant 0 : index
    %19 = vector.load %arg7[%c0_9, %c0_10] : memref<1x512xf32, #tpu.memory_space<vmem>>, vector<1x512xf32>
    %20 = vector.broadcast %19 : vector<1x512xf32> to vector<2x512xf32>
    %21 = arith.addf %18, %20 : vector<2x512xf32>
    %cst_11 = arith.constant 0.000000e+00 : f32
    %22 = vector.broadcast %cst_11 : f32 to vector<2x512xf32>
    %23 = arith.maximumf %21, %22 : vector<2x512xf32>
    %24 = vector.extract_strided_slice %23 {offsets = [0, 0], sizes = [2, 128], strides = [1, 1]} : vector<2x512xf32> to vector<2x128xf32>
    %25 = vector.extract_strided_slice %23 {offsets = [0, 128], sizes = [2, 128], strides = [1, 1]} : vector<2x512xf32> to vector<2x128xf32>
    %26 = arith.maximumf %24, %25 : vector<2x128xf32>
    %27 = vector.extract_strided_slice %23 {offsets = [0, 256], sizes = [2, 128], strides = [1, 1]} : vector<2x512xf32> to vector<2x128xf32>
    %28 = arith.maximumf %26, %27 : vector<2x128xf32>
    %29 = vector.extract_strided_slice %23 {offsets = [0, 384], sizes = [2, 128], strides = [1, 1]} : vector<2x512xf32> to vector<2x128xf32>
    %30 = arith.maximumf %28, %29 : vector<2x128xf32>
    %c0_12 = arith.constant 0 : index
    %c0_13 = arith.constant 0 : index
    %31 = vector.load %arg2[%c0_12, %c0_13] : memref<2x2xf32, #tpu.memory_space<vmem>>, vector<2x2xf32>
    %32 = vector.extract_strided_slice %31 {offsets = [0, 0], sizes = [2, 1], strides = [1, 1]} : vector<2x2xf32> to vector<2x1xf32>
    %33 = vector.extract_strided_slice %31 {offsets = [0, 1], sizes = [2, 1], strides = [1, 1]} : vector<2x2xf32> to vector<2x1xf32>
    %c0_14 = arith.constant 0 : index
    %c0_15 = arith.constant 0 : index
    %34 = vector.load %arg8[%c0_14, %c0_15] : memref<128x384xbf16, #tpu.memory_space<vmem>>, vector<128x384xbf16>
    %35 = arith.truncf %30 : vector<2x128xf32> to vector<2x128xbf16>
    %cst_16 = arith.constant dense<0.000000e+00> : vector<2x384xf32>
    %36 = tpu.matmul %35, %34, %cst_16 {dimension_numbers = #tpu.dot_dimension_numbers<[1], [0], [0], [1], [0, 0, 1, 1], [], []>} : vector<2x128xbf16>, vector<128x384xbf16>, vector<2x384xf32> -> vector<2x384xf32>
    %c0_17 = arith.constant 0 : index
    %c0_18 = arith.constant 0 : index
    %37 = vector.load %arg10[%c0_17, %c0_18] : memref<1x384xf32, #tpu.memory_space<vmem>>, vector<1x384xf32>
    %38 = vector.broadcast %33 : vector<2x1xf32> to vector<2x384xf32>
    %39 = vector.broadcast %37 : vector<1x384xf32> to vector<2x384xf32>
    %40 = arith.mulf %38, %39 : vector<2x384xf32>
    %41 = arith.addf %36, %40 : vector<2x384xf32>
    %c0_19 = arith.constant 0 : index
    %c0_20 = arith.constant 0 : index
    %42 = vector.load %arg12[%c0_19, %c0_20] : memref<1x384xf32, #tpu.memory_space<vmem>>, vector<1x384xf32>
    %43 = vector.broadcast %42 : vector<1x384xf32> to vector<2x384xf32>
    %44 = arith.addf %41, %43 : vector<2x384xf32>
    %cst_21 = arith.constant 0.000000e+00 : f32
    %45 = vector.broadcast %cst_21 : f32 to vector<2x1xf32>
    %46 = arith.subf %32, %45 : vector<2x1xf32>
    %47 = math.absf %46 : vector<2x1xf32>
    %cst_22 = arith.constant 5.000000e-01 : f32
    %48 = vector.broadcast %cst_22 : f32 to vector<2x1xf32>
    %49 = arith.cmpf olt, %47, %48 : vector<2x1xf32>
    %50 = arith.extui %49 : vector<2x1xi1> to vector<2x1xi32>
    %51 = arith.sitofp %50 : vector<2x1xi32> to vector<2x1xf32>
    %c0_23 = arith.constant 0 : index
    %c0_24 = arith.constant 0 : index
    %52 = vector.load %arg9[%c0_23, %c0_24] : memref<3x384xf32, #tpu.memory_space<vmem>>, vector<1x384xf32>
    %53 = vector.broadcast %51 : vector<2x1xf32> to vector<2x384xf32>
    %54 = vector.broadcast %52 : vector<1x384xf32> to vector<2x384xf32>
    %55 = arith.mulf %53, %54 : vector<2x384xf32>
    %56 = arith.addf %44, %55 : vector<2x384xf32>
    %cst_25 = arith.constant 1.000000e+00 : f32
    %57 = vector.broadcast %cst_25 : f32 to vector<2x1xf32>
    %58 = arith.subf %32, %57 : vector<2x1xf32>
    %59 = math.absf %58 : vector<2x1xf32>
    %cst_26 = arith.constant 5.000000e-01 : f32
    %60 = vector.broadcast %cst_26 : f32 to vector<2x1xf32>
    %61 = arith.cmpf olt, %59, %60 : vector<2x1xf32>
    %62 = arith.extui %61 : vector<2x1xi1> to vector<2x1xi32>
    %63 = arith.sitofp %62 : vector<2x1xi32> to vector<2x1xf32>
    %c1 = arith.constant 1 : index
    %c0_27 = arith.constant 0 : index
    %64 = vector.load %arg9[%c1, %c0_27] : memref<3x384xf32, #tpu.memory_space<vmem>>, vector<1x384xf32>
    %65 = vector.broadcast %63 : vector<2x1xf32> to vector<2x384xf32>
    %66 = vector.broadcast %64 : vector<1x384xf32> to vector<2x384xf32>
    %67 = arith.mulf %65, %66 : vector<2x384xf32>
    %68 = arith.addf %56, %67 : vector<2x384xf32>
    %cst_28 = arith.constant 2.000000e+00 : f32
    %69 = vector.broadcast %cst_28 : f32 to vector<2x1xf32>
    %70 = arith.subf %32, %69 : vector<2x1xf32>
    %71 = math.absf %70 : vector<2x1xf32>
    %cst_29 = arith.constant 5.000000e-01 : f32
    %72 = vector.broadcast %cst_29 : f32 to vector<2x1xf32>
    %73 = arith.cmpf olt, %71, %72 : vector<2x1xf32>
    %74 = arith.extui %73 : vector<2x1xi1> to vector<2x1xi32>
    %75 = arith.sitofp %74 : vector<2x1xi32> to vector<2x1xf32>
    %c2 = arith.constant 2 : index
    %c0_30 = arith.constant 0 : index
    %76 = vector.load %arg9[%c2, %c0_30] : memref<3x384xf32, #tpu.memory_space<vmem>>, vector<1x384xf32>
    %77 = vector.broadcast %75 : vector<2x1xf32> to vector<2x384xf32>
    %78 = vector.broadcast %76 : vector<1x384xf32> to vector<2x384xf32>
    %79 = arith.mulf %77, %78 : vector<2x384xf32>
    %80 = arith.addf %68, %79 : vector<2x384xf32>
    %c0_31 = arith.constant 0 : index
    %c0_32 = arith.constant 0 : index
    %81 = vector.load %arg3[%c0_31, %c0_32] : memref<2x128xf32, #tpu.memory_space<vmem>>, vector<2x128xf32>
    %c0_33 = arith.constant 0 : index
    %c0_34 = arith.constant 0 : index
    %82 = vector.load %arg11[%c0_33, %c0_34] : memref<128x384xbf16, #tpu.memory_space<vmem>>, vector<128x384xbf16>
    %83 = arith.truncf %81 : vector<2x128xf32> to vector<2x128xbf16>
    %cst_35 = arith.constant dense<0.000000e+00> : vector<2x384xf32>
    %84 = tpu.matmul %83, %82, %cst_35 {dimension_numbers = #tpu.dot_dimension_numbers<[1], [0], [0], [1], [0, 0, 1, 1], [], []>} : vector<2x128xbf16>, vector<128x384xbf16>, vector<2x384xf32> -> vector<2x384xf32>
    %c0_36 = arith.constant 0 : index
    %c0_37 = arith.constant 0 : index
    %85 = vector.load %arg13[%c0_36, %c0_37] : memref<1x384xf32, #tpu.memory_space<vmem>>, vector<1x384xf32>
    %86 = vector.broadcast %85 : vector<1x384xf32> to vector<2x384xf32>
    %87 = arith.addf %84, %86 : vector<2x384xf32>
    %88 = vector.extract_strided_slice %80 {offsets = [0, 0], sizes = [2, 128], strides = [1, 1]} : vector<2x384xf32> to vector<2x128xf32>
    %89 = vector.extract_strided_slice %87 {offsets = [0, 0], sizes = [2, 128], strides = [1, 1]} : vector<2x384xf32> to vector<2x128xf32>
    %90 = arith.addf %88, %89 : vector<2x128xf32>
    %91 = arith.negf %90 : vector<2x128xf32>
    %92 = math.exp %91 : vector<2x128xf32>
    %cst_38 = arith.constant 1.000000e+00 : f32
    %93 = vector.broadcast %cst_38 : f32 to vector<2x128xf32>
    %94 = arith.addf %93, %92 : vector<2x128xf32>
    %95 = arith.divf %93, %94 : vector<2x128xf32>
    %96 = vector.extract_strided_slice %80 {offsets = [0, 128], sizes = [2, 128], strides = [1, 1]} : vector<2x384xf32> to vector<2x128xf32>
    %97 = vector.extract_strided_slice %87 {offsets = [0, 128], sizes = [2, 128], strides = [1, 1]} : vector<2x384xf32> to vector<2x128xf32>
    %98 = arith.addf %96, %97 : vector<2x128xf32>
    %99 = arith.negf %98 : vector<2x128xf32>
    %100 = math.exp %99 : vector<2x128xf32>
    %cst_39 = arith.constant 1.000000e+00 : f32
    %101 = vector.broadcast %cst_39 : f32 to vector<2x128xf32>
    %102 = arith.addf %101, %100 : vector<2x128xf32>
    %103 = arith.divf %101, %102 : vector<2x128xf32>
    %104 = vector.extract_strided_slice %80 {offsets = [0, 256], sizes = [2, 128], strides = [1, 1]} : vector<2x384xf32> to vector<2x128xf32>
    %105 = vector.extract_strided_slice %87 {offsets = [0, 256], sizes = [2, 128], strides = [1, 1]} : vector<2x384xf32> to vector<2x128xf32>
    %106 = arith.mulf %95, %105 : vector<2x128xf32>
    %107 = arith.addf %104, %106 : vector<2x128xf32>
    %108 = math.tanh %107 : vector<2x128xf32>
    %cst_40 = arith.constant 1.000000e+00 : f32
    %109 = vector.broadcast %cst_40 : f32 to vector<2x128xf32>
    %110 = arith.subf %109, %103 : vector<2x128xf32>
    %111 = arith.mulf %110, %108 : vector<2x128xf32>
    %112 = arith.mulf %103, %81 : vector<2x128xf32>
    %113 = arith.addf %111, %112 : vector<2x128xf32>
    %c0_41 = arith.constant 0 : index
    %c0_42 = arith.constant 0 : index
    %114 = vector.load %arg23[%c0_41, %c0_42] : memref<2x128xf32, #tpu.memory_space<vmem>>, vector<2x128xf32>
    tpu.vector_store %arg23[%c0_41, %c0_42], %113 {strides = array<i32>} : memref<2x128xf32, #tpu.memory_space<vmem>>, vector<2x128xf32>,
    %c0_43 = arith.constant 0 : index
    %c0_44 = arith.constant 0 : index
    %115 = vector.load %arg14[%c0_43, %c0_44] : memref<128x256xbf16, #tpu.memory_space<vmem>>, vector<128x256xbf16>
    %116 = arith.truncf %113 : vector<2x128xf32> to vector<2x128xbf16>
    %cst_45 = arith.constant dense<0.000000e+00> : vector<2x256xf32>
    %117 = tpu.matmul %116, %115, %cst_45 {dimension_numbers = #tpu.dot_dimension_numbers<[1], [0], [0], [1], [0, 0, 1, 1], [], []>} : vector<2x128xbf16>, vector<128x256xbf16>, vector<2x256xf32> -> vector<2x256xf32>
    %c0_46 = arith.constant 0 : index
    %c0_47 = arith.constant 0 : index
    %118 = vector.load %arg15[%c0_46, %c0_47] : memref<1x256xf32, #tpu.memory_space<vmem>>, vector<1x256xf32>
    %119 = vector.broadcast %118 : vector<1x256xf32> to vector<2x256xf32>
    %120 = arith.addf %117, %119 : vector<2x256xf32>
    %cst_48 = arith.constant 0.000000e+00 : f32
    %121 = vector.broadcast %cst_48 : f32 to vector<2x256xf32>
    %122 = arith.maximumf %120, %121 : vector<2x256xf32>
    %c0_49 = arith.constant 0 : index
    %c0_50 = arith.constant 0 : index
    %123 = vector.load %arg16[%c0_49, %c0_50] : memref<256x512xbf16, #tpu.memory_space<vmem>>, vector<256x512xbf16>
    %124 = arith.truncf %122 : vector<2x256xf32> to vector<2x256xbf16>
    %cst_51 = arith.constant dense<0.000000e+00> : vector<2x512xf32>
    %125 = tpu.matmul %124, %123, %cst_51 {dimension_numbers = #tpu.dot_dimension_numbers<[1], [0], [0], [1], [0, 0, 1, 1], [], []>} : vector<2x256xbf16>, vector<256x512xbf16>, vector<2x512xf32> -> vector<2x512xf32>
    %c0_52 = arith.constant 0 : index
    %c0_53 = arith.constant 0 : index
    %126 = vector.load %arg17[%c0_52, %c0_53] : memref<1x512xf32, #tpu.memory_space<vmem>>, vector<1x512xf32>
    %127 = vector.broadcast %126 : vector<1x512xf32> to vector<2x512xf32>
    %128 = arith.addf %125, %127 : vector<2x512xf32>
    %cst_54 = arith.constant 0.000000e+00 : f32
    %129 = vector.broadcast %cst_54 : f32 to vector<2x512xf32>
    %130 = arith.maximumf %128, %129 : vector<2x512xf32>
    %c0_55 = arith.constant 0 : index
    %c0_56 = arith.constant 0 : index
    %131 = vector.load %arg18[%c0_55, %c0_56] : memref<512x1024xbf16, #tpu.memory_space<vmem>>, vector<512x1024xbf16>
    %132 = arith.truncf %130 : vector<2x512xf32> to vector<2x512xbf16>
    %cst_57 = arith.constant dense<0.000000e+00> : vector<2x1024xf32>
    %133 = tpu.matmul %132, %131, %cst_57 {dimension_numbers = #tpu.dot_dimension_numbers<[1], [0], [0], [1], [0, 0, 1, 1], [], []>} : vector<2x512xbf16>, vector<512x1024xbf16>, vector<2x1024xf32> -> vector<2x1024xf32>
    %c0_58 = arith.constant 0 : index
    %c0_59 = arith.constant 0 : index
    %134 = vector.load %arg19[%c0_58, %c0_59] : memref<1x1024xf32, #tpu.memory_space<vmem>>, vector<1x1024xf32>
    %135 = vector.broadcast %134 : vector<1x1024xf32> to vector<2x1024xf32>
    %136 = arith.addf %133, %135 : vector<2x1024xf32>
    %cst_60 = arith.constant 0.000000e+00 : f32
    %137 = vector.broadcast %cst_60 : f32 to vector<2x1024xf32>
    %138 = arith.maximumf %136, %137 : vector<2x1024xf32>
    %c0_61 = arith.constant 0 : index
    %c0_62 = arith.constant 0 : index
    %139 = vector.load %arg20[%c0_61, %c0_62] : memref<1024x128xbf16, #tpu.memory_space<vmem>>, vector<1024x128xbf16>
    %140 = arith.truncf %138 : vector<2x1024xf32> to vector<2x1024xbf16>
    %cst_63 = arith.constant dense<0.000000e+00> : vector<2x128xf32>
    %141 = tpu.matmul %140, %139, %cst_63 {dimension_numbers = #tpu.dot_dimension_numbers<[1], [0], [0], [1], [0, 0, 1, 1], [], []>} : vector<2x1024xbf16>, vector<1024x128xbf16>, vector<2x128xf32> -> vector<2x128xf32>
    %c0_64 = arith.constant 0 : index
    %c0_65 = arith.constant 0 : index
    %142 = vector.load %arg21[%c0_64, %c0_65] : memref<1x128xf32, #tpu.memory_space<vmem>>, vector<1x128xf32>
    %143 = vector.broadcast %142 : vector<1x128xf32> to vector<2x128xf32>
    %144 = arith.addf %141, %143 : vector<2x128xf32>
    %145 = arith.negf %144 : vector<2x128xf32>
    %146 = math.exp %145 : vector<2x128xf32>
    %cst_66 = arith.constant 1.000000e+00 : f32
    %147 = vector.broadcast %cst_66 : f32 to vector<2x128xf32>
    %148 = arith.addf %147, %146 : vector<2x128xf32>
    %149 = arith.divf %147, %148 : vector<2x128xf32>
    %c0_67 = arith.constant 0 : index
    %c0_68 = arith.constant 0 : index
    %150 = vector.load %arg22[%c0_67, %c0_68] : memref<2x128xf32, #tpu.memory_space<vmem>>, vector<2x128xf32>
    tpu.vector_store %arg22[%c0_67, %c0_68], %149 {strides = array<i32>} : memref<2x128xf32, #tpu.memory_space<vmem>>, vector<2x128xf32>,
    return
  }
  func.func @transform_0(%arg0: i32) -> (i32, i32) {
    %c0_i32 = arith.constant 0 : i32
    %c0_i32_0 = arith.constant 0 : i32
    return %arg0, %c0_i32 : i32, i32
  }
  func.func @transform_1(%arg0: i32) -> (i32, i32) {
    %c0_i32 = arith.constant 0 : i32
    %c0_i32_0 = arith.constant 0 : i32
    return %arg0, %c0_i32 : i32, i32
  }
  func.func @transform_2(%arg0: i32) -> (i32, i32) {
    %c0_i32 = arith.constant 0 : i32
    %c0_i32_0 = arith.constant 0 : i32
    return %arg0, %c0_i32 : i32, i32
  }
  func.func @transform_3(%arg0: i32) -> (i32, i32) {
    %c0_i32 = arith.constant 0 : i32
    %c0_i32_0 = arith.constant 0 : i32
    %c0_i32_1 = arith.constant 0 : i32
    return %c0_i32, %c0_i32_0 : i32, i32
  }
  func.func @transform_4(%arg0: i32) -> (i32, i32) {
    %c0_i32 = arith.constant 0 : i32
    %c0_i32_0 = arith.constant 0 : i32
    %c0_i32_1 = arith.constant 0 : i32
    return %c0_i32, %c0_i32_0 : i32, i32
  }
  func.func @transform_5(%arg0: i32) -> (i32, i32) {
    %c0_i32 = arith.constant 0 : i32
    %c0_i32_0 = arith.constant 0 : i32
    %c0_i32_1 = arith.constant 0 : i32
    return %c0_i32, %c0_i32_0 : i32, i32
  }
  func.func @transform_6(%arg0: i32) -> (i32, i32) {
    %c0_i32 = arith.constant 0 : i32
    %c0_i32_0 = arith.constant 0 : i32
    %c0_i32_1 = arith.constant 0 : i32
    return %c0_i32, %c0_i32_0 : i32, i32
  }
  func.func @transform_7(%arg0: i32) -> (i32, i32) {
    %c0_i32 = arith.constant 0 : i32
    %c0_i32_0 = arith.constant 0 : i32
    %c0_i32_1 = arith.constant 0 : i32
    return %c0_i32, %c0_i32_0 : i32, i32
  }
  func.func @transform_8(%arg0: i32) -> (i32, i32) {
    %c0_i32 = arith.constant 0 : i32
    %c0_i32_0 = arith.constant 0 : i32
    %c0_i32_1 = arith.constant 0 : i32
    return %c0_i32, %c0_i32_0 : i32, i32
  }
  func.func @transform_9(%arg0: i32) -> (i32, i32) {
    %c0_i32 = arith.constant 0 : i32
    %c0_i32_0 = arith.constant 0 : i32
    %c0_i32_1 = arith.constant 0 : i32
    return %c0_i32, %c0_i32_0 : i32, i32
  }
  func.func @transform_10(%arg0: i32) -> (i32, i32) {
    %c0_i32 = arith.constant 0 : i32
    %c0_i32_0 = arith.constant 0 : i32
    %c0_i32_1 = arith.constant 0 : i32
    return %c0_i32, %c0_i32_0 : i32, i32
  }
  func.func @transform_11(%arg0: i32) -> (i32, i32) {
    %c0_i32 = arith.constant 0 : i32
    %c0_i32_0 = arith.constant 0 : i32
    %c0_i32_1 = arith.constant 0 : i32
    return %c0_i32, %c0_i32_0 : i32, i32
  }
  func.func @transform_12(%arg0: i32) -> (i32, i32) {
    %c0_i32 = arith.constant 0 : i32
    %c0_i32_0 = arith.constant 0 : i32
    %c0_i32_1 = arith.constant 0 : i32
    return %c0_i32, %c0_i32_0 : i32, i32
  }
  func.func @transform_13(%arg0: i32) -> (i32, i32) {
    %c0_i32 = arith.constant 0 : i32
    %c0_i32_0 = arith.constant 0 : i32
    %c0_i32_1 = arith.constant 0 : i32
    return %c0_i32, %c0_i32_0 : i32, i32
  }
  func.func @transform_14(%arg0: i32) -> (i32, i32) {
    %c0_i32 = arith.constant 0 : i32
    %c0_i32_0 = arith.constant 0 : i32
    %c0_i32_1 = arith.constant 0 : i32
    return %c0_i32, %c0_i32_0 : i32, i32
  }
  func.func @transform_15(%arg0: i32) -> (i32, i32) {
    %c0_i32 = arith.constant 0 : i32
    %c0_i32_0 = arith.constant 0 : i32
    %c0_i32_1 = arith.constant 0 : i32
    return %c0_i32, %c0_i32_0 : i32, i32
  }
  func.func @transform_16(%arg0: i32) -> (i32, i32) {
    %c0_i32 = arith.constant 0 : i32
    %c0_i32_0 = arith.constant 0 : i32
    %c0_i32_1 = arith.constant 0 : i32
    return %c0_i32, %c0_i32_0 : i32, i32
  }
  func.func @transform_17(%arg0: i32) -> (i32, i32) {
    %c0_i32 = arith.constant 0 : i32
    %c0_i32_0 = arith.constant 0 : i32
    %c0_i32_1 = arith.constant 0 : i32
    return %c0_i32, %c0_i32_0 : i32, i32
  }
  func.func @transform_18(%arg0: i32) -> (i32, i32) {
    %c0_i32 = arith.constant 0 : i32
    %c0_i32_0 = arith.constant 0 : i32
    %c0_i32_1 = arith.constant 0 : i32
    return %c0_i32, %c0_i32_0 : i32, i32
  }
  func.func @transform_19(%arg0: i32) -> (i32, i32) {
    %c0_i32 = arith.constant 0 : i32
    %c0_i32_0 = arith.constant 0 : i32
    %c0_i32_1 = arith.constant 0 : i32
    return %c0_i32, %c0_i32_0 : i32, i32
  }
  func.func @transform_20(%arg0: i32) -> (i32, i32) {
    %c0_i32 = arith.constant 0 : i32
    %c0_i32_0 = arith.constant 0 : i32
    %c0_i32_1 = arith.constant 0 : i32
    return %c0_i32, %c0_i32_0 : i32, i32
  }
  func.func @transform_21(%arg0: i32) -> (i32, i32) {
    %c0_i32 = arith.constant 0 : i32
    %c0_i32_0 = arith.constant 0 : i32
    return %arg0, %c0_i32 : i32, i32
  }
  func.func @transform_22(%arg0: i32) -> (i32, i32) {
    %c0_i32 = arith.constant 0 : i32
    %c0_i32_0 = arith.constant 0 : i32
    return %arg0, %c0_i32 : i32, i32
  }
}

</mosaic_0001>

<llo_original>
// kernel: tpu_custom_call.1
$region0: #{tpu_custom_call.1}
  #allocation0 [shape = 'u32[]', space=smem, size = 0x4, offset = 0x4, fixed_abs, tag = 'smem constant byte address 0x4 - core index']
  #allocation1 [shape = 'u32[144,128]{1,0:T(1,128)}', space=vmem, size = 0x12000, scoped, tag = 'internal scratch']
  %s0 = inlined_call_operand.vmem [shape: f32[2,25], index: 0, kind: input, shape index: {}]
  %s1 = inlined_call_operand.vmem [shape: f32[2,2], index: 1, kind: input, shape index: {}]
  %s2 = inlined_call_operand.hbm [shape: f32[2,128], index: 2, kind: input, shape index: {}, may-alias: {2,22}]
  %s3 = inlined_call_operand.hbm [shape: bf16[25,512], index: 3, kind: input, shape index: {}]
  %s4 = inlined_call_operand.vmem [shape: f32[1,512], index: 4, kind: input, shape index: {}]
  %s5 = inlined_call_operand.hbm [shape: bf16[128,512], index: 5, kind: input, shape index: {}]
  %s6 = inlined_call_operand.vmem [shape: f32[1,512], index: 6, kind: input, shape index: {}]
  %s7 = inlined_call_operand.hbm [shape: bf16[128,384], index: 7, kind: input, shape index: {}]
  %s8 = inlined_call_operand.vmem [shape: f32[3,384], index: 8, kind: input, shape index: {}]
  %s9 = inlined_call_operand.vmem [shape: f32[1,384], index: 9, kind: input, shape index: {}]
  %s10 = inlined_call_operand.hbm [shape: bf16[128,384], index: 10, kind: input, shape index: {}]
  %s11 = inlined_call_operand.hbm [shape: f32[1,384], index: 11, kind: input, shape index: {}]
  %s12 = inlined_call_operand.hbm [shape: f32[1,384], index: 12, kind: input, shape index: {}]
  %s13 = inlined_call_operand.hbm [shape: bf16[128,256], index: 13, kind: input, shape index: {}]
  %s14 = inlined_call_operand.hbm [shape: f32[1,256], index: 14, kind: input, shape index: {}]
  %s15 = inlined_call_operand.hbm [shape: bf16[256,512], index: 15, kind: input, shape index: {}]
  %s16 = inlined_call_operand.hbm [shape: f32[1,512], index: 16, kind: input, shape index: {}]
  %s17 = inlined_call_operand.hbm [shape: bf16[512,1024], index: 17, kind: input, shape index: {}]
  %s18 = inlined_call_operand.hbm [shape: f32[1,1024], index: 18, kind: input, shape index: {}]
  %s19 = inlined_call_operand.hbm [shape: bf16[1024,128], index: 19, kind: input, shape index: {}]
  %s20 = inlined_call_operand.hbm [shape: f32[1,128], index: 20, kind: input, shape index: {}]
  %s21 = inlined_call_operand.hbm [shape: f32[2,128], index: 21, kind: output, shape index: {0}]
  %s22 = inlined_call_operand.hbm [shape: f32[2,128], index: 22, kind: output, shape index: {1}, may-alias: {2,22}]
  %23 = xla_tuple %s21, %s22
  %s24 = sld [smem:[#allocation0]]
  $region162: #{tpu_custom_call.1} parent=0
    _
  %s26 = ssub.s32 1, %s24
  %s27 = scalar_select 0, %s26, %s24
  $region1: #{tpu_custom_call.1} parent=0
    #allocation2 [shape = 'u8[1024]{0}', space=vmem, size = 0x400, scoped, tag = 'input window, operand 2, single buffered']
    #allocation3 [shape = 's32[1]{0}', space=sflag, size = 0x4, scoped, tag = 'scoped memory for tpu_custom_call.1']
    #allocation4 [shape = 's32[1]{0}', space=sflag, size = 0x4, scoped, tag = 'scoped memory for tpu_custom_call.1']
    #allocation5 [shape = 'u8[32768]{0}', space=vmem, size = 0x8000, scoped, tag = 'input window, operand 3, single buffered']
    #allocation6 [shape = 's32[1]{0}', space=sflag, size = 0x4, scoped, tag = 'scoped memory for tpu_custom_call.1']
    #allocation7 [shape = 'u8[131072]{0}', space=vmem, size = 0x20000, scoped, tag = 'input window, operand 5, single buffered']
    #allocation8 [shape = 'u8[98304]{0}', space=vmem, size = 0x18000, scoped, tag = 'input window, operand 7, single buffered']
    #allocation9 [shape = 's32[1]{0}', space=sflag, size = 0x4, scoped, tag = 'scoped memory for tpu_custom_call.1']
    #allocation10 [shape = 'u8[98304]{0}', space=vmem, size = 0x18000, scoped, tag = 'input window, operand 10, single buffered']
    #allocation11 [shape = 'u8[1536]{0}', space=vmem, size = 0x800, scoped, tag = 'input window, operand 11, single buffered']
    #allocation12 [shape = 's32[1]{0}', space=sflag, size = 0x4, scoped, tag = 'scoped memory for tpu_custom_call.1']
    #allocation13 [shape = 'u8[1536]{0}', space=vmem, size = 0x800, scoped, tag = 'input window, operand 12, single buffered']
    #allocation14 [shape = 'u8[65536]{0}', space=vmem, size = 0x10000, scoped, tag = 'input window, operand 13, single buffered']
    #allocation15 [shape = 's32[1]{0}', space=sflag, size = 0x4, scoped, tag = 'scoped memory for tpu_custom_call.1']
    #allocation16 [shape = 'u8[1024]{0}', space=vmem, size = 0x400, scoped, tag = 'input window, operand 14, single buffered']
    #allocation17 [shape = 'u8[262144]{0}', space=vmem, size = 0x40000, scoped, tag = 'input window, operand 15, single buffered']
    #allocation18 [shape = 's32[1]{0}', space=sflag, size = 0x4, scoped, tag = 'scoped memory for tpu_custom_call.1']
    #allocation19 [shape = 'u8[2048]{0}', space=vmem, size = 0x800, scoped, tag = 'input window, operand 16, single buffered']
    #allocation20 [shape = 'u8[1048576]{0}', space=vmem, size = 0x100000, scoped, tag = 'input window, operand 17, single buffered']
    #allocation21 [shape = 's32[1]{0}', space=sflag, size = 0x4, scoped, tag = 'scoped memory for tpu_custom_call.1']
    #allocation22 [shape = 'u8[4096]{0}', space=vmem, size = 0x1000, scoped, tag = 'input window, operand 18, single buffered']
    #allocation23 [shape = 'u8[262144]{0}', space=vmem, size = 0x40000, scoped, tag = 'input window, operand 19, single buffered']
    #allocation24 [shape = 's32[1]{0}', space=sflag, size = 0x4, scoped, tag = 'scoped memory for tpu_custom_call.1']
    #allocation25 [shape = 'u8[512]{0}', space=vmem, size = 0x400, scoped, tag = 'input window, operand 20, single buffered']
    #allocation26 [shape = 'u8[1024]{0}', space=vmem, size = 0x400, scoped, tag = 'output window, operand 0, single buffered']
    #allocation27 [shape = 'u8[1024]{0}', space=vmem, size = 0x400, scoped, tag = 'output window, operand 1, single buffered']
    #allocation28 [shape = 's32[1]{0}', space=sflag, size = 0x4, scoped, tag = 'scoped memory for tpu_custom_call.1']
    %28 = vsyncpa [#allocation3], 0
    %29 = vsyncpa [#allocation6], 0
    %30 = vsyncpa [#allocation9], 0
    %31 = vsyncpa [#allocation12], 0
    %32 = vsyncpa [#allocation15], 0
    %33 = vsyncpa [#allocation18], 0
    %34 = vsyncpa [#allocation21], 0
    %35 = vsyncpa [#allocation24], 0
    %36 = vsyncpa [#allocation4], 0
    %37 = vsyncpa [#allocation28], 0
    // Predicated region
    $region2: #{tpu_custom_call.1} parent=1 // pred_check
      _
    $region3: #{tpu_custom_call.1} parent=1 // pred_check_branch
      %39 = sbr.rel (0) target = $region5
    $region4: #{tpu_custom_call.1} parent=1 // pred_region
      _
    $region5: #{tpu_custom_call.1} parent=1 // pred_fallthru
      _
    // Predicated region
    $region6: #{tpu_custom_call.1} parent=1 // pred_check
      _
    $region7: #{tpu_custom_call.1} parent=1 // pred_check_branch
      %41 = sbr.rel (0) target = $region9
    $region8: #{tpu_custom_call.1} parent=1 // pred_region
      _
    $region9: #{tpu_custom_call.1} parent=1 // pred_fallthru
      _
    // Predicated region
    $region10: #{tpu_custom_call.1} parent=1 // pred_check
      _
    $region11: #{tpu_custom_call.1} parent=1 // pred_check_branch
      %43 = sbr.rel (0) target = $region13
    $region12: #{tpu_custom_call.1} parent=1 // pred_region
      %s45 = ssub.s32 32, 32
      %46 = vsyncadd [#allocation3], %s45
      %s48 = sshll.u32 [#allocation2], 4
      %s49 = int_to_ptr.vmem [resolvable:$true] %s48
      %51 = dma.hbm_to_vmem [thread:$0]  %s2, 32, %s49, [#allocation3]
    $region13: #{tpu_custom_call.1} parent=1 // pred_fallthru
      _
    // Predicated region
    $region14: #{tpu_custom_call.1} parent=1 // pred_check
      _
    $region15: #{tpu_custom_call.1} parent=1 // pred_check_branch
      %53 = sbr.rel (0) target = $region17
    $region16: #{tpu_custom_call.1} parent=1 // pred_region
      %s55 = ssub.s32 1024, 1024
      %56 = vsyncadd [#allocation6], %s55
      %s57 = sshll.u32 [#allocation5], 4
      %s58 = int_to_ptr.vmem [resolvable:$true] %s57
      %63 = dma.hbm_to_vmem [thread:$0]  %s3, 1024, %s58, [#allocation6], 256, 256, 16
    $region17: #{tpu_custom_call.1} parent=1 // pred_fallthru
      _
    // Predicated region
    $region18: #{tpu_custom_call.1} parent=1 // pred_check
      _
    $region19: #{tpu_custom_call.1} parent=1 // pred_check_branch
      %65 = sbr.rel (0) target = $region21
    $region20: #{tpu_custom_call.1} parent=1 // pred_region
      _
    $region21: #{tpu_custom_call.1} parent=1 // pred_fallthru
      _
    // Predicated region
    $region22: #{tpu_custom_call.1} parent=1 // pred_check
      _
    $region23: #{tpu_custom_call.1} parent=1 // pred_check_branch
      %67 = sbr.rel (0) target = $region25
    $region24: #{tpu_custom_call.1} parent=1 // pred_region
      %s69 = ssub.s32 4096, 4096
      %70 = vsyncadd [#allocation6], %s69
      %s71 = sshll.u32 [#allocation7], 4
      %s72 = int_to_ptr.vmem [resolvable:$true] %s71
      %77 = dma.hbm_to_vmem [thread:$0]  %s5, 4096, %s72, [#allocation6], 256, 256, 16
    $region25: #{tpu_custom_call.1} parent=1 // pred_fallthru
      _
    // Predicated region
    $region26: #{tpu_custom_call.1} parent=1 // pred_check
      _
    $region27: #{tpu_custom_call.1} parent=1 // pred_check_branch
      %79 = sbr.rel (0) target = $region29
    $region28: #{tpu_custom_call.1} parent=1 // pred_region
      _
    $region29: #{tpu_custom_call.1} parent=1 // pred_fallthru
      _
    // Predicated region
    $region30: #{tpu_custom_call.1} parent=1 // pred_check
      _
    $region31: #{tpu_custom_call.1} parent=1 // pred_check_branch
      %81 = sbr.rel (0) target = $region33
    $region32: #{tpu_custom_call.1} parent=1 // pred_region
      %s83 = ssub.s32 3072, 3072
      %84 = vsyncadd [#allocation9], %s83
      %s85 = sshll.u32 [#allocation8], 4
      %s86 = int_to_ptr.vmem [resolvable:$true] %s85
      %91 = dma.hbm_to_vmem [thread:$0]  %s7, 3072, %s86, [#allocation9], 192, 192, 12
    $region33: #{tpu_custom_call.1} parent=1 // pred_fallthru
      _
    // Predicated region
    $region34: #{tpu_custom_call.1} parent=1 // pred_check
      _
    $region35: #{tpu_custom_call.1} parent=1 // pred_check_branch
      %93 = sbr.rel (0) target = $region37
    $region36: #{tpu_custom_call.1} parent=1 // pred_region
      _
    $region37: #{tpu_custom_call.1} parent=1 // pred_fallthru
      _
    // Predicated region
    $region38: #{tpu_custom_call.1} parent=1 // pred_check
      _
    $region39: #{tpu_custom_call.1} parent=1 // pred_check_branch
      %95 = sbr.rel (0) target = $region41
    $region40: #{tpu_custom_call.1} parent=1 // pred_region
      _
    $region41: #{tpu_custom_call.1} parent=1 // pred_fallthru
      _
    // Predicated region
    $region42: #{tpu_custom_call.1} parent=1 // pred_check
      _
    $region43: #{tpu_custom_call.1} parent=1 // pred_check_branch
      %97 = sbr.rel (0) target = $region45
    $region44: #{tpu_custom_call.1} parent=1 // pred_region
      %s99 = ssub.s32 3072, 3072
      %100 = vsyncadd [#allocation9], %s99
      %s101 = sshll.u32 [#allocation10], 4
      %s102 = int_to_ptr.vmem [resolvable:$true] %s101
      %107 = dma.hbm_to_vmem [thread:$0]  %s10, 3072, %s102, [#allocation9], 192, 192, 12
    $region45: #{tpu_custom_call.1} parent=1 // pred_fallthru
      _
    // Predicated region
    $region46: #{tpu_custom_call.1} parent=1 // pred_check
      _
    $region47: #{tpu_custom_call.1} parent=1 // pred_check_branch
      %109 = sbr.rel (0) target = $region49
    $region48: #{tpu_custom_call.1} parent=1 // pred_region
      %s111 = ssub.s32 48, 48
      %112 = vsyncadd [#allocation12], %s111
      %s114 = sshll.u32 [#allocation11], 4
      %s115 = int_to_ptr.vmem [resolvable:$true] %s114
      %117 = dma.hbm_to_vmem [thread:$0]  %s11, 48, %s115, [#allocation12]
    $region49: #{tpu_custom_call.1} parent=1 // pred_fallthru
      _
    // Predicated region
    $region50: #{tpu_custom_call.1} parent=1 // pred_check
      _
    $region51: #{tpu_custom_call.1} parent=1 // pred_check_branch
      %119 = sbr.rel (0) target = $region53
    $region52: #{tpu_custom_call.1} parent=1 // pred_region
      %s121 = ssub.s32 48, 48
      %122 = vsyncadd [#allocation12], %s121
      %s124 = sshll.u32 [#allocation13], 4
      %s125 = int_to_ptr.vmem [resolvable:$true] %s124
      %127 = dma.hbm_to_vmem [thread:$0]  %s12, 48, %s125, [#allocation12]
    $region53: #{tpu_custom_call.1} parent=1 // pred_fallthru
      _
    // Predicated region
    $region54: #{tpu_custom_call.1} parent=1 // pred_check
      _
    $region55: #{tpu_custom_call.1} parent=1 // pred_check_branch
      %129 = sbr.rel (0) target = $region57
    $region56: #{tpu_custom_call.1} parent=1 // pred_region
      %s131 = ssub.s32 2048, 2048
      %132 = vsyncadd [#allocation15], %s131
      %s133 = sshll.u32 [#allocation14], 4
      %s134 = int_to_ptr.vmem [resolvable:$true] %s133
      %139 = dma.hbm_to_vmem [thread:$0]  %s13, 2048, %s134, [#allocation15], 128, 128, 8
    $region57: #{tpu_custom_call.1} parent=1 // pred_fallthru
      _
    // Predicated region
    $region58: #{tpu_custom_call.1} parent=1 // pred_check
      _
    $region59: #{tpu_custom_call.1} parent=1 // pred_check_branch
      %141 = sbr.rel (0) target = $region61
    $region60: #{tpu_custom_call.1} parent=1 // pred_region
      %s143 = ssub.s32 32, 32
      %144 = vsyncadd [#allocation15], %s143
      %s146 = sshll.u32 [#allocation16], 4
      %s147 = int_to_ptr.vmem [resolvable:$true] %s146
      %149 = dma.hbm_to_vmem [thread:$0]  %s14, 32, %s147, [#allocation15]
    $region61: #{tpu_custom_call.1} parent=1 // pred_fallthru
      _
    // Predicated region
    $region62: #{tpu_custom_call.1} parent=1 // pred_check
      _
    $region63: #{tpu_custom_call.1} parent=1 // pred_check_branch
      %151 = sbr.rel (0) target = $region65
    $region64: #{tpu_custom_call.1} parent=1 // pred_region
      %s153 = ssub.s32 8192, 8192
      %154 = vsyncadd [#allocation18], %s153
      %s155 = sshll.u32 [#allocation17], 4
      %s156 = int_to_ptr.vmem [resolvable:$true] %s155
      %161 = dma.hbm_to_vmem [thread:$0]  %s15, 8192, %s156, [#allocation18], 256, 256, 16
    $region65: #{tpu_custom_call.1} parent=1 // pred_fallthru
      _
    // Predicated region
    $region66: #{tpu_custom_call.1} parent=1 // pred_check
      _
    $region67: #{tpu_custom_call.1} parent=1 // pred_check_branch
      %163 = sbr.rel (0) target = $region69
    $region68: #{tpu_custom_call.1} parent=1 // pred_region
      %s165 = ssub.s32 64, 64
      %166 = vsyncadd [#allocation18], %s165
      %s168 = sshll.u32 [#allocation19], 4
      %s169 = int_to_ptr.vmem [resolvable:$true] %s168
      %171 = dma.hbm_to_vmem [thread:$0]  %s16, 64, %s169, [#allocation18]
    $region69: #{tpu_custom_call.1} parent=1 // pred_fallthru
      _
    // Predicated region
    $region70: #{tpu_custom_call.1} parent=1 // pred_check
      _
    $region71: #{tpu_custom_call.1} parent=1 // pred_check_branch
      %173 = sbr.rel (0) target = $region73
    $region72: #{tpu_custom_call.1} parent=1 // pred_region
      %s175 = ssub.s32 32768, 32768
      %176 = vsyncadd [#allocation21], %s175
      %s177 = sshll.u32 [#allocation20], 4
      %s178 = int_to_ptr.vmem [resolvable:$true] %s177
      %183 = dma.hbm_to_vmem [thread:$0]  %s17, 32768, %s178, [#allocation21], 512, 512, 32
    $region73: #{tpu_custom_call.1} parent=1 // pred_fallthru
      _
    // Predicated region
    $region74: #{tpu_custom_call.1} parent=1 // pred_check
      _
    $region75: #{tpu_custom_call.1} parent=1 // pred_check_branch
      %185 = sbr.rel (0) target = $region77
    $region76: #{tpu_custom_call.1} parent=1 // pred_region
      %s187 = ssub.s32 128, 128
      %188 = vsyncadd [#allocation21], %s187
      %s190 = sshll.u32 [#allocation22], 4
      %s191 = int_to_ptr.vmem [resolvable:$true] %s190
      %193 = dma.hbm_to_vmem [thread:$0]  %s18, 128, %s191, [#allocation21]
    $region77: #{tpu_custom_call.1} parent=1 // pred_fallthru
      _
    // Predicated region
    $region78: #{tpu_custom_call.1} parent=1 // pred_check
      _
    $region79: #{tpu_custom_call.1} parent=1 // pred_check_branch
      %195 = sbr.rel (0) target = $region81
    $region80: #{tpu_custom_call.1} parent=1 // pred_region
      %s197 = ssub.s32 8192, 8192
      %198 = vsyncadd [#allocation24], %s197
      %s199 = sshll.u32 [#allocation23], 4
      %s200 = int_to_ptr.vmem [resolvable:$true] %s199
      %205 = dma.hbm_to_vmem [thread:$0]  %s19, 8192, %s200, [#allocation24], 64, 64, 4
    $region81: #{tpu_custom_call.1} parent=1 // pred_fallthru
      _
    // Predicated region
    $region82: #{tpu_custom_call.1} parent=1 // pred_check
      _
    $region83: #{tpu_custom_call.1} parent=1 // pred_check_branch
      %207 = sbr.rel (0) target = $region85
    $region84: #{tpu_custom_call.1} parent=1 // pred_region
      %s209 = ssub.s32 16, 16
      %210 = vsyncadd [#allocation24], %s209
      %s212 = sshll.u32 [#allocation25], 4
      %s213 = int_to_ptr.vmem [resolvable:$true] %s212
      %215 = dma.hbm_to_vmem [thread:$0]  %s20, 16, %s213, [#allocation24]
    $region85: #{tpu_custom_call.1} parent=1 // pred_fallthru
      _
    // Predicated region
    $region86: #{tpu_custom_call.1} parent=1 // pred_check
      _
    $region87: #{tpu_custom_call.1} parent=1 // pred_check_branch
      %217 = sbr.rel (0) target = $region89
    $region88: #{tpu_custom_call.1} parent=1 // pred_region
      %218 = dma.done [#allocation3], 32
    $region89: #{tpu_custom_call.1} parent=1 // pred_fallthru
      _
    // Predicated region
    $region90: #{tpu_custom_call.1} parent=1 // pred_check
      _
    $region91: #{tpu_custom_call.1} parent=1 // pred_check_branch
      %220 = sbr.rel (0) target = $region93
    $region92: #{tpu_custom_call.1} parent=1 // pred_region
      %221 = dma.done [#allocation6], 1024
    $region93: #{tpu_custom_call.1} parent=1 // pred_fallthru
      _
    // Predicated region
    $region94: #{tpu_custom_call.1} parent=1 // pred_check
      _
    $region95: #{tpu_custom_call.1} parent=1 // pred_check_branch
      %223 = sbr.rel (0) target = $region97
    $region96: #{tpu_custom_call.1} parent=1 // pred_region
      %224 = dma.done [#allocation6], 4096
    $region97: #{tpu_custom_call.1} parent=1 // pred_fallthru
      _
    // Predicated region
    $region98: #{tpu_custom_call.1} parent=1 // pred_check
      _
    $region99: #{tpu_custom_call.1} parent=1 // pred_check_branch
      %226 = sbr.rel (0) target = $region101
    $region100: #{tpu_custom_call.1} parent=1 // pred_region
      %227 = dma.done [#allocation9], 3072
    $region101: #{tpu_custom_call.1} parent=1 // pred_fallthru
      _
    // Predicated region
    $region102: #{tpu_custom_call.1} parent=1 // pred_check
      _
    $region103: #{tpu_custom_call.1} parent=1 // pred_check_branch
      %229 = sbr.rel (0) target = $region105
    $region104: #{tpu_custom_call.1} parent=1 // pred_region
      %230 = dma.done [#allocation9], 3072
    $region105: #{tpu_custom_call.1} parent=1 // pred_fallthru
      _
    // Predicated region
    $region106: #{tpu_custom_call.1} parent=1 // pred_check
      _
    $region107: #{tpu_custom_call.1} parent=1 // pred_check_branch
      %232 = sbr.rel (0) target = $region109
    $region108: #{tpu_custom_call.1} parent=1 // pred_region
      %233 = dma.done [#allocation12], 48
    $region109: #{tpu_custom_call.1} parent=1 // pred_fallthru
      _
    // Predicated region
    $region110: #{tpu_custom_call.1} parent=1 // pred_check
      _
    $region111: #{tpu_custom_call.1} parent=1 // pred_check_branch
      %235 = sbr.rel (0) target = $region113
    $region112: #{tpu_custom_call.1} parent=1 // pred_region
      %236 = dma.done [#allocation12], 48
    $region113: #{tpu_custom_call.1} parent=1 // pred_fallthru
      _
    // Predicated region
    $region114: #{tpu_custom_call.1} parent=1 // pred_check
      _
    $region115: #{tpu_custom_call.1} parent=1 // pred_check_branch
      %238 = sbr.rel (0) target = $region117
    $region116: #{tpu_custom_call.1} parent=1 // pred_region
      %239 = dma.done [#allocation15], 2048
    $region117: #{tpu_custom_call.1} parent=1 // pred_fallthru
      _
    // Predicated region
    $region118: #{tpu_custom_call.1} parent=1 // pred_check
      _
    $region119: #{tpu_custom_call.1} parent=1 // pred_check_branch
      %241 = sbr.rel (0) target = $region121
    $region120: #{tpu_custom_call.1} parent=1 // pred_region
      %242 = dma.done [#allocation15], 32
    $region121: #{tpu_custom_call.1} parent=1 // pred_fallthru
      _
    // Predicated region
    $region122: #{tpu_custom_call.1} parent=1 // pred_check
      _
    $region123: #{tpu_custom_call.1} parent=1 // pred_check_branch
      %244 = sbr.rel (0) target = $region125
    $region124: #{tpu_custom_call.1} parent=1 // pred_region
      %245 = dma.done [#allocation18], 8192
    $region125: #{tpu_custom_call.1} parent=1 // pred_fallthru
      _
    // Predicated region
    $region126: #{tpu_custom_call.1} parent=1 // pred_check
      _
    $region127: #{tpu_custom_call.1} parent=1 // pred_check_branch
      %247 = sbr.rel (0) target = $region129
    $region128: #{tpu_custom_call.1} parent=1 // pred_region
      %248 = dma.done [#allocation18], 64
    $region129: #{tpu_custom_call.1} parent=1 // pred_fallthru
      _
    // Predicated region
    $region130: #{tpu_custom_call.1} parent=1 // pred_check
      _
    $region131: #{tpu_custom_call.1} parent=1 // pred_check_branch
      %250 = sbr.rel (0) target = $region133
    $region132: #{tpu_custom_call.1} parent=1 // pred_region
      %251 = dma.done [#allocation21], 32768
    $region133: #{tpu_custom_call.1} parent=1 // pred_fallthru
      _
    // Predicated region
    $region134: #{tpu_custom_call.1} parent=1 // pred_check
      _
    $region135: #{tpu_custom_call.1} parent=1 // pred_check_branch
      %253 = sbr.rel (0) target = $region137
    $region136: #{tpu_custom_call.1} parent=1 // pred_region
      %254 = dma.done [#allocation21], 128
    $region137: #{tpu_custom_call.1} parent=1 // pred_fallthru
      _
    // Predicated region
    $region138: #{tpu_custom_call.1} parent=1 // pred_check
      _
    $region139: #{tpu_custom_call.1} parent=1 // pred_check_branch
      %256 = sbr.rel (0) target = $region141
    $region140: #{tpu_custom_call.1} parent=1 // pred_region
      %257 = dma.done [#allocation24], 8192
    $region141: #{tpu_custom_call.1} parent=1 // pred_fallthru
      _
    // Predicated region
    $region142: #{tpu_custom_call.1} parent=1 // pred_check
      _
    $region143: #{tpu_custom_call.1} parent=1 // pred_check_branch
      %259 = sbr.rel (0) target = $region145
    $region144: #{tpu_custom_call.1} parent=1 // pred_region
      %260 = dma.done [#allocation24], 16
    $region145: #{tpu_custom_call.1} parent=1 // pred_fallthru
      _
    %v262 = vld [vmem:[%s0] sm:$0x3]
    %v263 = vld [vmem:[#allocation5] sm:$0xff]
    %v264 = vld [vmem:[#allocation5 + $0x8] sm:$0xff]
    %v265 = vld [vmem:[#allocation5 + $0x10] sm:$0xff]
    %v266 = vld [vmem:[#allocation5 + $0x18] sm:$0xff]
    %v267 = vld [vmem:[#allocation5 + $0x20] sm:$0xff]
    %v268 = vld [vmem:[#allocation5 + $0x28] sm:$0xff]
    %v269 = vld [vmem:[#allocation5 + $0x30] sm:$0x11]
    %v270 = vld [vmem:[#allocation5 + $0x38] sm:$0x11]
    %v271 = vpack.c.bf16 %v262, %v262
    %v272 = vld [vmem:[%s4] sm:$0xf]
    %v274 = vlaneseq
    %v275 = vshrl.u32 %v274, 7
    %v276 = vsub.s32 0, %v275
    %v277 = vrot.slane %v272, %v276
    %v278 = vlaneseq
    %v279 = vshrl.u32 %v278, 7
    %v280 = vsub.s32 1, %v279
    %v281 = vrot.slane %v272, %v280
    %v282 = vlaneseq
    %v283 = vshrl.u32 %v282, 7
    %v284 = vsub.s32 2, %v283
    %v285 = vrot.slane %v272, %v284
    %v286 = vlaneseq
    %v287 = vshrl.u32 %v286, 7
    %v288 = vsub.s32 3, %v287
    %v289 = vrot.slane %v272, %v288
    %v302 = vunpack.c.l.b16 %v263
    %v303 = vunpack.c.h.b16 %v263
    %v304 = vunpack.c.l.b16 %v264
    %v305 = vunpack.c.h.b16 %v264
    %v306 = vunpack.c.l.b16 %v265
    %v307 = vunpack.c.h.b16 %v265
    %v308 = vunpack.c.l.b16 %v266
    %v309 = vunpack.c.h.b16 %v266
    %v310 = vunpack.c.l.b16 %v267
    %v311 = vunpack.c.h.b16 %v267
    %v312 = vunpack.c.l.b16 %v268
    %v313 = vunpack.c.h.b16 %v268
    %v314 = vunpack.c.l.b16 %v269
    %v315 = vunpack.c.h.b16 %v269
    %v316 = vunpack.c.l.b16 %v270
    %v317 = vunpack.c.h.b16 %v270
    %v318 = vpack.c.b16 %v306, %v302
    %v319 = vpack.c.b16 %v307, %v303
    %v320 = vpack.c.b16 %v308, %v304
    %v321 = vpack.c.b16 %v309, %v305
    %v322 = vpack.c.b16 %v314, %v310
    %v323 = vpack.c.b16 %v315, %v311
    %v324 = vpack.c.b16 %v316, %v312
    %v325 = vpack.c.b16 %v317, %v313
    %vm330 = vcmask 203776
    %v332 = vsel %vm330, %v271, 0
    %vm334 = vcmask 1043456
    %vm335 = vcmask 1044480
    %v336 = vsel %vm334, 4294967295, 65535
    %v337 = vsel %vm335, %v336, 0
    %v339 = vand.u32 %v322, %v337
    %v342 = vand.u32 %v323, %v337
    %v345 = vand.u32 %v324, %v337
    %v348 = vand.u32 %v325, %v337
    %350 = vmatprep.subr.bf16.mxu0 0
    %351 = vmatpush1.bf16.msra.mxu0 0
    %352 = vmatprep.subr.bf16.mxu0 0
    %353 = vmatpush1.bf16.msra.mxu0 0
    %354 = vmatprep.subr.bf16.mxu0 0
    %355 = vmatpush1.bf16.msra.mxu0 0
    %356 = vmatprep.subr.bf16.mxu0 0
    %357 = vmatpush1.bf16.msra.mxu0 0
    %358 = vmatprep.subr.bf16.mxu0 0
    %359 = vmatpush1.bf16.msra.mxu0 0
    %360 = vmatprep.subr.bf16.mxu0 0
    %361 = vmatpush1.bf16.msra.mxu0 0
    %362 = vmatprep.subr.bf16.mxu0 %v342
    %363 = vmatpush1.bf16.msra.mxu0 %v339
    %364 = vmatprep.subr.bf16.mxu0 %v319
    %365 = vmatpush1.bf16.msra.mxu0 %v318
    %366 = vmatprep.subr.bf16.mxu0 0
    %367 = vmatpush2.bf16.msra.mxu0 0
    %368 = vmatprep.subr.bf16.mxu0 0
    %369 = vmatpush2.bf16.msra.mxu0 0
    %370 = vmatprep.subr.bf16.mxu0 0
    %371 = vmatpush2.bf16.msra.mxu0 0
    %372 = vmatprep.subr.bf16.mxu0 0
    %373 = vmatpush2.bf16.msra.mxu0 0
    %374 = vmatprep.subr.bf16.mxu0 0
    %375 = vmatpush2.bf16.msra.mxu0 0
    %376 = vmatprep.subr.bf16.mxu0 0
    %377 = vmatpush2.bf16.msra.mxu0 0
    %378 = vmatprep.subr.bf16.mxu0 0
    %379 = vmatpush2.bf16.msra.mxu0 0
    %380 = vmatprep.subr.bf16.mxu0 0
    %381 = vmatpush2.bf16.msra.mxu0 0
    %382 = vmatprep.mubr.bf16.mxu0 0
    %383 = vmatmul.mubr.bf16.gmra.mxu0 %v332
    %v384 = vpop.f32.mrf.mxu0
    %v385 = vadd.f32 %v277, %v384
    %v386 = vpop.f32.mrf.mxu0
    %v387 = vadd.f32 %v281, %v386
    %v388 = vpop.f32.mrf.mxu0
    %v389 = vpop.f32.mrf.mxu0
    %390 = vdwg.mxu0
    %391 = vmatprep.subr.bf16.mxu0 0
    %392 = vmatpush1.bf16.msra.mxu0 0
    %393 = vmatprep.subr.bf16.mxu0 0
    %394 = vmatpush1.bf16.msra.mxu0 0
    %395 = vmatprep.subr.bf16.mxu0 0
    %396 = vmatpush1.bf16.msra.mxu0 0
    %397 = vmatprep.subr.bf16.mxu0 0
    %398 = vmatpush1.bf16.msra.mxu0 0
    %399 = vmatprep.subr.bf16.mxu0 0
    %400 = vmatpush1.bf16.msra.mxu0 0
    %401 = vmatprep.subr.bf16.mxu0 0
    %402 = vmatpush1.bf16.msra.mxu0 0
    %403 = vmatprep.subr.bf16.mxu0 %v348
    %404 = vmatpush1.bf16.msra.mxu0 %v345
    %405 = vmatprep.subr.bf16.mxu0 %v321
    %406 = vmatpush1.bf16.msra.mxu0 %v320
    %407 = vmatprep.subr.bf16.mxu0 0
    %408 = vmatpush2.bf16.msra.mxu0 0
    %409 = vmatprep.subr.bf16.mxu0 0
    %410 = vmatpush2.bf16.msra.mxu0 0
    %411 = vmatprep.subr.bf16.mxu0 0
    %412 = vmatpush2.bf16.msra.mxu0 0
    %413 = vmatprep.subr.bf16.mxu0 0
    %414 = vmatpush2.bf16.msra.mxu0 0
    %415 = vmatprep.subr.bf16.mxu0 0
    %416 = vmatpush2.bf16.msra.mxu0 0
    %417 = vmatprep.subr.bf16.mxu0 0
    %418 = vmatpush2.bf16.msra.mxu0 0
    %419 = vmatprep.subr.bf16.mxu0 0
    %420 = vmatpush2.bf16.msra.mxu0 0
    %421 = vmatprep.subr.bf16.mxu0 0
    %422 = vmatpush2.bf16.msra.mxu0 0
    %423 = vmatprep.mubr.bf16.mxu0 0
    %424 = vmatmul.mubr.bf16.gmra.mxu0 %v332
    %v425 = vpop.f32.mrf.mxu0
    %v426 = vadd.f32 %v285, %v425
    %v427 = vpop.f32.mrf.mxu0
    %v428 = vadd.f32 %v289, %v427
    %v429 = vpop.f32.mrf.mxu0
    %v430 = vpop.f32.mrf.mxu0
    %431 = vdwg.mxu0
    %v432 = vmax.f32 %v385, 0.0
    %v433 = vmax.f32 %v387, 0.0
    %v434 = vmax.f32 %v426, 0.0
    %v435 = vmax.f32 %v428, 0.0
    %v436 = vmax.f32 %v432, %v433
    %v437 = vmax.f32 %v436, %v434
    %v438 = vmax.f32 %v437, %v435
    %v439 = vld [vmem:[#allocation7] sm:$0xff]
    %v440 = vld [vmem:[#allocation7 + $0x8] sm:$0xff]
    %v441 = vld [vmem:[#allocation7 + $0x10] sm:$0xff]
    %v442 = vld [vmem:[#allocation7 + $0x18] sm:$0xff]
    %v443 = vld [vmem:[#allocation7 + $0x20] sm:$0xff]
    %v444 = vld [vmem:[#allocation7 + $0x28] sm:$0xff]
    %v445 = vld [vmem:[#allocation7 + $0x30] sm:$0xff]
    %v446 = vld [vmem:[#allocation7 + $0x38] sm:$0xff]
    %v447 = vld [vmem:[#allocation7 + $0x40] sm:$0xff]
    %v448 = vld [vmem:[#allocation7 + $0x48] sm:$0xff]
    %v449 = vld [vmem:[#allocation7 + $0x50] sm:$0xff]
    %v450 = vld [vmem:[#allocation7 + $0x58] sm:$0xff]
    %v451 = vld [vmem:[#allocation7 + $0x60] sm:$0xff]
    %v452 = vld [vmem:[#allocation7 + $0x68] sm:$0xff]
    %v453 = vld [vmem:[#allocation7 + $0x70] sm:$0xff]
    %v454 = vld [vmem:[#allocation7 + $0x78] sm:$0xff]
    %v455 = vld [vmem:[#allocation7 + $0x80] sm:$0xff]
    %v456 = vld [vmem:[#allocation7 + $0x88] sm:$0xff]
    %v457 = vld [vmem:[#allocation7 + $0x90] sm:$0xff]
    %v458 = vld [vmem:[#allocation7 + $0x98] sm:$0xff]
    %v459 = vld [vmem:[#allocation7 + $0xa0] sm:$0xff]
    %v460 = vld [vmem:[#allocation7 + $0xa8] sm:$0xff]
    %v461 = vld [vmem:[#allocation7 + $0xb0] sm:$0xff]
    %v462 = vld [vmem:[#allocation7 + $0xb8] sm:$0xff]
    %v463 = vld [vmem:[#allocation7 + $0xc0] sm:$0xff]
    %v464 = vld [vmem:[#allocation7 + $0xc8] sm:$0xff]
    %v465 = vld [vmem:[#allocation7 + $0xd0] sm:$0xff]
    %v466 = vld [vmem:[#allocation7 + $0xd8] sm:$0xff]
    %v467 = vld [vmem:[#allocation7 + $0xe0] sm:$0xff]
    %v468 = vld [vmem:[#allocation7 + $0xe8] sm:$0xff]
    %v469 = vld [vmem:[#allocation7 + $0xf0] sm:$0xff]
    %v470 = vld [vmem:[#allocation7 + $0xf8] sm:$0xff]
    %v471 = vpack.c.bf16 %v438, %v438
    %v472 = vld [vmem:[%s6] sm:$0xf]
    %v474 = vlaneseq
    %v475 = vshrl.u32 %v474, 7
    %v476 = vsub.s32 0, %v475
    %v477 = vrot.slane %v472, %v476
    %v478 = vlaneseq
    %v479 = vshrl.u32 %v478, 7
    %v480 = vsub.s32 1, %v479
    %v481 = vrot.slane %v472, %v480
    %v482 = vlaneseq
    %v483 = vshrl.u32 %v482, 7
    %v484 = vsub.s32 2, %v483
    %v485 = vrot.slane %v472, %v484
    %v486 = vlaneseq
    %v487 = vshrl.u32 %v486, 7
    %v488 = vsub.s32 3, %v487
    %v489 = vrot.slane %v472, %v488
    %v526 = vunpack.c.l.b16 %v439
    %v527 = vunpack.c.h.b16 %v439
    %v528 = vunpack.c.l.b16 %v440
    %v529 = vunpack.c.h.b16 %v440
    %v530 = vunpack.c.l.b16 %v441
    %v531 = vunpack.c.h.b16 %v441
    %v532 = vunpack.c.l.b16 %v442
    %v533 = vunpack.c.h.b16 %v442
    %v534 = vunpack.c.l.b16 %v443
    %v535 = vunpack.c.h.b16 %v443
    %v536 = vunpack.c.l.b16 %v444
    %v537 = vunpack.c.h.b16 %v444
    %v538 = vunpack.c.l.b16 %v445
    %v539 = vunpack.c.h.b16 %v445
    %v540 = vunpack.c.l.b16 %v446
    %v541 = vunpack.c.h.b16 %v446
    %v542 = vunpack.c.l.b16 %v447
    %v543 = vunpack.c.h.b16 %v447
    %v544 = vunpack.c.l.b16 %v448
    %v545 = vunpack.c.h.b16 %v448
    %v546 = vunpack.c.l.b16 %v449
    %v547 = vunpack.c.h.b16 %v449
    %v548 = vunpack.c.l.b16 %v450
    %v549 = vunpack.c.h.b16 %v450
    %v550 = vunpack.c.l.b16 %v451
    %v551 = vunpack.c.h.b16 %v451
    %v552 = vunpack.c.l.b16 %v452
    %v553 = vunpack.c.h.b16 %v452
    %v554 = vunpack.c.l.b16 %v453
    %v555 = vunpack.c.h.b16 %v453
    %v556 = vunpack.c.l.b16 %v454
    %v557 = vunpack.c.h.b16 %v454
    %v558 = vunpack.c.l.b16 %v455
    %v559 = vunpack.c.h.b16 %v455
    %v560 = vunpack.c.l.b16 %v456
    %v561 = vunpack.c.h.b16 %v456
    %v562 = vunpack.c.l.b16 %v457
    %v563 = vunpack.c.h.b16 %v457
    %v564 = vunpack.c.l.b16 %v458
    %v565 = vunpack.c.h.b16 %v458
    %v566 = vunpack.c.l.b16 %v459
    %v567 = vunpack.c.h.b16 %v459
    %v568 = vunpack.c.l.b16 %v460
    %v569 = vunpack.c.h.b16 %v460
    %v570 = vunpack.c.l.b16 %v461
    %v571 = vunpack.c.h.b16 %v461
    %v572 = vunpack.c.l.b16 %v462
    %v573 = vunpack.c.h.b16 %v462
    %v574 = vunpack.c.l.b16 %v463
    %v575 = vunpack.c.h.b16 %v463
    %v576 = vunpack.c.l.b16 %v464
    %v577 = vunpack.c.h.b16 %v464
    %v578 = vunpack.c.l.b16 %v465
    %v579 = vunpack.c.h.b16 %v465
    %v580 = vunpack.c.l.b16 %v466
    %v581 = vunpack.c.h.b16 %v466
    %v582 = vunpack.c.l.b16 %v467
    %v583 = vunpack.c.h.b16 %v467
    %v584 = vunpack.c.l.b16 %v468
    %v585 = vunpack.c.h.b16 %v468
    %v586 = vunpack.c.l.b16 %v469
    %v587 = vunpack.c.h.b16 %v469
    %v588 = vunpack.c.l.b16 %v470
    %v589 = vunpack.c.h.b16 %v470
    %v590 = vpack.c.b16 %v530, %v526
    %v591 = vpack.c.b16 %v531, %v527
    %v592 = vpack.c.b16 %v532, %v528
    %v593 = vpack.c.b16 %v533, %v529
    %v594 = vpack.c.b16 %v538, %v534
    %v595 = vpack.c.b16 %v539, %v535
    %v596 = vpack.c.b16 %v540, %v536
    %v597 = vpack.c.b16 %v541, %v537
    %v598 = vpack.c.b16 %v546, %v542
    %v599 = vpack.c.b16 %v547, %v543
    %v600 = vpack.c.b16 %v548, %v544
    %v601 = vpack.c.b16 %v549, %v545
    %v602 = vpack.c.b16 %v554, %v550
    %v603 = vpack.c.b16 %v555, %v551
    %v604 = vpack.c.b16 %v556, %v552
    %v605 = vpack.c.b16 %v557, %v553
    %v606 = vpack.c.b16 %v562, %v558
    %v607 = vpack.c.b16 %v563, %v559
    %v608 = vpack.c.b16 %v564, %v560
    %v609 = vpack.c.b16 %v565, %v561
    %v610 = vpack.c.b16 %v570, %v566
    %v611 = vpack.c.b16 %v571, %v567
    %v612 = vpack.c.b16 %v572, %v568
    %v613 = vpack.c.b16 %v573, %v569
    %v614 = vpack.c.b16 %v578, %v574
    %v615 = vpack.c.b16 %v579, %v575
    %v616 = vpack.c.b16 %v580, %v576
    %v617 = vpack.c.b16 %v581, %v577
    %v618 = vpack.c.b16 %v586, %v582
    %v619 = vpack.c.b16 %v587, %v583
    %v620 = vpack.c.b16 %v588, %v584
    %v621 = vpack.c.b16 %v589, %v585
    %654 = vmatprep.subr.bf16.mxu0 %v619
    %655 = vmatpush1.bf16.msra.mxu0 %v618
    %656 = vmatprep.subr.bf16.mxu0 %v615
    %657 = vmatpush1.bf16.msra.mxu0 %v614
    %658 = vmatprep.subr.bf16.mxu0 %v611
    %659 = vmatpush1.bf16.msra.mxu0 %v610
    %660 = vmatprep.subr.bf16.mxu0 %v607
    %661 = vmatpush1.bf16.msra.mxu0 %v606
    %662 = vmatprep.subr.bf16.mxu0 %v603
    %663 = vmatpush1.bf16.msra.mxu0 %v602
    %664 = vmatprep.subr.bf16.mxu0 %v599
    %665 = vmatpush1.bf16.msra.mxu0 %v598
    %666 = vmatprep.subr.bf16.mxu0 %v595
    %667 = vmatpush1.bf16.msra.mxu0 %v594
    %668 = vmatprep.subr.bf16.mxu0 %v591
    %669 = vmatpush1.bf16.msra.mxu0 %v590
    %670 = vmatprep.subr.bf16.mxu0 0
    %671 = vmatpush2.bf16.msra.mxu0 0
    %672 = vmatprep.subr.bf16.mxu0 0
    %673 = vmatpush2.bf16.msra.mxu0 0
    %674 = vmatprep.subr.bf16.mxu0 0
    %675 = vmatpush2.bf16.msra.mxu0 0
    %676 = vmatprep.subr.bf16.mxu0 0
    %677 = vmatpush2.bf16.msra.mxu0 0
    %678 = vmatprep.subr.bf16.mxu0 0
    %679 = vmatpush2.bf16.msra.mxu0 0
    %680 = vmatprep.subr.bf16.mxu0 0
    %681 = vmatpush2.bf16.msra.mxu0 0
    %682 = vmatprep.subr.bf16.mxu0 0
    %683 = vmatpush2.bf16.msra.mxu0 0
    %684 = vmatprep.subr.bf16.mxu0 0
    %685 = vmatpush2.bf16.msra.mxu0 0
    %686 = vmatprep.mubr.bf16.mxu0 0
    %687 = vmatmul.mubr.bf16.gmra.mxu0 %v471
    %v688 = vpop.f32.mrf.mxu0
    %v689 = vadd.f32 %v477, %v688
    %v690 = vpop.f32.mrf.mxu0
    %v691 = vadd.f32 %v481, %v690
    %v692 = vpop.f32.mrf.mxu0
    %v693 = vpop.f32.mrf.mxu0
    %694 = vdwg.mxu0
    %695 = vmatprep.subr.bf16.mxu0 %v621
    %696 = vmatpush1.bf16.msra.mxu0 %v620
    %697 = vmatprep.subr.bf16.mxu0 %v617
    %698 = vmatpush1.bf16.msra.mxu0 %v616
    %699 = vmatprep.subr.bf16.mxu0 %v613
    %700 = vmatpush1.bf16.msra.mxu0 %v612
    %701 = vmatprep.subr.bf16.mxu0 %v609
    %702 = vmatpush1.bf16.msra.mxu0 %v608
    %703 = vmatprep.subr.bf16.mxu0 %v605
    %704 = vmatpush1.bf16.msra.mxu0 %v604
    %705 = vmatprep.subr.bf16.mxu0 %v601
    %706 = vmatpush1.bf16.msra.mxu0 %v600
    %707 = vmatprep.subr.bf16.mxu0 %v597
    %708 = vmatpush1.bf16.msra.mxu0 %v596
    %709 = vmatprep.subr.bf16.mxu0 %v593
    %710 = vmatpush1.bf16.msra.mxu0 %v592
    %711 = vmatprep.subr.bf16.mxu0 0
    %712 = vmatpush2.bf16.msra.mxu0 0
    %713 = vmatprep.subr.bf16.mxu0 0
    %714 = vmatpush2.bf16.msra.mxu0 0
    %715 = vmatprep.subr.bf16.mxu0 0
    %716 = vmatpush2.bf16.msra.mxu0 0
    %717 = vmatprep.subr.bf16.mxu0 0
    %718 = vmatpush2.bf16.msra.mxu0 0
    %719 = vmatprep.subr.bf16.mxu0 0
    %720 = vmatpush2.bf16.msra.mxu0 0
    %721 = vmatprep.subr.bf16.mxu0 0
    %722 = vmatpush2.bf16.msra.mxu0 0
    %723 = vmatprep.subr.bf16.mxu0 0
    %724 = vmatpush2.bf16.msra.mxu0 0
    %725 = vmatprep.subr.bf16.mxu0 0
    %726 = vmatpush2.bf16.msra.mxu0 0
    %727 = vmatprep.mubr.bf16.mxu0 0
    %728 = vmatmul.mubr.bf16.gmra.mxu0 %v471
    %v729 = vpop.f32.mrf.mxu0
    %v730 = vadd.f32 %v485, %v729
    %v731 = vpop.f32.mrf.mxu0
    %v732 = vadd.f32 %v489, %v731
    %v733 = vpop.f32.mrf.mxu0
    %v734 = vpop.f32.mrf.mxu0
    %735 = vdwg.mxu0
    %v736 = vmax.f32 %v689, 0.0
    %v737 = vmax.f32 %v691, 0.0
    %v738 = vmax.f32 %v730, 0.0
    %v739 = vmax.f32 %v732, 0.0
    %v740 = vmax.f32 %v736, %v737
    %v741 = vmax.f32 %v740, %v738
    %v742 = vmax.f32 %v741, %v739
    %v743 = vld [vmem:[%s1] sm:$0x3]
    %v744 = vld [vmem:[#allocation8] sm:$0xff]
    %v745 = vld [vmem:[#allocation8 + $0x8] sm:$0xf]
    %v746 = vld [vmem:[#allocation8 + $0xc] sm:$0xff]
    %v747 = vld [vmem:[#allocation8 + $0x14] sm:$0xf]
    %v748 = vld [vmem:[#allocation8 + $0x18] sm:$0xff]
    %v749 = vld [vmem:[#allocation8 + $0x20] sm:$0xf]
    %v750 = vld [vmem:[#allocation8 + $0x24] sm:$0xff]
    %v751 = vld [vmem:[#allocation8 + $0x2c] sm:$0xf]
    %v752 = vld [vmem:[#allocation8 + $0x30] sm:$0xff]
    %v753 = vld [vmem:[#allocation8 + $0x38] sm:$0xf]
    %v754 = vld [vmem:[#allocation8 + $0x3c] sm:$0xff]
    %v755 = vld [vmem:[#allocation8 + $0x44] sm:$0xf]
    %v756 = vld [vmem:[#allocation8 + $0x48] sm:$0xff]
    %v757 = vld [vmem:[#allocation8 + $0x50] sm:$0xf]
    %v758 = vld [vmem:[#allocation8 + $0x54] sm:$0xff]
    %v759 = vld [vmem:[#allocation8 + $0x5c] sm:$0xf]
    %v760 = vld [vmem:[#allocation8 + $0x60] sm:$0xff]
    %v761 = vld [vmem:[#allocation8 + $0x68] sm:$0xf]
    %v762 = vld [vmem:[#allocation8 + $0x6c] sm:$0xff]
    %v763 = vld [vmem:[#allocation8 + $0x74] sm:$0xf]
    %v764 = vld [vmem:[#allocation8 + $0x78] sm:$0xff]
    %v765 = vld [vmem:[#allocation8 + $0x80] sm:$0xf]
    %v766 = vld [vmem:[#allocation8 + $0x84] sm:$0xff]
    %v767 = vld [vmem:[#allocation8 + $0x8c] sm:$0xf]
    %v768 = vld [vmem:[#allocation8 + $0x90] sm:$0xff]
    %v769 = vld [vmem:[#allocation8 + $0x98] sm:$0xf]
    %v770 = vld [vmem:[#allocation8 + $0x9c] sm:$0xff]
    %v771 = vld [vmem:[#allocation8 + $0xa4] sm:$0xf]
    %v772 = vld [vmem:[#allocation8 + $0xa8] sm:$0xff]
    %v773 = vld [vmem:[#allocation8 + $0xb0] sm:$0xf]
    %v774 = vld [vmem:[#allocation8 + $0xb4] sm:$0xff]
    %v775 = vld [vmem:[#allocation8 + $0xbc] sm:$0xf]
    %v776 = vpack.c.bf16 %v742, %v742
    %v777 = vld [vmem:[%s9] sm:$0x7]
    %779 = vset.pattern.permute.xlu0 1
    %780 = vperm.xlu0 %779, %v743
    %v781 = vpop.permute.xlu0 %780
    %v784 = vlaneseq
    %v785 = vshrl.u32 %v784, 7
    %v786 = vsub.s32 0, %v785
    %v787 = vrot.slane %v777, %v786
    %v788 = vlaneseq
    %v789 = vshrl.u32 %v788, 7
    %v790 = vsub.s32 1, %v789
    %v791 = vrot.slane %v777, %v790
    %v792 = vlaneseq
    %v793 = vshrl.u32 %v792, 7
    %v794 = vsub.s32 2, %v793
    %v795 = vrot.slane %v777, %v794
    %v799 = vmul.f32 %v781, %v787
    %v800 = vmul.f32 %v781, %v791
    %v801 = vmul.f32 %v781, %v795
    %v834 = vunpack.c.l.b16 %v744
    %v835 = vunpack.c.h.b16 %v744
    %v836 = vunpack.c.l.b16 %v745
    %v837 = vunpack.c.l.b16 %v746
    %v838 = vunpack.c.h.b16 %v746
    %v839 = vunpack.c.l.b16 %v747
    %v840 = vunpack.c.l.b16 %v748
    %v841 = vunpack.c.h.b16 %v748
    %v842 = vunpack.c.l.b16 %v749
    %v843 = vunpack.c.l.b16 %v750
    %v844 = vunpack.c.h.b16 %v750
    %v845 = vunpack.c.l.b16 %v751
    %v846 = vunpack.c.l.b16 %v752
    %v847 = vunpack.c.h.b16 %v752
    %v848 = vunpack.c.l.b16 %v753
    %v849 = vunpack.c.l.b16 %v754
    %v850 = vunpack.c.h.b16 %v754
    %v851 = vunpack.c.l.b16 %v755
    %v852 = vunpack.c.l.b16 %v756
    %v853 = vunpack.c.h.b16 %v756
    %v854 = vunpack.c.l.b16 %v757
    %v855 = vunpack.c.l.b16 %v758
    %v856 = vunpack.c.h.b16 %v758
    %v857 = vunpack.c.l.b16 %v759
    %v858 = vunpack.c.l.b16 %v760
    %v859 = vunpack.c.h.b16 %v760
    %v860 = vunpack.c.l.b16 %v761
    %v861 = vunpack.c.l.b16 %v762
    %v862 = vunpack.c.h.b16 %v762
    %v863 = vunpack.c.l.b16 %v763
    %v864 = vunpack.c.l.b16 %v764
    %v865 = vunpack.c.h.b16 %v764
    %v866 = vunpack.c.l.b16 %v765
    %v867 = vunpack.c.l.b16 %v766
    %v868 = vunpack.c.h.b16 %v766
    %v869 = vunpack.c.l.b16 %v767
    %v870 = vunpack.c.l.b16 %v768
    %v871 = vunpack.c.h.b16 %v768
    %v872 = vunpack.c.l.b16 %v769
    %v873 = vunpack.c.l.b16 %v770
    %v874 = vunpack.c.h.b16 %v770
    %v875 = vunpack.c.l.b16 %v771
    %v876 = vunpack.c.l.b16 %v772
    %v877 = vunpack.c.h.b16 %v772
    %v878 = vunpack.c.l.b16 %v773
    %v879 = vunpack.c.l.b16 %v774
    %v880 = vunpack.c.h.b16 %v774
    %v881 = vunpack.c.l.b16 %v775
    %v882 = vpack.c.b16 %v837, %v834
    %v883 = vpack.c.b16 %v838, %v835
    %v884 = vpack.c.b16 %v839, %v836
    %v885 = vpack.c.b16 %v843, %v840
    %v886 = vpack.c.b16 %v844, %v841
    %v887 = vpack.c.b16 %v845, %v842
    %v888 = vpack.c.b16 %v849, %v846
    %v889 = vpack.c.b16 %v850, %v847
    %v890 = vpack.c.b16 %v851, %v848
    %v891 = vpack.c.b16 %v855, %v852
    %v892 = vpack.c.b16 %v856, %v853
    %v893 = vpack.c.b16 %v857, %v854
    %v894 = vpack.c.b16 %v861, %v858
    %v895 = vpack.c.b16 %v862, %v859
    %v896 = vpack.c.b16 %v863, %v860
    %v897 = vpack.c.b16 %v867, %v864
    %v898 = vpack.c.b16 %v868, %v865
    %v899 = vpack.c.b16 %v869, %v866
    %v900 = vpack.c.b16 %v873, %v870
    %v901 = vpack.c.b16 %v874, %v871
    %v902 = vpack.c.b16 %v875, %v872
    %v903 = vpack.c.b16 %v879, %v876
    %v904 = vpack.c.b16 %v880, %v877
    %v905 = vpack.c.b16 %v881, %v878
    %930 = vmatprep.subr.bf16.mxu0 %v904
    %931 = vmatpush1.bf16.msra.mxu0 %v903
    %932 = vmatprep.subr.bf16.mxu0 %v901
    %933 = vmatpush1.bf16.msra.mxu0 %v900
    %934 = vmatprep.subr.bf16.mxu0 %v898
    %935 = vmatpush1.bf16.msra.mxu0 %v897
    %936 = vmatprep.subr.bf16.mxu0 %v895
    %937 = vmatpush1.bf16.msra.mxu0 %v894
    %938 = vmatprep.subr.bf16.mxu0 %v892
    %939 = vmatpush1.bf16.msra.mxu0 %v891
    %940 = vmatprep.subr.bf16.mxu0 %v889
    %941 = vmatpush1.bf16.msra.mxu0 %v888
    %942 = vmatprep.subr.bf16.mxu0 %v886
    %943 = vmatpush1.bf16.msra.mxu0 %v885
    %944 = vmatprep.subr.bf16.mxu0 %v883
    %945 = vmatpush1.bf16.msra.mxu0 %v882
    %946 = vmatprep.subr.bf16.mxu0 0
    %947 = vmatpush2.bf16.msra.mxu0 0
    %948 = vmatprep.subr.bf16.mxu0 0
    %949 = vmatpush2.bf16.msra.mxu0 0
    %950 = vmatprep.subr.bf16.mxu0 0
    %951 = vmatpush2.bf16.msra.mxu0 0
    %952 = vmatprep.subr.bf16.mxu0 0
    %953 = vmatpush2.bf16.msra.mxu0 0
    %954 = vmatprep.subr.bf16.mxu0 0
    %955 = vmatpush2.bf16.msra.mxu0 0
    %956 = vmatprep.subr.bf16.mxu0 0
    %957 = vmatpush2.bf16.msra.mxu0 0
    %958 = vmatprep.subr.bf16.mxu0 0
    %959 = vmatpush2.bf16.msra.mxu0 0
    %960 = vmatprep.subr.bf16.mxu0 0
    %961 = vmatpush2.bf16.msra.mxu0 0
    %962 = vmatprep.mubr.bf16.mxu0 0
    %963 = vmatmul.mubr.bf16.gmra.mxu0 %v776
    %v964 = vpop.f32.mrf.mxu0
    %v965 = vadd.f32 %v799, %v964
    %v966 = vpop.f32.mrf.mxu0
    %v967 = vadd.f32 %v800, %v966
    %v968 = vpop.f32.mrf.mxu0
    %v969 = vpop.f32.mrf.mxu0
    %970 = vdwg.mxu0
    %971 = vmatprep.subr.bf16.mxu0 0
    %972 = vmatpush1.bf16.msra.mxu0 %v905
    %973 = vmatprep.subr.bf16.mxu0 0
    %974 = vmatpush1.bf16.msra.mxu0 %v902
    %975 = vmatprep.subr.bf16.mxu0 0
    %976 = vmatpush1.bf16.msra.mxu0 %v899
    %977 = vmatprep.subr.bf16.mxu0 0
    %978 = vmatpush1.bf16.msra.mxu0 %v896
    %979 = vmatprep.subr.bf16.mxu0 0
    %980 = vmatpush1.bf16.msra.mxu0 %v893
    %981 = vmatprep.subr.bf16.mxu0 0
    %982 = vmatpush1.bf16.msra.mxu0 %v890
    %983 = vmatprep.subr.bf16.mxu0 0
    %984 = vmatpush1.bf16.msra.mxu0 %v887
    %985 = vmatprep.subr.bf16.mxu0 0
    %986 = vmatpush1.bf16.msra.mxu0 %v884
    %987 = vmatprep.subr.bf16.mxu0 0
    %988 = vmatpush2.bf16.msra.mxu0 0
    %989 = vmatprep.subr.bf16.mxu0 0
    %990 = vmatpush2.bf16.msra.mxu0 0
    %991 = vmatprep.subr.bf16.mxu0 0
    %992 = vmatpush2.bf16.msra.mxu0 0
    %993 = vmatprep.subr.bf16.mxu0 0
    %994 = vmatpush2.bf16.msra.mxu0 0
    %995 = vmatprep.subr.bf16.mxu0 0
    %996 = vmatpush2.bf16.msra.mxu0 0
    %997 = vmatprep.subr.bf16.mxu0 0
    %998 = vmatpush2.bf16.msra.mxu0 0
    %999 = vmatprep.subr.bf16.mxu0 0
    %1000 = vmatpush2.bf16.msra.mxu0 0
    %1001 = vmatprep.subr.bf16.mxu0 0
    %1002 = vmatpush2.bf16.msra.mxu0 0
    %1003 = vmatprep.mubr.bf16.mxu0 0
    %1004 = vmatmul.mubr.bf16.gmra.mxu0 %v776
    %v1005 = vpop.f32.mrf.mxu0
    %v1006 = vadd.f32 %v801, %v1005
    %v1007 = vpop.f32.mrf.mxu0
    %v1008 = vpop.f32.mrf.mxu0
    %v1009 = vpop.f32.mrf.mxu0
    %1010 = vdwg.mxu0
    %v1011 = vld [vmem:[#allocation11] sm:$0x7]
    %v1013 = vlaneseq
    %v1014 = vshrl.u32 %v1013, 7
    %v1015 = vsub.s32 0, %v1014
    %v1016 = vrot.slane %v1011, %v1015
    %v1017 = vlaneseq
    %v1018 = vshrl.u32 %v1017, 7
    %v1019 = vsub.s32 1, %v1018
    %v1020 = vrot.slane %v1011, %v1019
    %v1021 = vlaneseq
    %v1022 = vshrl.u32 %v1021, 7
    %v1023 = vsub.s32 2, %v1022
    %v1024 = vrot.slane %v1011, %v1023
    %v1028 = vadd.f32 %v965, %v1016
    %v1029 = vadd.f32 %v967, %v1020
    %v1030 = vadd.f32 %v1006, %v1024
    %v1031 = vand.u32 2147483647, %v743
    %vm1032 = vcmp.lt.f32.partialorder %v1031, 0.5
    %v1033 = vsel %vm1032, 1, 0
    %v1034 = vcvt.s32.f32 %v1033
    %v1035 = vld [vmem:[%s8] ss:$4 sm:$0x7]
    %1037 = vset.pattern.permute.xlu0 0
    %1038 = vperm.xlu0 %1037, %v1034
    %v1039 = vpop.permute.xlu0 %1038
    %v1042 = vlaneseq
    %v1043 = vshrl.u32 %v1042, 7
    %v1044 = vsub.s32 0, %v1043
    %v1045 = vrot.slane %v1035, %v1044
    %v1046 = vlaneseq
    %v1047 = vshrl.u32 %v1046, 7
    %v1048 = vsub.s32 1, %v1047
    %v1049 = vrot.slane %v1035, %v1048
    %v1050 = vlaneseq
    %v1051 = vshrl.u32 %v1050, 7
    %v1052 = vsub.s32 2, %v1051
    %v1053 = vrot.slane %v1035, %v1052
    %v1057 = vmul.f32 %v1039, %v1045
    %v1058 = vmul.f32 %v1039, %v1049
    %v1059 = vmul.f32 %v1039, %v1053
    %v1060 = vadd.f32 %v1028, %v1057
    %v1061 = vadd.f32 %v1029, %v1058
    %v1062 = vadd.f32 %v1030, %v1059
    %v1063 = vsub.f32 %v743, 1.0
    %v1064 = vand.u32 2147483647, %v1063
    %vm1065 = vcmp.lt.f32.partialorder %v1064, 0.5
    %v1066 = vsel %vm1065, 1, 0
    %v1067 = vcvt.s32.f32 %v1066
    %s1068 = scalar_lea.vmem %s8, 1
    %v1069 = vld [vmem:[%s1068] ss:$4 sm:$0x7]
    %1071 = vset.pattern.permute.xlu0 0
    %1072 = vperm.xlu0 %1071, %v1067
    %v1073 = vpop.permute.xlu0 %1072
    %v1076 = vlaneseq
    %v1077 = vshrl.u32 %v1076, 7
    %v1078 = vsub.s32 0, %v1077
    %v1079 = vrot.slane %v1069, %v1078
    %v1080 = vlaneseq
    %v1081 = vshrl.u32 %v1080, 7
    %v1082 = vsub.s32 1, %v1081
    %v1083 = vrot.slane %v1069, %v1082
    %v1084 = vlaneseq
    %v1085 = vshrl.u32 %v1084, 7
    %v1086 = vsub.s32 2, %v1085
    %v1087 = vrot.slane %v1069, %v1086
    %v1091 = vmul.f32 %v1073, %v1079
    %v1092 = vmul.f32 %v1073, %v1083
    %v1093 = vmul.f32 %v1073, %v1087
    %v1094 = vadd.f32 %v1060, %v1091
    %v1095 = vadd.f32 %v1061, %v1092
    %v1096 = vadd.f32 %v1062, %v1093
    %v1097 = vsub.f32 %v743, 2.0
    %v1098 = vand.u32 2147483647, %v1097
    %vm1099 = vcmp.lt.f32.partialorder %v1098, 0.5
    %v1100 = vsel %vm1099, 1, 0
    %v1101 = vcvt.s32.f32 %v1100
    %s1102 = scalar_lea.vmem %s8, 2
    %v1103 = vld [vmem:[%s1102] ss:$4 sm:$0x7]
    %1105 = vset.pattern.permute.xlu0 0
    %1106 = vperm.xlu0 %1105, %v1101
    %v1107 = vpop.permute.xlu0 %1106
    %v1110 = vlaneseq
    %v1111 = vshrl.u32 %v1110, 7
    %v1112 = vsub.s32 0, %v1111
    %v1113 = vrot.slane %v1103, %v1112
    %v1114 = vlaneseq
    %v1115 = vshrl.u32 %v1114, 7
    %v1116 = vsub.s32 1, %v1115
    %v1117 = vrot.slane %v1103, %v1116
    %v1118 = vlaneseq
    %v1119 = vshrl.u32 %v1118, 7
    %v1120 = vsub.s32 2, %v1119
    %v1121 = vrot.slane %v1103, %v1120
    %v1125 = vmul.f32 %v1107, %v1113
    %v1126 = vmul.f32 %v1107, %v1117
    %v1127 = vmul.f32 %v1107, %v1121
    %v1128 = vadd.f32 %v1094, %v1125
    %v1129 = vadd.f32 %v1095, %v1126
    %v1130 = vadd.f32 %v1096, %v1127
    %v1131 = vld [vmem:[#allocation2] sm:$0x3]
    %v1132 = vld [vmem:[#allocation10] sm:$0xff]
    %v1133 = vld [vmem:[#allocation10 + $0x8] sm:$0xf]
    %v1134 = vld [vmem:[#allocation10 + $0xc] sm:$0xff]
    %v1135 = vld [vmem:[#allocation10 + $0x14] sm:$0xf]
    %v1136 = vld [vmem:[#allocation10 + $0x18] sm:$0xff]
    %v1137 = vld [vmem:[#allocation10 + $0x20] sm:$0xf]
    %v1138 = vld [vmem:[#allocation10 + $0x24] sm:$0xff]
    %v1139 = vld [vmem:[#allocation10 + $0x2c] sm:$0xf]
    %v1140 = vld [vmem:[#allocation10 + $0x30] sm:$0xff]
    %v1141 = vld [vmem:[#allocation10 + $0x38] sm:$0xf]
    %v1142 = vld [vmem:[#allocation10 + $0x3c] sm:$0xff]
    %v1143 = vld [vmem:[#allocation10 + $0x44] sm:$0xf]
    %v1144 = vld [vmem:[#allocation10 + $0x48] sm:$0xff]
    %v1145 = vld [vmem:[#allocation10 + $0x50] sm:$0xf]
    %v1146 = vld [vmem:[#allocation10 + $0x54] sm:$0xff]
    %v1147 = vld [vmem:[#allocation10 + $0x5c] sm:$0xf]
    %v1148 = vld [vmem:[#allocation10 + $0x60] sm:$0xff]
    %v1149 = vld [vmem:[#allocation10 + $0x68] sm:$0xf]
    %v1150 = vld [vmem:[#allocation10 + $0x6c] sm:$0xff]
    %v1151 = vld [vmem:[#allocation10 + $0x74] sm:$0xf]
    %v1152 = vld [vmem:[#allocation10 + $0x78] sm:$0xff]
    %v1153 = vld [vmem:[#allocation10 + $0x80] sm:$0xf]
    %v1154 = vld [vmem:[#allocation10 + $0x84] sm:$0xff]
    %v1155 = vld [vmem:[#allocation10 + $0x8c] sm:$0xf]
    %v1156 = vld [vmem:[#allocation10 + $0x90] sm:$0xff]
    %v1157 = vld [vmem:[#allocation10 + $0x98] sm:$0xf]
    %v1158 = vld [vmem:[#allocation10 + $0x9c] sm:$0xff]
    %v1159 = vld [vmem:[#allocation10 + $0xa4] sm:$0xf]
    %v1160 = vld [vmem:[#allocation10 + $0xa8] sm:$0xff]
    %v1161 = vld [vmem:[#allocation10 + $0xb0] sm:$0xf]
    %v1162 = vld [vmem:[#allocation10 + $0xb4] sm:$0xff]
    %v1163 = vld [vmem:[#allocation10 + $0xbc] sm:$0xf]
    %v1164 = vpack.c.bf16 %v1131, %v1131
    %v1165 = vld [vmem:[#allocation13] sm:$0x7]
    %v1167 = vlaneseq
    %v1168 = vshrl.u32 %v1167, 7
    %v1169 = vsub.s32 0, %v1168
    %v1170 = vrot.slane %v1165, %v1169
    %v1171 = vlaneseq
    %v1172 = vshrl.u32 %v1171, 7
    %v1173 = vsub.s32 1, %v1172
    %v1174 = vrot.slane %v1165, %v1173
    %v1175 = vlaneseq
    %v1176 = vshrl.u32 %v1175, 7
    %v1177 = vsub.s32 2, %v1176
    %v1178 = vrot.slane %v1165, %v1177
    %v1214 = vunpack.c.l.b16 %v1132
    %v1215 = vunpack.c.h.b16 %v1132
    %v1216 = vunpack.c.l.b16 %v1133
    %v1217 = vunpack.c.l.b16 %v1134
    %v1218 = vunpack.c.h.b16 %v1134
    %v1219 = vunpack.c.l.b16 %v1135
    %v1220 = vunpack.c.l.b16 %v1136
    %v1221 = vunpack.c.h.b16 %v1136
    %v1222 = vunpack.c.l.b16 %v1137
    %v1223 = vunpack.c.l.b16 %v1138
    %v1224 = vunpack.c.h.b16 %v1138
    %v1225 = vunpack.c.l.b16 %v1139
    %v1226 = vunpack.c.l.b16 %v1140
    %v1227 = vunpack.c.h.b16 %v1140
    %v1228 = vunpack.c.l.b16 %v1141
    %v1229 = vunpack.c.l.b16 %v1142
    %v1230 = vunpack.c.h.b16 %v1142
    %v1231 = vunpack.c.l.b16 %v1143
    %v1232 = vunpack.c.l.b16 %v1144
    %v1233 = vunpack.c.h.b16 %v1144
    %v1234 = vunpack.c.l.b16 %v1145
    %v1235 = vunpack.c.l.b16 %v1146
    %v1236 = vunpack.c.h.b16 %v1146
    %v1237 = vunpack.c.l.b16 %v1147
    %v1238 = vunpack.c.l.b16 %v1148
    %v1239 = vunpack.c.h.b16 %v1148
    %v1240 = vunpack.c.l.b16 %v1149
    %v1241 = vunpack.c.l.b16 %v1150
    %v1242 = vunpack.c.h.b16 %v1150
    %v1243 = vunpack.c.l.b16 %v1151
    %v1244 = vunpack.c.l.b16 %v1152
    %v1245 = vunpack.c.h.b16 %v1152
    %v1246 = vunpack.c.l.b16 %v1153
    %v1247 = vunpack.c.l.b16 %v1154
    %v1248 = vunpack.c.h.b16 %v1154
    %v1249 = vunpack.c.l.b16 %v1155
    %v1250 = vunpack.c.l.b16 %v1156
    %v1251 = vunpack.c.h.b16 %v1156
    %v1252 = vunpack.c.l.b16 %v1157
    %v1253 = vunpack.c.l.b16 %v1158
    %v1254 = vunpack.c.h.b16 %v1158
    %v1255 = vunpack.c.l.b16 %v1159
    %v1256 = vunpack.c.l.b16 %v1160
    %v1257 = vunpack.c.h.b16 %v1160
    %v1258 = vunpack.c.l.b16 %v1161
    %v1259 = vunpack.c.l.b16 %v1162
    %v1260 = vunpack.c.h.b16 %v1162
    %v1261 = vunpack.c.l.b16 %v1163
    %v1262 = vpack.c.b16 %v1217, %v1214
    %v1263 = vpack.c.b16 %v1218, %v1215
    %v1264 = vpack.c.b16 %v1219, %v1216
    %v1265 = vpack.c.b16 %v1223, %v1220
    %v1266 = vpack.c.b16 %v1224, %v1221
    %v1267 = vpack.c.b16 %v1225, %v1222
    %v1268 = vpack.c.b16 %v1229, %v1226
    %v1269 = vpack.c.b16 %v1230, %v1227
    %v1270 = vpack.c.b16 %v1231, %v1228
    %v1271 = vpack.c.b16 %v1235, %v1232
    %v1272 = vpack.c.b16 %v1236, %v1233
    %v1273 = vpack.c.b16 %v1237, %v1234
    %v1274 = vpack.c.b16 %v1241, %v1238
    %v1275 = vpack.c.b16 %v1242, %v1239
    %v1276 = vpack.c.b16 %v1243, %v1240
    %v1277 = vpack.c.b16 %v1247, %v1244
    %v1278 = vpack.c.b16 %v1248, %v1245
    %v1279 = vpack.c.b16 %v1249, %v1246
    %v1280 = vpack.c.b16 %v1253, %v1250
    %v1281 = vpack.c.b16 %v1254, %v1251
    %v1282 = vpack.c.b16 %v1255, %v1252
    %v1283 = vpack.c.b16 %v1259, %v1256
    %v1284 = vpack.c.b16 %v1260, %v1257
    %v1285 = vpack.c.b16 %v1261, %v1258
    %1310 = vmatprep.subr.bf16.mxu0 %v1284
    %1311 = vmatpush1.bf16.msra.mxu0 %v1283
    %1312 = vmatprep.subr.bf16.mxu0 %v1281
    %1313 = vmatpush1.bf16.msra.mxu0 %v1280
    %1314 = vmatprep.subr.bf16.mxu0 %v1278
    %1315 = vmatpush1.bf16.msra.mxu0 %v1277
    %1316 = vmatprep.subr.bf16.mxu0 %v1275
    %1317 = vmatpush1.bf16.msra.mxu0 %v1274
    %1318 = vmatprep.subr.bf16.mxu0 %v1272
    %1319 = vmatpush1.bf16.msra.mxu0 %v1271
    %1320 = vmatprep.subr.bf16.mxu0 %v1269
    %1321 = vmatpush1.bf16.msra.mxu0 %v1268
    %1322 = vmatprep.subr.bf16.mxu0 %v1266
    %1323 = vmatpush1.bf16.msra.mxu0 %v1265
    %1324 = vmatprep.subr.bf16.mxu0 %v1263
    %1325 = vmatpush1.bf16.msra.mxu0 %v1262
    %1326 = vmatprep.subr.bf16.mxu0 0
    %1327 = vmatpush2.bf16.msra.mxu0 0
    %1328 = vmatprep.subr.bf16.mxu0 0
    %1329 = vmatpush2.bf16.msra.mxu0 0
    %1330 = vmatprep.subr.bf16.mxu0 0
    %1331 = vmatpush2.bf16.msra.mxu0 0
    %1332 = vmatprep.subr.bf16.mxu0 0
    %1333 = vmatpush2.bf16.msra.mxu0 0
    %1334 = vmatprep.subr.bf16.mxu0 0
    %1335 = vmatpush2.bf16.msra.mxu0 0
    %1336 = vmatprep.subr.bf16.mxu0 0
    %1337 = vmatpush2.bf16.msra.mxu0 0
    %1338 = vmatprep.subr.bf16.mxu0 0
    %1339 = vmatpush2.bf16.msra.mxu0 0
    %1340 = vmatprep.subr.bf16.mxu0 0
    %1341 = vmatpush2.bf16.msra.mxu0 0
    %1342 = vmatprep.mubr.bf16.mxu0 0
    %1343 = vmatmul.mubr.bf16.gmra.mxu0 %v1164
    %v1344 = vpop.f32.mrf.mxu0
    %v1345 = vadd.f32 %v1170, %v1344
    %v1346 = vpop.f32.mrf.mxu0
    %v1347 = vadd.f32 %v1174, %v1346
    %v1348 = vpop.f32.mrf.mxu0
    %v1349 = vpop.f32.mrf.mxu0
    %1350 = vdwg.mxu0
    %1351 = vmatprep.subr.bf16.mxu0 0
    %1352 = vmatpush1.bf16.msra.mxu0 %v1285
    %1353 = vmatprep.subr.bf16.mxu0 0
    %1354 = vmatpush1.bf16.msra.mxu0 %v1282
    %1355 = vmatprep.subr.bf16.mxu0 0
    %1356 = vmatpush1.bf16.msra.mxu0 %v1279
    %1357 = vmatprep.subr.bf16.mxu0 0
    %1358 = vmatpush1.bf16.msra.mxu0 %v1276
    %1359 = vmatprep.subr.bf16.mxu0 0
    %1360 = vmatpush1.bf16.msra.mxu0 %v1273
    %1361 = vmatprep.subr.bf16.mxu0 0
    %1362 = vmatpush1.bf16.msra.mxu0 %v1270
    %1363 = vmatprep.subr.bf16.mxu0 0
    %1364 = vmatpush1.bf16.msra.mxu0 %v1267
    %1365 = vmatprep.subr.bf16.mxu0 0
    %1366 = vmatpush1.bf16.msra.mxu0 %v1264
    %1367 = vmatprep.subr.bf16.mxu0 0
    %1368 = vmatpush2.bf16.msra.mxu0 0
    %1369 = vmatprep.subr.bf16.mxu0 0
    %1370 = vmatpush2.bf16.msra.mxu0 0
    %1371 = vmatprep.subr.bf16.mxu0 0
    %1372 = vmatpush2.bf16.msra.mxu0 0
    %1373 = vmatprep.subr.bf16.mxu0 0
    %1374 = vmatpush2.bf16.msra.mxu0 0
    %1375 = vmatprep.subr.bf16.mxu0 0
    %1376 = vmatpush2.bf16.msra.mxu0 0
    %1377 = vmatprep.subr.bf16.mxu0 0
    %1378 = vmatpush2.bf16.msra.mxu0 0
    %1379 = vmatprep.subr.bf16.mxu0 0
    %1380 = vmatpush2.bf16.msra.mxu0 0
    %1381 = vmatprep.subr.bf16.mxu0 0
    %1382 = vmatpush2.bf16.msra.mxu0 0
    %1383 = vmatprep.mubr.bf16.mxu0 0
    %1384 = vmatmul.mubr.bf16.gmra.mxu0 %v1164
    %v1385 = vpop.f32.mrf.mxu0
    %v1386 = vadd.f32 %v1178, %v1385
    %v1387 = vpop.f32.mrf.mxu0
    %v1388 = vpop.f32.mrf.mxu0
    %v1389 = vpop.f32.mrf.mxu0
    %1390 = vdwg.mxu0
    %v1391 = vadd.f32 %v1128, %v1345
    %v1392 = vxor.u32 %v1391, 2147483648
    %v1393 = vmul.f32 %v1392, 1.442695
    %v1394 = vpow.pop %v1393
    %v1395 = vadd.f32 %v1394, 1.0
    %v1396 = vrcp.pop %v1395
    %v1397 = vmul.f32 1.0, %v1396
    %v1398 = vadd.f32 %v1129, %v1347
    %v1399 = vxor.u32 %v1398, 2147483648
    %v1400 = vmul.f32 %v1399, 1.442695
    %v1401 = vpow.pop %v1400
    %v1402 = vadd.f32 %v1401, 1.0
    %v1403 = vrcp.pop %v1402
    %v1404 = vmul.f32 1.0, %v1403
    %v1405 = vmul.f32 %v1397, %v1386
    %v1406 = vadd.f32 %v1130, %v1405
    %v1407 = vtanh.pop %v1406
    %v1408 = vsub.f32 1.0, %v1404
    %v1409 = vmul.f32 %v1408, %v1407
    %v1410 = vmul.f32 %v1404, %v1131
    %v1411 = vadd.f32 %v1409, %v1410
    %1412 = vst [vmem:[#allocation27] sm:$0x3] %v1411
    %v1413 = vld [vmem:[#allocation14] sm:$0xff]
    %v1414 = vld [vmem:[#allocation14 + $0x8] sm:$0xff]
    %v1415 = vld [vmem:[#allocation14 + $0x10] sm:$0xff]
    %v1416 = vld [vmem:[#allocation14 + $0x18] sm:$0xff]
    %v1417 = vld [vmem:[#allocation14 + $0x20] sm:$0xff]
    %v1418 = vld [vmem:[#allocation14 + $0x28] sm:$0xff]
    %v1419 = vld [vmem:[#allocation14 + $0x30] sm:$0xff]
    %v1420 = vld [vmem:[#allocation14 + $0x38] sm:$0xff]
    %v1421 = vld [vmem:[#allocation14 + $0x40] sm:$0xff]
    %v1422 = vld [vmem:[#allocation14 + $0x48] sm:$0xff]
    %v1423 = vld [vmem:[#allocation14 + $0x50] sm:$0xff]
    %v1424 = vld [vmem:[#allocation14 + $0x58] sm:$0xff]
    %v1425 = vld [vmem:[#allocation14 + $0x60] sm:$0xff]
    %v1426 = vld [vmem:[#allocation14 + $0x68] sm:$0xff]
    %v1427 = vld [vmem:[#allocation14 + $0x70] sm:$0xff]
    %v1428 = vld [vmem:[#allocation14 + $0x78] sm:$0xff]
    %v1429 = vpack.c.bf16 %v1411, %v1411
    %v1430 = vld [vmem:[#allocation16] sm:$0x3]
    %v1432 = vlaneseq
    %v1433 = vshrl.u32 %v1432, 7
    %v1434 = vsub.s32 0, %v1433
    %v1435 = vrot.slane %v1430, %v1434
    %v1436 = vlaneseq
    %v1437 = vshrl.u32 %v1436, 7
    %v1438 = vsub.s32 1, %v1437
    %v1439 = vrot.slane %v1430, %v1438
    %v1458 = vunpack.c.l.b16 %v1413
    %v1459 = vunpack.c.h.b16 %v1413
    %v1460 = vunpack.c.l.b16 %v1414
    %v1461 = vunpack.c.h.b16 %v1414
    %v1462 = vunpack.c.l.b16 %v1415
    %v1463 = vunpack.c.h.b16 %v1415
    %v1464 = vunpack.c.l.b16 %v1416
    %v1465 = vunpack.c.h.b16 %v1416
    %v1466 = vunpack.c.l.b16 %v1417
    %v1467 = vunpack.c.h.b16 %v1417
    %v1468 = vunpack.c.l.b16 %v1418
    %v1469 = vunpack.c.h.b16 %v1418
    %v1470 = vunpack.c.l.b16 %v1419
    %v1471 = vunpack.c.h.b16 %v1419
    %v1472 = vunpack.c.l.b16 %v1420
    %v1473 = vunpack.c.h.b16 %v1420
    %v1474 = vunpack.c.l.b16 %v1421
    %v1475 = vunpack.c.h.b16 %v1421
    %v1476 = vunpack.c.l.b16 %v1422
    %v1477 = vunpack.c.h.b16 %v1422
    %v1478 = vunpack.c.l.b16 %v1423
    %v1479 = vunpack.c.h.b16 %v1423
    %v1480 = vunpack.c.l.b16 %v1424
    %v1481 = vunpack.c.h.b16 %v1424
    %v1482 = vunpack.c.l.b16 %v1425
    %v1483 = vunpack.c.h.b16 %v1425
    %v1484 = vunpack.c.l.b16 %v1426
    %v1485 = vunpack.c.h.b16 %v1426
    %v1486 = vunpack.c.l.b16 %v1427
    %v1487 = vunpack.c.h.b16 %v1427
    %v1488 = vunpack.c.l.b16 %v1428
    %v1489 = vunpack.c.h.b16 %v1428
    %v1490 = vpack.c.b16 %v1460, %v1458
    %v1491 = vpack.c.b16 %v1461, %v1459
    %v1492 = vpack.c.b16 %v1464, %v1462
    %v1493 = vpack.c.b16 %v1465, %v1463
    %v1494 = vpack.c.b16 %v1468, %v1466
    %v1495 = vpack.c.b16 %v1469, %v1467
    %v1496 = vpack.c.b16 %v1472, %v1470
    %v1497 = vpack.c.b16 %v1473, %v1471
    %v1498 = vpack.c.b16 %v1476, %v1474
    %v1499 = vpack.c.b16 %v1477, %v1475
    %v1500 = vpack.c.b16 %v1480, %v1478
    %v1501 = vpack.c.b16 %v1481, %v1479
    %v1502 = vpack.c.b16 %v1484, %v1482
    %v1503 = vpack.c.b16 %v1485, %v1483
    %v1504 = vpack.c.b16 %v1488, %v1486
    %v1505 = vpack.c.b16 %v1489, %v1487
    %1522 = vmatprep.subr.bf16.mxu0 %v1505
    %1523 = vmatpush1.bf16.msra.mxu0 %v1504
    %1524 = vmatprep.subr.bf16.mxu0 %v1503
    %1525 = vmatpush1.bf16.msra.mxu0 %v1502
    %1526 = vmatprep.subr.bf16.mxu0 %v1501
    %1527 = vmatpush1.bf16.msra.mxu0 %v1500
    %1528 = vmatprep.subr.bf16.mxu0 %v1499
    %1529 = vmatpush1.bf16.msra.mxu0 %v1498
    %1530 = vmatprep.subr.bf16.mxu0 %v1497
    %1531 = vmatpush1.bf16.msra.mxu0 %v1496
    %1532 = vmatprep.subr.bf16.mxu0 %v1495
    %1533 = vmatpush1.bf16.msra.mxu0 %v1494
    %1534 = vmatprep.subr.bf16.mxu0 %v1493
    %1535 = vmatpush1.bf16.msra.mxu0 %v1492
    %1536 = vmatprep.subr.bf16.mxu0 %v1491
    %1537 = vmatpush1.bf16.msra.mxu0 %v1490
    %1538 = vmatprep.subr.bf16.mxu0 0
    %1539 = vmatpush2.bf16.msra.mxu0 0
    %1540 = vmatprep.subr.bf16.mxu0 0
    %1541 = vmatpush2.bf16.msra.mxu0 0
    %1542 = vmatprep.subr.bf16.mxu0 0
    %1543 = vmatpush2.bf16.msra.mxu0 0
    %1544 = vmatprep.subr.bf16.mxu0 0
    %1545 = vmatpush2.bf16.msra.mxu0 0
    %1546 = vmatprep.subr.bf16.mxu0 0
    %1547 = vmatpush2.bf16.msra.mxu0 0
    %1548 = vmatprep.subr.bf16.mxu0 0
    %1549 = vmatpush2.bf16.msra.mxu0 0
    %1550 = vmatprep.subr.bf16.mxu0 0
    %1551 = vmatpush2.bf16.msra.mxu0 0
    %1552 = vmatprep.subr.bf16.mxu0 0
    %1553 = vmatpush2.bf16.msra.mxu0 0
    %1554 = vmatprep.mubr.bf16.mxu0 0
    %1555 = vmatmul.mubr.bf16.gmra.mxu0 %v1429
    %v1556 = vpop.f32.mrf.mxu0
    %v1557 = vadd.f32 %v1435, %v1556
    %v1558 = vpop.f32.mrf.mxu0
    %v1559 = vadd.f32 %v1439, %v1558
    %v1560 = vpop.f32.mrf.mxu0
    %v1561 = vpop.f32.mrf.mxu0
    %1562 = vdwg.mxu0
    %v1563 = vmax.f32 %v1557, 0.0
    %v1564 = vmax.f32 %v1559, 0.0
    %v1565 = vld [vmem:[#allocation17] sm:$0xff]
    %v1566 = vld [vmem:[#allocation17 + $0x8] sm:$0xff]
    %v1567 = vld [vmem:[#allocation17 + $0x10] sm:$0xff]
    %v1568 = vld [vmem:[#allocation17 + $0x18] sm:$0xff]
    %v1569 = vld [vmem:[#allocation17 + $0x20] sm:$0xff]
    %v1570 = vld [vmem:[#allocation17 + $0x28] sm:$0xff]
    %v1571 = vld [vmem:[#allocation17 + $0x30] sm:$0xff]
    %v1572 = vld [vmem:[#allocation17 + $0x38] sm:$0xff]
    %v1573 = vld [vmem:[#allocation17 + $0x40] sm:$0xff]
    %v1574 = vld [vmem:[#allocation17 + $0x48] sm:$0xff]
    %v1575 = vld [vmem:[#allocation17 + $0x50] sm:$0xff]
    %v1576 = vld [vmem:[#allocation17 + $0x58] sm:$0xff]
    %v1577 = vld [vmem:[#allocation17 + $0x60] sm:$0xff]
    %v1578 = vld [vmem:[#allocation17 + $0x68] sm:$0xff]
    %v1579 = vld [vmem:[#allocation17 + $0x70] sm:$0xff]
    %v1580 = vld [vmem:[#allocation17 + $0x78] sm:$0xff]
    %v1581 = vld [vmem:[#allocation17 + $0x80] sm:$0xff]
    %v1582 = vld [vmem:[#allocation17 + $0x88] sm:$0xff]
    %v1583 = vld [vmem:[#allocation17 + $0x90] sm:$0xff]
    %v1584 = vld [vmem:[#allocation17 + $0x98] sm:$0xff]
    %v1585 = vld [vmem:[#allocation17 + $0xa0] sm:$0xff]
    %v1586 = vld [vmem:[#allocation17 + $0xa8] sm:$0xff]
    %v1587 = vld [vmem:[#allocation17 + $0xb0] sm:$0xff]
    %v1588 = vld [vmem:[#allocation17 + $0xb8] sm:$0xff]
    %v1589 = vld [vmem:[#allocation17 + $0xc0] sm:$0xff]
    %v1590 = vld [vmem:[#allocation17 + $0xc8] sm:$0xff]
    %v1591 = vld [vmem:[#allocation17 + $0xd0] sm:$0xff]
    %v1592 = vld [vmem:[#allocation17 + $0xd8] sm:$0xff]
    %v1593 = vld [vmem:[#allocation17 + $0xe0] sm:$0xff]
    %v1594 = vld [vmem:[#allocation17 + $0xe8] sm:$0xff]
    %v1595 = vld [vmem:[#allocation17 + $0xf0] sm:$0xff]
    %v1596 = vld [vmem:[#allocation17 + $0xf8] sm:$0xff]
    %v1597 = vld [vmem:[#allocation17 + $0x100] sm:$0xff]
    %v1598 = vld [vmem:[#allocation17 + $0x108] sm:$0xff]
    %v1599 = vld [vmem:[#allocation17 + $0x110] sm:$0xff]
    %v1600 = vld [vmem:[#allocation17 + $0x118] sm:$0xff]
    %v1601 = vld [vmem:[#allocation17 + $0x120] sm:$0xff]
    %v1602 = vld [vmem:[#allocation17 + $0x128] sm:$0xff]
    %v1603 = vld [vmem:[#allocation17 + $0x130] sm:$0xff]
    %v1604 = vld [vmem:[#allocation17 + $0x138] sm:$0xff]
    %v1605 = vld [vmem:[#allocation17 + $0x140] sm:$0xff]
    %v1606 = vld [vmem:[#allocation17 + $0x148] sm:$0xff]
    %v1607 = vld [vmem:[#allocation17 + $0x150] sm:$0xff]
    %v1608 = vld [vmem:[#allocation17 + $0x158] sm:$0xff]
    %v1609 = vld [vmem:[#allocation17 + $0x160] sm:$0xff]
    %v1610 = vld [vmem:[#allocation17 + $0x168] sm:$0xff]
    %v1611 = vld [vmem:[#allocation17 + $0x170] sm:$0xff]
    %v1612 = vld [vmem:[#allocation17 + $0x178] sm:$0xff]
    %v1613 = vld [vmem:[#allocation17 + $0x180] sm:$0xff]
    %v1614 = vld [vmem:[#allocation17 + $0x188] sm:$0xff]
    %v1615 = vld [vmem:[#allocation17 + $0x190] sm:$0xff]
    %v1616 = vld [vmem:[#allocation17 + $0x198] sm:$0xff]
    %v1617 = vld [vmem:[#allocation17 + $0x1a0] sm:$0xff]
    %v1618 = vld [vmem:[#allocation17 + $0x1a8] sm:$0xff]
    %v1619 = vld [vmem:[#allocation17 + $0x1b0] sm:$0xff]
    %v1620 = vld [vmem:[#allocation17 + $0x1b8] sm:$0xff]
    %v1621 = vld [vmem:[#allocation17 + $0x1c0] sm:$0xff]
    %v1622 = vld [vmem:[#allocation17 + $0x1c8] sm:$0xff]
    %v1623 = vld [vmem:[#allocation17 + $0x1d0] sm:$0xff]
    %v1624 = vld [vmem:[#allocation17 + $0x1d8] sm:$0xff]
    %v1625 = vld [vmem:[#allocation17 + $0x1e0] sm:$0xff]
    %v1626 = vld [vmem:[#allocation17 + $0x1e8] sm:$0xff]
    %v1627 = vld [vmem:[#allocation17 + $0x1f0] sm:$0xff]
    %v1628 = vld [vmem:[#allocation17 + $0x1f8] sm:$0xff]
    %v1629 = vpack.c.bf16 %v1563, %v1563
    %v1630 = vpack.c.bf16 %v1564, %v1564
    %v1631 = vld [vmem:[#allocation19] sm:$0xf]
    %v1633 = vlaneseq
    %v1634 = vshrl.u32 %v1633, 7
    %v1635 = vsub.s32 0, %v1634
    %v1636 = vrot.slane %v1631, %v1635
    %v1637 = vlaneseq
    %v1638 = vshrl.u32 %v1637, 7
    %v1639 = vsub.s32 1, %v1638
    %v1640 = vrot.slane %v1631, %v1639
    %v1641 = vlaneseq
    %v1642 = vshrl.u32 %v1641, 7
    %v1643 = vsub.s32 2, %v1642
    %v1644 = vrot.slane %v1631, %v1643
    %v1645 = vlaneseq
    %v1646 = vshrl.u32 %v1645, 7
    %v1647 = vsub.s32 3, %v1646
    %v1648 = vrot.slane %v1631, %v1647
    %v1717 = vunpack.c.l.b16 %v1565
    %v1718 = vunpack.c.h.b16 %v1565
    %v1719 = vunpack.c.l.b16 %v1566
    %v1720 = vunpack.c.h.b16 %v1566
    %v1721 = vunpack.c.l.b16 %v1567
    %v1722 = vunpack.c.h.b16 %v1567
    %v1723 = vunpack.c.l.b16 %v1568
    %v1724 = vunpack.c.h.b16 %v1568
    %v1725 = vunpack.c.l.b16 %v1569
    %v1726 = vunpack.c.h.b16 %v1569
    %v1727 = vunpack.c.l.b16 %v1570
    %v1728 = vunpack.c.h.b16 %v1570
    %v1729 = vunpack.c.l.b16 %v1571
    %v1730 = vunpack.c.h.b16 %v1571
    %v1731 = vunpack.c.l.b16 %v1572
    %v1732 = vunpack.c.h.b16 %v1572
    %v1733 = vunpack.c.l.b16 %v1573
    %v1734 = vunpack.c.h.b16 %v1573
    %v1735 = vunpack.c.l.b16 %v1574
    %v1736 = vunpack.c.h.b16 %v1574
    %v1737 = vunpack.c.l.b16 %v1575
    %v1738 = vunpack.c.h.b16 %v1575
    %v1739 = vunpack.c.l.b16 %v1576
    %v1740 = vunpack.c.h.b16 %v1576
    %v1741 = vunpack.c.l.b16 %v1577
    %v1742 = vunpack.c.h.b16 %v1577
    %v1743 = vunpack.c.l.b16 %v1578
    %v1744 = vunpack.c.h.b16 %v1578
    %v1745 = vunpack.c.l.b16 %v1579
    %v1746 = vunpack.c.h.b16 %v1579
    %v1747 = vunpack.c.l.b16 %v1580
    %v1748 = vunpack.c.h.b16 %v1580
    %v1749 = vunpack.c.l.b16 %v1581
    %v1750 = vunpack.c.h.b16 %v1581
    %v1751 = vunpack.c.l.b16 %v1582
    %v1752 = vunpack.c.h.b16 %v1582
    %v1753 = vunpack.c.l.b16 %v1583
    %v1754 = vunpack.c.h.b16 %v1583
    %v1755 = vunpack.c.l.b16 %v1584
    %v1756 = vunpack.c.h.b16 %v1584
    %v1757 = vunpack.c.l.b16 %v1585
    %v1758 = vunpack.c.h.b16 %v1585
    %v1759 = vunpack.c.l.b16 %v1586
    %v1760 = vunpack.c.h.b16 %v1586
    %v1761 = vunpack.c.l.b16 %v1587
    %v1762 = vunpack.c.h.b16 %v1587
    %v1763 = vunpack.c.l.b16 %v1588
    %v1764 = vunpack.c.h.b16 %v1588
    %v1765 = vunpack.c.l.b16 %v1589
    %v1766 = vunpack.c.h.b16 %v1589
    %v1767 = vunpack.c.l.b16 %v1590
    %v1768 = vunpack.c.h.b16 %v1590
    %v1769 = vunpack.c.l.b16 %v1591
    %v1770 = vunpack.c.h.b16 %v1591
    %v1771 = vunpack.c.l.b16 %v1592
    %v1772 = vunpack.c.h.b16 %v1592
    %v1773 = vunpack.c.l.b16 %v1593
    %v1774 = vunpack.c.h.b16 %v1593
    %v1775 = vunpack.c.l.b16 %v1594
    %v1776 = vunpack.c.h.b16 %v1594
    %v1777 = vunpack.c.l.b16 %v1595
    %v1778 = vunpack.c.h.b16 %v1595
    %v1779 = vunpack.c.l.b16 %v1596
    %v1780 = vunpack.c.h.b16 %v1596
    %v1781 = vunpack.c.l.b16 %v1597
    %v1782 = vunpack.c.h.b16 %v1597
    %v1783 = vunpack.c.l.b16 %v1598
    %v1784 = vunpack.c.h.b16 %v1598
    %v1785 = vunpack.c.l.b16 %v1599
    %v1786 = vunpack.c.h.b16 %v1599
    %v1787 = vunpack.c.l.b16 %v1600
    %v1788 = vunpack.c.h.b16 %v1600
    %v1789 = vunpack.c.l.b16 %v1601
    %v1790 = vunpack.c.h.b16 %v1601
    %v1791 = vunpack.c.l.b16 %v1602
    %v1792 = vunpack.c.h.b16 %v1602
    %v1793 = vunpack.c.l.b16 %v1603
    %v1794 = vunpack.c.h.b16 %v1603
    %v1795 = vunpack.c.l.b16 %v1604
    %v1796 = vunpack.c.h.b16 %v1604
    %v1797 = vunpack.c.l.b16 %v1605
    %v1798 = vunpack.c.h.b16 %v1605
    %v1799 = vunpack.c.l.b16 %v1606
    %v1800 = vunpack.c.h.b16 %v1606
    %v1801 = vunpack.c.l.b16 %v1607
    %v1802 = vunpack.c.h.b16 %v1607
    %v1803 = vunpack.c.l.b16 %v1608
    %v1804 = vunpack.c.h.b16 %v1608
    %v1805 = vunpack.c.l.b16 %v1609
    %v1806 = vunpack.c.h.b16 %v1609
    %v1807 = vunpack.c.l.b16 %v1610
    %v1808 = vunpack.c.h.b16 %v1610
    %v1809 = vunpack.c.l.b16 %v1611
    %v1810 = vunpack.c.h.b16 %v1611
    %v1811 = vunpack.c.l.b16 %v1612
    %v1812 = vunpack.c.h.b16 %v1612
    %v1813 = vunpack.c.l.b16 %v1613
    %v1814 = vunpack.c.h.b16 %v1613
    %v1815 = vunpack.c.l.b16 %v1614
    %v1816 = vunpack.c.h.b16 %v1614
    %v1817 = vunpack.c.l.b16 %v1615
    %v1818 = vunpack.c.h.b16 %v1615
    %v1819 = vunpack.c.l.b16 %v1616
    %v1820 = vunpack.c.h.b16 %v1616
    %v1821 = vunpack.c.l.b16 %v1617
    %v1822 = vunpack.c.h.b16 %v1617
    %v1823 = vunpack.c.l.b16 %v1618
    %v1824 = vunpack.c.h.b16 %v1618
    %v1825 = vunpack.c.l.b16 %v1619
    %v1826 = vunpack.c.h.b16 %v1619
    %v1827 = vunpack.c.l.b16 %v1620
    %v1828 = vunpack.c.h.b16 %v1620
    %v1829 = vunpack.c.l.b16 %v1621
    %v1830 = vunpack.c.h.b16 %v1621
    %v1831 = vunpack.c.l.b16 %v1622
    %v1832 = vunpack.c.h.b16 %v1622
    %v1833 = vunpack.c.l.b16 %v1623
    %v1834 = vunpack.c.h.b16 %v1623
    %v1835 = vunpack.c.l.b16 %v1624
    %v1836 = vunpack.c.h.b16 %v1624
    %v1837 = vunpack.c.l.b16 %v1625
    %v1838 = vunpack.c.h.b16 %v1625
    %v1839 = vunpack.c.l.b16 %v1626
    %v1840 = vunpack.c.h.b16 %v1626
    %v1841 = vunpack.c.l.b16 %v1627
    %v1842 = vunpack.c.h.b16 %v1627
    %v1843 = vunpack.c.l.b16 %v1628
    %v1844 = vunpack.c.h.b16 %v1628
    %v1845 = vpack.c.b16 %v1721, %v1717
    %v1846 = vpack.c.b16 %v1722, %v1718
    %v1847 = vpack.c.b16 %v1723, %v1719
    %v1848 = vpack.c.b16 %v1724, %v1720
    %v1849 = vpack.c.b16 %v1729, %v1725
    %v1850 = vpack.c.b16 %v1730, %v1726
    %v1851 = vpack.c.b16 %v1731, %v1727
    %v1852 = vpack.c.b16 %v1732, %v1728
    %v1853 = vpack.c.b16 %v1737, %v1733
    %v1854 = vpack.c.b16 %v1738, %v1734
    %v1855 = vpack.c.b16 %v1739, %v1735
    %v1856 = vpack.c.b16 %v1740, %v1736
    %v1857 = vpack.c.b16 %v1745, %v1741
    %v1858 = vpack.c.b16 %v1746, %v1742
    %v1859 = vpack.c.b16 %v1747, %v1743
    %v1860 = vpack.c.b16 %v1748, %v1744
    %v1861 = vpack.c.b16 %v1753, %v1749
    %v1862 = vpack.c.b16 %v1754, %v1750
    %v1863 = vpack.c.b16 %v1755, %v1751
    %v1864 = vpack.c.b16 %v1756, %v1752
    %v1865 = vpack.c.b16 %v1761, %v1757
    %v1866 = vpack.c.b16 %v1762, %v1758
    %v1867 = vpack.c.b16 %v1763, %v1759
    %v1868 = vpack.c.b16 %v1764, %v1760
    %v1869 = vpack.c.b16 %v1769, %v1765
    %v1870 = vpack.c.b16 %v1770, %v1766
    %v1871 = vpack.c.b16 %v1771, %v1767
    %v1872 = vpack.c.b16 %v1772, %v1768
    %v1873 = vpack.c.b16 %v1777, %v1773
    %v1874 = vpack.c.b16 %v1778, %v1774
    %v1875 = vpack.c.b16 %v1779, %v1775
    %v1876 = vpack.c.b16 %v1780, %v1776
    %v1877 = vpack.c.b16 %v1785, %v1781
    %v1878 = vpack.c.b16 %v1786, %v1782
    %v1879 = vpack.c.b16 %v1787, %v1783
    %v1880 = vpack.c.b16 %v1788, %v1784
    %v1881 = vpack.c.b16 %v1793, %v1789
    %v1882 = vpack.c.b16 %v1794, %v1790
    %v1883 = vpack.c.b16 %v1795, %v1791
    %v1884 = vpack.c.b16 %v1796, %v1792
    %v1885 = vpack.c.b16 %v1801, %v1797
    %v1886 = vpack.c.b16 %v1802, %v1798
    %v1887 = vpack.c.b16 %v1803, %v1799
    %v1888 = vpack.c.b16 %v1804, %v1800
    %v1889 = vpack.c.b16 %v1809, %v1805
    %v1890 = vpack.c.b16 %v1810, %v1806
    %v1891 = vpack.c.b16 %v1811, %v1807
    %v1892 = vpack.c.b16 %v1812, %v1808
    %v1893 = vpack.c.b16 %v1817, %v1813
    %v1894 = vpack.c.b16 %v1818, %v1814
    %v1895 = vpack.c.b16 %v1819, %v1815
    %v1896 = vpack.c.b16 %v1820, %v1816
    %v1897 = vpack.c.b16 %v1825, %v1821
    %v1898 = vpack.c.b16 %v1826, %v1822
    %v1899 = vpack.c.b16 %v1827, %v1823
    %v1900 = vpack.c.b16 %v1828, %v1824
    %v1901 = vpack.c.b16 %v1833, %v1829
    %v1902 = vpack.c.b16 %v1834, %v1830
    %v1903 = vpack.c.b16 %v1835, %v1831
    %v1904 = vpack.c.b16 %v1836, %v1832
    %v1905 = vpack.c.b16 %v1841, %v1837
    %v1906 = vpack.c.b16 %v1842, %v1838
    %v1907 = vpack.c.b16 %v1843, %v1839
    %v1908 = vpack.c.b16 %v1844, %v1840
    %1973 = vmatprep.subr.bf16.mxu0 %v1874
    %1974 = vmatpush1.bf16.msra.mxu0 %v1873
    %1975 = vmatprep.subr.bf16.mxu0 %v1870
    %1976 = vmatpush1.bf16.msra.mxu0 %v1869
    %1977 = vmatprep.subr.bf16.mxu0 %v1866
    %1978 = vmatpush1.bf16.msra.mxu0 %v1865
    %1979 = vmatprep.subr.bf16.mxu0 %v1862
    %1980 = vmatpush1.bf16.msra.mxu0 %v1861
    %1981 = vmatprep.subr.bf16.mxu0 %v1858
    %1982 = vmatpush1.bf16.msra.mxu0 %v1857
    %1983 = vmatprep.subr.bf16.mxu0 %v1854
    %1984 = vmatpush1.bf16.msra.mxu0 %v1853
    %1985 = vmatprep.subr.bf16.mxu0 %v1850
    %1986 = vmatpush1.bf16.msra.mxu0 %v1849
    %1987 = vmatprep.subr.bf16.mxu0 %v1846
    %1988 = vmatpush1.bf16.msra.mxu0 %v1845
    %1989 = vmatprep.subr.bf16.mxu0 %v1906
    %1990 = vmatpush2.bf16.msra.mxu0 %v1905
    %1991 = vmatprep.subr.bf16.mxu0 %v1902
    %1992 = vmatpush2.bf16.msra.mxu0 %v1901
    %1993 = vmatprep.subr.bf16.mxu0 %v1898
    %1994 = vmatpush2.bf16.msra.mxu0 %v1897
    %1995 = vmatprep.subr.bf16.mxu0 %v1894
    %1996 = vmatpush2.bf16.msra.mxu0 %v1893
    %1997 = vmatprep.subr.bf16.mxu0 %v1890
    %1998 = vmatpush2.bf16.msra.mxu0 %v1889
    %1999 = vmatprep.subr.bf16.mxu0 %v1886
    %2000 = vmatpush2.bf16.msra.mxu0 %v1885
    %2001 = vmatprep.subr.bf16.mxu0 %v1882
    %2002 = vmatpush2.bf16.msra.mxu0 %v1881
    %2003 = vmatprep.subr.bf16.mxu0 %v1878
    %2004 = vmatpush2.bf16.msra.mxu0 %v1877
    %2005 = vmatprep.mubr.bf16.mxu0 %v1630
    %2006 = vmatmul.mubr.bf16.gmra.mxu0 %v1629
    %v2007 = vpop.f32.mrf.mxu0
    %v2008 = vadd.f32 %v1636, %v2007
    %v2009 = vpop.f32.mrf.mxu0
    %v2010 = vadd.f32 %v1640, %v2009
    %v2011 = vpop.f32.mrf.mxu0
    %v2012 = vpop.f32.mrf.mxu0
    %2013 = vdwg.mxu0
    %2014 = vmatprep.subr.bf16.mxu0 %v1876
    %2015 = vmatpush1.bf16.msra.mxu0 %v1875
    %2016 = vmatprep.subr.bf16.mxu0 %v1872
    %2017 = vmatpush1.bf16.msra.mxu0 %v1871
    %2018 = vmatprep.subr.bf16.mxu0 %v1868
    %2019 = vmatpush1.bf16.msra.mxu0 %v1867
    %2020 = vmatprep.subr.bf16.mxu0 %v1864
    %2021 = vmatpush1.bf16.msra.mxu0 %v1863
    %2022 = vmatprep.subr.bf16.mxu0 %v1860
    %2023 = vmatpush1.bf16.msra.mxu0 %v1859
    %2024 = vmatprep.subr.bf16.mxu0 %v1856
    %2025 = vmatpush1.bf16.msra.mxu0 %v1855
    %2026 = vmatprep.subr.bf16.mxu0 %v1852
    %2027 = vmatpush1.bf16.msra.mxu0 %v1851
    %2028 = vmatprep.subr.bf16.mxu0 %v1848
    %2029 = vmatpush1.bf16.msra.mxu0 %v1847
    %2030 = vmatprep.subr.bf16.mxu0 %v1908
    %2031 = vmatpush2.bf16.msra.mxu0 %v1907
    %2032 = vmatprep.subr.bf16.mxu0 %v1904
    %2033 = vmatpush2.bf16.msra.mxu0 %v1903
    %2034 = vmatprep.subr.bf16.mxu0 %v1900
    %2035 = vmatpush2.bf16.msra.mxu0 %v1899
    %2036 = vmatprep.subr.bf16.mxu0 %v1896
    %2037 = vmatpush2.bf16.msra.mxu0 %v1895
    %2038 = vmatprep.subr.bf16.mxu0 %v1892
    %2039 = vmatpush2.bf16.msra.mxu0 %v1891
    %2040 = vmatprep.subr.bf16.mxu0 %v1888
    %2041 = vmatpush2.bf16.msra.mxu0 %v1887
    %2042 = vmatprep.subr.bf16.mxu0 %v1884
    %2043 = vmatpush2.bf16.msra.mxu0 %v1883
    %2044 = vmatprep.subr.bf16.mxu0 %v1880
    %2045 = vmatpush2.bf16.msra.mxu0 %v1879
    %2046 = vmatprep.mubr.bf16.mxu0 %v1630
    %2047 = vmatmul.mubr.bf16.gmra.mxu0 %v1629
    %v2048 = vpop.f32.mrf.mxu0
    %v2049 = vadd.f32 %v1644, %v2048
    %v2050 = vpop.f32.mrf.mxu0
    %v2051 = vadd.f32 %v1648, %v2050
    %v2052 = vpop.f32.mrf.mxu0
    %v2053 = vpop.f32.mrf.mxu0
    %2054 = vdwg.mxu0
    %v2055 = vmax.f32 %v2008, 0.0
    %v2056 = vmax.f32 %v2010, 0.0
    %v2057 = vmax.f32 %v2049, 0.0
    %v2058 = vmax.f32 %v2051, 0.0
    %v2059 = vld [vmem:[#allocation20] sm:$0xff]
    %v2060 = vld [vmem:[#allocation20 + $0x8] sm:$0xff]
    %v2061 = vld [vmem:[#allocation20 + $0x10] sm:$0xff]
    %v2062 = vld [vmem:[#allocation20 + $0x18] sm:$0xff]
    %v2063 = vld [vmem:[#allocation20 + $0x20] sm:$0xff]
    %v2064 = vld [vmem:[#allocation20 + $0x28] sm:$0xff]
    %v2065 = vld [vmem:[#allocation20 + $0x30] sm:$0xff]
    %v2066 = vld [vmem:[#allocation20 + $0x38] sm:$0xff]
    %v2067 = vld [vmem:[#allocation20 + $0x40] sm:$0xff]
    %v2068 = vld [vmem:[#allocation20 + $0x48] sm:$0xff]
    %v2069 = vld [vmem:[#allocation20 + $0x50] sm:$0xff]
    %v2070 = vld [vmem:[#allocation20 + $0x58] sm:$0xff]
    %v2071 = vld [vmem:[#allocation20 + $0x60] sm:$0xff]
    %v2072 = vld [vmem:[#allocation20 + $0x68] sm:$0xff]
    %v2073 = vld [vmem:[#allocation20 + $0x70] sm:$0xff]
    %v2074 = vld [vmem:[#allocation20 + $0x78] sm:$0xff]
    %v2075 = vld [vmem:[#allocation20 + $0x80] sm:$0xff]
    %v2076 = vld [vmem:[#allocation20 + $0x88] sm:$0xff]
    %v2077 = vld [vmem:[#allocation20 + $0x90] sm:$0xff]
    %v2078 = vld [vmem:[#allocation20 + $0x98] sm:$0xff]
    %v2079 = vld [vmem:[#allocation20 + $0xa0] sm:$0xff]
    %v2080 = vld [vmem:[#allocation20 + $0xa8] sm:$0xff]
    %v2081 = vld [vmem:[#allocation20 + $0xb0] sm:$0xff]
    %v2082 = vld [vmem:[#allocation20 + $0xb8] sm:$0xff]
    %v2083 = vld [vmem:[#allocation20 + $0xc0] sm:$0xff]
    %v2084 = vld [vmem:[#allocation20 + $0xc8] sm:$0xff]
    %v2085 = vld [vmem:[#allocation20 + $0xd0] sm:$0xff]
    %v2086 = vld [vmem:[#allocation20 + $0xd8] sm:$0xff]
    %v2087 = vld [vmem:[#allocation20 + $0xe0] sm:$0xff]
    %v2088 = vld [vmem:[#allocation20 + $0xe8] sm:$0xff]
    %v2089 = vld [vmem:[#allocation20 + $0xf0] sm:$0xff]
    %v2090 = vld [vmem:[#allocation20 + $0xf8] sm:$0xff]
    %v2091 = vld [vmem:[#allocation20 + $0x100] sm:$0xff]
    %v2092 = vld [vmem:[#allocation20 + $0x108] sm:$0xff]
    %v2093 = vld [vmem:[#allocation20 + $0x110] sm:$0xff]
    %v2094 = vld [vmem:[#allocation20 + $0x118] sm:$0xff]
    %v2095 = vld [vmem:[#allocation20 + $0x120] sm:$0xff]
    %v2096 = vld [vmem:[#allocation20 + $0x128] sm:$0xff]
    %v2097 = vld [vmem:[#allocation20 + $0x130] sm:$0xff]
    %v2098 = vld [vmem:[#allocation20 + $0x138] sm:$0xff]
    %v2099 = vld [vmem:[#allocation20 + $0x140] sm:$0xff]
    %v2100 = vld [vmem:[#allocation20 + $0x148] sm:$0xff]
    %v2101 = vld [vmem:[#allocation20 + $0x150] sm:$0xff]
    %v2102 = vld [vmem:[#allocation20 + $0x158] sm:$0xff]
    %v2103 = vld [vmem:[#allocation20 + $0x160] sm:$0xff]
    %v2104 = vld [vmem:[#allocation20 + $0x168] sm:$0xff]
    %v2105 = vld [vmem:[#allocation20 + $0x170] sm:$0xff]
    %v2106 = vld [vmem:[#allocation20 + $0x178] sm:$0xff]
    %v2107 = vld [vmem:[#allocation20 + $0x180] sm:$0xff]
    %v2108 = vld [vmem:[#allocation20 + $0x188] sm:$0xff]
    %v2109 = vld [vmem:[#allocation20 + $0x190] sm:$0xff]
    %v2110 = vld [vmem:[#allocation20 + $0x198] sm:$0xff]
    %v2111 = vld [vmem:[#allocation20 + $0x1a0] sm:$0xff]
    %v2112 = vld [vmem:[#allocation20 + $0x1a8] sm:$0xff]
    %v2113 = vld [vmem:[#allocation20 + $0x1b0] sm:$0xff]
    %v2114 = vld [vmem:[#allocation20 + $0x1b8] sm:$0xff]
    %v2115 = vld [vmem:[#allocation20 + $0x1c0] sm:$0xff]
    %v2116 = vld [vmem:[#allocation20 + $0x1c8] sm:$0xff]
    %v2117 = vld [vmem:[#allocation20 + $0x1d0] sm:$0xff]
    %v2118 = vld [vmem:[#allocation20 + $0x1d8] sm:$0xff]
    %v2119 = vld [vmem:[#allocation20 + $0x1e0] sm:$0xff]
    %v2120 = vld [vmem:[#allocation20 + $0x1e8] sm:$0xff]
    %v2121 = vld [vmem:[#allocation20 + $0x1f0] sm:$0xff]
    %v2122 = vld [vmem:[#allocation20 + $0x1f8] sm:$0xff]
    %v2123 = vld [vmem:[#allocation20 + $0x200] sm:$0xff]
    %v2124 = vld [vmem:[#allocation20 + $0x208] sm:$0xff]
    %v2125 = vld [vmem:[#allocation20 + $0x210] sm:$0xff]
    %v2126 = vld [vmem:[#allocation20 + $0x218] sm:$0xff]
    %v2127 = vld [vmem:[#allocation20 + $0x220] sm:$0xff]
    %v2128 = vld [vmem:[#allocation20 + $0x228] sm:$0xff]
    %v2129 = vld [vmem:[#allocation20 + $0x230] sm:$0xff]
    %v2130 = vld [vmem:[#allocation20 + $0x238] sm:$0xff]
    %v2131 = vld [vmem:[#allocation20 + $0x240] sm:$0xff]
    %v2132 = vld [vmem:[#allocation20 + $0x248] sm:$0xff]
    %v2133 = vld [vmem:[#allocation20 + $0x250] sm:$0xff]
    %v2134 = vld [vmem:[#allocation20 + $0x258] sm:$0xff]
    %v2135 = vld [vmem:[#allocation20 + $0x260] sm:$0xff]
    %v2136 = vld [vmem:[#allocation20 + $0x268] sm:$0xff]
    %v2137 = vld [vmem:[#allocation20 + $0x270] sm:$0xff]
    %v2138 = vld [vmem:[#allocation20 + $0x278] sm:$0xff]
    %v2139 = vld [vmem:[#allocation20 + $0x280] sm:$0xff]
    %v2140 = vld [vmem:[#allocation20 + $0x288] sm:$0xff]
    %v2141 = vld [vmem:[#allocation20 + $0x290] sm:$0xff]
    %v2142 = vld [vmem:[#allocation20 + $0x298] sm:$0xff]
    %v2143 = vld [vmem:[#allocation20 + $0x2a0] sm:$0xff]
    %v2144 = vld [vmem:[#allocation20 + $0x2a8] sm:$0xff]
    %v2145 = vld [vmem:[#allocation20 + $0x2b0] sm:$0xff]
    %v2146 = vld [vmem:[#allocation20 + $0x2b8] sm:$0xff]
    %v2147 = vld [vmem:[#allocation20 + $0x2c0] sm:$0xff]
    %v2148 = vld [vmem:[#allocation20 + $0x2c8] sm:$0xff]
    %v2149 = vld [vmem:[#allocation20 + $0x2d0] sm:$0xff]
    %v2150 = vld [vmem:[#allocation20 + $0x2d8] sm:$0xff]
    %v2151 = vld [vmem:[#allocation20 + $0x2e0] sm:$0xff]
    %v2152 = vld [vmem:[#allocation20 + $0x2e8] sm:$0xff]
    %v2153 = vld [vmem:[#allocation20 + $0x2f0] sm:$0xff]
    %v2154 = vld [vmem:[#allocation20 + $0x2f8] sm:$0xff]
    %v2155 = vld [vmem:[#allocation20 + $0x300] sm:$0xff]
    %v2156 = vld [vmem:[#allocation20 + $0x308] sm:$0xff]
    %v2157 = vld [vmem:[#allocation20 + $0x310] sm:$0xff]
    %v2158 = vld [vmem:[#allocation20 + $0x318] sm:$0xff]
    %v2159 = vld [vmem:[#allocation20 + $0x320] sm:$0xff]
    %v2160 = vld [vmem:[#allocation20 + $0x328] sm:$0xff]
    %v2161 = vld [vmem:[#allocation20 + $0x330] sm:$0xff]
    %v2162 = vld [vmem:[#allocation20 + $0x338] sm:$0xff]
    %v2163 = vld [vmem:[#allocation20 + $0x340] sm:$0xff]
    %v2164 = vld [vmem:[#allocation20 + $0x348] sm:$0xff]
    %v2165 = vld [vmem:[#allocation20 + $0x350] sm:$0xff]
    %v2166 = vld [vmem:[#allocation20 + $0x358] sm:$0xff]
    %v2167 = vld [vmem:[#allocation20 + $0x360] sm:$0xff]
    %v2168 = vld [vmem:[#allocation20 + $0x368] sm:$0xff]
    %v2169 = vld [vmem:[#allocation20 + $0x370] sm:$0xff]
    %v2170 = vld [vmem:[#allocation20 + $0x378] sm:$0xff]
    %v2171 = vld [vmem:[#allocation20 + $0x380] sm:$0xff]
    %v2172 = vld [vmem:[#allocation20 + $0x388] sm:$0xff]
    %v2173 = vld [vmem:[#allocation20 + $0x390] sm:$0xff]
    %v2174 = vld [vmem:[#allocation20 + $0x398] sm:$0xff]
    %v2175 = vld [vmem:[#allocation20 + $0x3a0] sm:$0xff]
    %v2176 = vld [vmem:[#allocation20 + $0x3a8] sm:$0xff]
    %v2177 = vld [vmem:[#allocation20 + $0x3b0] sm:$0xff]
    %v2178 = vld [vmem:[#allocation20 + $0x3b8] sm:$0xff]
    %v2179 = vld [vmem:[#allocation20 + $0x3c0] sm:$0xff]
    %v2180 = vld [vmem:[#allocation20 + $0x3c8] sm:$0xff]
    %v2181 = vld [vmem:[#allocation20 + $0x3d0] sm:$0xff]
    %v2182 = vld [vmem:[#allocation20 + $0x3d8] sm:$0xff]
    %v2183 = vld [vmem:[#allocation20 + $0x3e0] sm:$0xff]
    %v2184 = vld [vmem:[#allocation20 + $0x3e8] sm:$0xff]
    %v2185 = vld [vmem:[#allocation20 + $0x3f0] sm:$0xff]
    %v2186 = vld [vmem:[#allocation20 + $0x3f8] sm:$0xff]
    %v2187 = vld [vmem:[#allocation20 + $0x400] sm:$0xff]
    %v2188 = vld [vmem:[#allocation20 + $0x408] sm:$0xff]
    %v2189 = vld [vmem:[#allocation20 + $0x410] sm:$0xff]
    %v2190 = vld [vmem:[#allocation20 + $0x418] sm:$0xff]
    %v2191 = vld [vmem:[#allocation20 + $0x420] sm:$0xff]
    %v2192 = vld [vmem:[#allocation20 + $0x428] sm:$0xff]
    %v2193 = vld [vmem:[#allocation20 + $0x430] sm:$0xff]
    %v2194 = vld [vmem:[#allocation20 + $0x438] sm:$0xff]
    %v2195 = vld [vmem:[#allocation20 + $0x440] sm:$0xff]
    %v2196 = vld [vmem:[#allocation20 + $0x448] sm:$0xff]
    %v2197 = vld [vmem:[#allocation20 + $0x450] sm:$0xff]
    %v2198 = vld [vmem:[#allocation20 + $0x458] sm:$0xff]
    %v2199 = vld [vmem:[#allocation20 + $0x460] sm:$0xff]
    %v2200 = vld [vmem:[#allocation20 + $0x468] sm:$0xff]
    %v2201 = vld [vmem:[#allocation20 + $0x470] sm:$0xff]
    %v2202 = vld [vmem:[#allocation20 + $0x478] sm:$0xff]
    %v2203 = vld [vmem:[#allocation20 + $0x480] sm:$0xff]
    %v2204 = vld [vmem:[#allocation20 + $0x488] sm:$0xff]
    %v2205 = vld [vmem:[#allocation20 + $0x490] sm:$0xff]
    %v2206 = vld [vmem:[#allocation20 + $0x498] sm:$0xff]
    %v2207 = vld [vmem:[#allocation20 + $0x4a0] sm:$0xff]
    %v2208 = vld [vmem:[#allocation20 + $0x4a8] sm:$0xff]
    %v2209 = vld [vmem:[#allocation20 + $0x4b0] sm:$0xff]
    %v2210 = vld [vmem:[#allocation20 + $0x4b8] sm:$0xff]
    %v2211 = vld [vmem:[#allocation20 + $0x4c0] sm:$0xff]
    %v2212 = vld [vmem:[#allocation20 + $0x4c8] sm:$0xff]
    %v2213 = vld [vmem:[#allocation20 + $0x4d0] sm:$0xff]
    %v2214 = vld [vmem:[#allocation20 + $0x4d8] sm:$0xff]
    %v2215 = vld [vmem:[#allocation20 + $0x4e0] sm:$0xff]
    %v2216 = vld [vmem:[#allocation20 + $0x4e8] sm:$0xff]
    %v2217 = vld [vmem:[#allocation20 + $0x4f0] sm:$0xff]
    %v2218 = vld [vmem:[#allocation20 + $0x4f8] sm:$0xff]
    %v2219 = vld [vmem:[#allocation20 + $0x500] sm:$0xff]
    %v2220 = vld [vmem:[#allocation20 + $0x508] sm:$0xff]
    %v2221 = vld [vmem:[#allocation20 + $0x510] sm:$0xff]
    %v2222 = vld [vmem:[#allocation20 + $0x518] sm:$0xff]
    %v2223 = vld [vmem:[#allocation20 + $0x520] sm:$0xff]
    %v2224 = vld [vmem:[#allocation20 + $0x528] sm:$0xff]
    %v2225 = vld [vmem:[#allocation20 + $0x530] sm:$0xff]
    %v2226 = vld [vmem:[#allocation20 + $0x538] sm:$0xff]
    %v2227 = vld [vmem:[#allocation20 + $0x540] sm:$0xff]
    %v2228 = vld [vmem:[#allocation20 + $0x548] sm:$0xff]
    %v2229 = vld [vmem:[#allocation20 + $0x550] sm:$0xff]
    %v2230 = vld [vmem:[#allocation20 + $0x558] sm:$0xff]
    %v2231 = vld [vmem:[#allocation20 + $0x560] sm:$0xff]
    %v2232 = vld [vmem:[#allocation20 + $0x568] sm:$0xff]
    %v2233 = vld [vmem:[#allocation20 + $0x570] sm:$0xff]
    %v2234 = vld [vmem:[#allocation20 + $0x578] sm:$0xff]
    %v2235 = vld [vmem:[#allocation20 + $0x580] sm:$0xff]
    %v2236 = vld [vmem:[#allocation20 + $0x588] sm:$0xff]
    %v2237 = vld [vmem:[#allocation20 + $0x590] sm:$0xff]
    %v2238 = vld [vmem:[#allocation20 + $0x598] sm:$0xff]
    %v2239 = vld [vmem:[#allocation20 + $0x5a0] sm:$0xff]
    %v2240 = vld [vmem:[#allocation20 + $0x5a8] sm:$0xff]
    %v2241 = vld [vmem:[#allocation20 + $0x5b0] sm:$0xff]
    %v2242 = vld [vmem:[#allocation20 + $0x5b8] sm:$0xff]
    %v2243 = vld [vmem:[#allocation20 + $0x5c0] sm:$0xff]
    %v2244 = vld [vmem:[#allocation20 + $0x5c8] sm:$0xff]
    %v2245 = vld [vmem:[#allocation20 + $0x5d0] sm:$0xff]
    %v2246 = vld [vmem:[#allocation20 + $0x5d8] sm:$0xff]
    %v2247 = vld [vmem:[#allocation20 + $0x5e0] sm:$0xff]
    %v2248 = vld [vmem:[#allocation20 + $0x5e8] sm:$0xff]
    %v2249 = vld [vmem:[#allocation20 + $0x5f0] sm:$0xff]
    %v2250 = vld [vmem:[#allocation20 + $0x5f8] sm:$0xff]
    %v2251 = vld [vmem:[#allocation20 + $0x600] sm:$0xff]
    %v2252 = vld [vmem:[#allocation20 + $0x608] sm:$0xff]
    %v2253 = vld [vmem:[#allocation20 + $0x610] sm:$0xff]
    %v2254 = vld [vmem:[#allocation20 + $0x618] sm:$0xff]
    %v2255 = vld [vmem:[#allocation20 + $0x620] sm:$0xff]
    %v2256 = vld [vmem:[#allocation20 + $0x628] sm:$0xff]
    %v2257 = vld [vmem:[#allocation20 + $0x630] sm:$0xff]
    %v2258 = vld [vmem:[#allocation20 + $0x638] sm:$0xff]
    %v2259 = vld [vmem:[#allocation20 + $0x640] sm:$0xff]
    %v2260 = vld [vmem:[#allocation20 + $0x648] sm:$0xff]
    %v2261 = vld [vmem:[#allocation20 + $0x650] sm:$0xff]
    %v2262 = vld [vmem:[#allocation20 + $0x658] sm:$0xff]
    %v2263 = vld [vmem:[#allocation20 + $0x660] sm:$0xff]
    %v2264 = vld [vmem:[#allocation20 + $0x668] sm:$0xff]
    %v2265 = vld [vmem:[#allocation20 + $0x670] sm:$0xff]
    %v2266 = vld [vmem:[#allocation20 + $0x678] sm:$0xff]
    %v2267 = vld [vmem:[#allocation20 + $0x680] sm:$0xff]
    %v2268 = vld [vmem:[#allocation20 + $0x688] sm:$0xff]
    %v2269 = vld [vmem:[#allocation20 + $0x690] sm:$0xff]
    %v2270 = vld [vmem:[#allocation20 + $0x698] sm:$0xff]
    %v2271 = vld [vmem:[#allocation20 + $0x6a0] sm:$0xff]
    %v2272 = vld [vmem:[#allocation20 + $0x6a8] sm:$0xff]
    %v2273 = vld [vmem:[#allocation20 + $0x6b0] sm:$0xff]
    %v2274 = vld [vmem:[#allocation20 + $0x6b8] sm:$0xff]
    %v2275 = vld [vmem:[#allocation20 + $0x6c0] sm:$0xff]
    %v2276 = vld [vmem:[#allocation20 + $0x6c8] sm:$0xff]
    %v2277 = vld [vmem:[#allocation20 + $0x6d0] sm:$0xff]
    %v2278 = vld [vmem:[#allocation20 + $0x6d8] sm:$0xff]
    %v2279 = vld [vmem:[#allocation20 + $0x6e0] sm:$0xff]
    %v2280 = vld [vmem:[#allocation20 + $0x6e8] sm:$0xff]
    %v2281 = vld [vmem:[#allocation20 + $0x6f0] sm:$0xff]
    %v2282 = vld [vmem:[#allocation20 + $0x6f8] sm:$0xff]
    %v2283 = vld [vmem:[#allocation20 + $0x700] sm:$0xff]
    %v2284 = vld [vmem:[#allocation20 + $0x708] sm:$0xff]
    %v2285 = vld [vmem:[#allocation20 + $0x710] sm:$0xff]
    %v2286 = vld [vmem:[#allocation20 + $0x718] sm:$0xff]
    %v2287 = vld [vmem:[#allocation20 + $0x720] sm:$0xff]
    %v2288 = vld [vmem:[#allocation20 + $0x728] sm:$0xff]
    %v2289 = vld [vmem:[#allocation20 + $0x730] sm:$0xff]
    %v2290 = vld [vmem:[#allocation20 + $0x738] sm:$0xff]
    %v2291 = vld [vmem:[#allocation20 + $0x740] sm:$0xff]
    %v2292 = vld [vmem:[#allocation20 + $0x748] sm:$0xff]
    %v2293 = vld [vmem:[#allocation20 + $0x750] sm:$0xff]
    %v2294 = vld [vmem:[#allocation20 + $0x758] sm:$0xff]
    %v2295 = vld [vmem:[#allocation20 + $0x760] sm:$0xff]
    %v2296 = vld [vmem:[#allocation20 + $0x768] sm:$0xff]
    %v2297 = vld [vmem:[#allocation20 + $0x770] sm:$0xff]
    %v2298 = vld [vmem:[#allocation20 + $0x778] sm:$0xff]
    %v2299 = vld [vmem:[#allocation20 + $0x780] sm:$0xff]
    %v2300 = vld [vmem:[#allocation20 + $0x788] sm:$0xff]
    %v2301 = vld [vmem:[#allocation20 + $0x790] sm:$0xff]
    %v2302 = vld [vmem:[#allocation20 + $0x798] sm:$0xff]
    %v2303 = vld [vmem:[#allocation20 + $0x7a0] sm:$0xff]
    %v2304 = vld [vmem:[#allocation20 + $0x7a8] sm:$0xff]
    %v2305 = vld [vmem:[#allocation20 + $0x7b0] sm:$0xff]
    %v2306 = vld [vmem:[#allocation20 + $0x7b8] sm:$0xff]
    %v2307 = vld [vmem:[#allocation20 + $0x7c0] sm:$0xff]
    %v2308 = vld [vmem:[#allocation20 + $0x7c8] sm:$0xff]
    %v2309 = vld [vmem:[#allocation20 + $0x7d0] sm:$0xff]
    %v2310 = vld [vmem:[#allocation20 + $0x7d8] sm:$0xff]
    %v2311 = vld [vmem:[#allocation20 + $0x7e0] sm:$0xff]
    %v2312 = vld [vmem:[#allocation20 + $0x7e8] sm:$0xff]
    %v2313 = vld [vmem:[#allocation20 + $0x7f0] sm:$0xff]
    %v2314 = vld [vmem:[#allocation20 + $0x7f8] sm:$0xff]
    %v2315 = vpack.c.bf16 %v2055, %v2055
    %v2316 = vpack.c.bf16 %v2056, %v2056
    %v2317 = vpack.c.bf16 %v2057, %v2057
    %v2318 = vpack.c.bf16 %v2058, %v2058
    %v2319 = vld [vmem:[#allocation22] sm:$0xff]
    %v2321 = vlaneseq
    %v2322 = vshrl.u32 %v2321, 7
    %v2323 = vsub.s32 0, %v2322
    %v2324 = vrot.slane %v2319, %v2323
    %v2325 = vlaneseq
    %v2326 = vshrl.u32 %v2325, 7
    %v2327 = vsub.s32 1, %v2326
    %v2328 = vrot.slane %v2319, %v2327
    %v2329 = vlaneseq
    %v2330 = vshrl.u32 %v2329, 7
    %v2331 = vsub.s32 2, %v2330
    %v2332 = vrot.slane %v2319, %v2331
    %v2333 = vlaneseq
    %v2334 = vshrl.u32 %v2333, 7
    %v2335 = vsub.s32 3, %v2334
    %v2336 = vrot.slane %v2319, %v2335
    %v2337 = vlaneseq
    %v2338 = vshrl.u32 %v2337, 7
    %v2339 = vsub.s32 4, %v2338
    %v2340 = vrot.slane %v2319, %v2339
    %v2341 = vlaneseq
    %v2342 = vshrl.u32 %v2341, 7
    %v2343 = vsub.s32 5, %v2342
    %v2344 = vrot.slane %v2319, %v2343
    %v2345 = vlaneseq
    %v2346 = vshrl.u32 %v2345, 7
    %v2347 = vsub.s32 6, %v2346
    %v2348 = vrot.slane %v2319, %v2347
    %v2349 = vlaneseq
    %v2350 = vshrl.u32 %v2349, 7
    %v2351 = vsub.s32 7, %v2350
    %v2352 = vrot.slane %v2319, %v2351
    %v2617 = vunpack.c.l.b16 %v2059
    %v2618 = vunpack.c.h.b16 %v2059
    %v2619 = vunpack.c.l.b16 %v2060
    %v2620 = vunpack.c.h.b16 %v2060
    %v2621 = vunpack.c.l.b16 %v2061
    %v2622 = vunpack.c.h.b16 %v2061
    %v2623 = vunpack.c.l.b16 %v2062
    %v2624 = vunpack.c.h.b16 %v2062
    %v2625 = vunpack.c.l.b16 %v2063
    %v2626 = vunpack.c.h.b16 %v2063
    %v2627 = vunpack.c.l.b16 %v2064
    %v2628 = vunpack.c.h.b16 %v2064
    %v2629 = vunpack.c.l.b16 %v2065
    %v2630 = vunpack.c.h.b16 %v2065
    %v2631 = vunpack.c.l.b16 %v2066
    %v2632 = vunpack.c.h.b16 %v2066
    %v2633 = vunpack.c.l.b16 %v2067
    %v2634 = vunpack.c.h.b16 %v2067
    %v2635 = vunpack.c.l.b16 %v2068
    %v2636 = vunpack.c.h.b16 %v2068
    %v2637 = vunpack.c.l.b16 %v2069
    %v2638 = vunpack.c.h.b16 %v2069
    %v2639 = vunpack.c.l.b16 %v2070
    %v2640 = vunpack.c.h.b16 %v2070
    %v2641 = vunpack.c.l.b16 %v2071
    %v2642 = vunpack.c.h.b16 %v2071
    %v2643 = vunpack.c.l.b16 %v2072
    %v2644 = vunpack.c.h.b16 %v2072
    %v2645 = vunpack.c.l.b16 %v2073
    %v2646 = vunpack.c.h.b16 %v2073
    %v2647 = vunpack.c.l.b16 %v2074
    %v2648 = vunpack.c.h.b16 %v2074
    %v2649 = vunpack.c.l.b16 %v2075
    %v2650 = vunpack.c.h.b16 %v2075
    %v2651 = vunpack.c.l.b16 %v2076
    %v2652 = vunpack.c.h.b16 %v2076
    %v2653 = vunpack.c.l.b16 %v2077
    %v2654 = vunpack.c.h.b16 %v2077
    %v2655 = vunpack.c.l.b16 %v2078
    %v2656 = vunpack.c.h.b16 %v2078
    %v2657 = vunpack.c.l.b16 %v2079
    %v2658 = vunpack.c.h.b16 %v2079
    %v2659 = vunpack.c.l.b16 %v2080
    %v2660 = vunpack.c.h.b16 %v2080
    %v2661 = vunpack.c.l.b16 %v2081
    %v2662 = vunpack.c.h.b16 %v2081
    %v2663 = vunpack.c.l.b16 %v2082
    %v2664 = vunpack.c.h.b16 %v2082
    %v2665 = vunpack.c.l.b16 %v2083
    %v2666 = vunpack.c.h.b16 %v2083
    %v2667 = vunpack.c.l.b16 %v2084
    %v2668 = vunpack.c.h.b16 %v2084
    %v2669 = vunpack.c.l.b16 %v2085
    %v2670 = vunpack.c.h.b16 %v2085
    %v2671 = vunpack.c.l.b16 %v2086
    %v2672 = vunpack.c.h.b16 %v2086
    %v2673 = vunpack.c.l.b16 %v2087
    %v2674 = vunpack.c.h.b16 %v2087
    %v2675 = vunpack.c.l.b16 %v2088
    %v2676 = vunpack.c.h.b16 %v2088
    %v2677 = vunpack.c.l.b16 %v2089
    %v2678 = vunpack.c.h.b16 %v2089
    %v2679 = vunpack.c.l.b16 %v2090
    %v2680 = vunpack.c.h.b16 %v2090
    %v2681 = vunpack.c.l.b16 %v2091
    %v2682 = vunpack.c.h.b16 %v2091
    %v2683 = vunpack.c.l.b16 %v2092
    %v2684 = vunpack.c.h.b16 %v2092
    %v2685 = vunpack.c.l.b16 %v2093
    %v2686 = vunpack.c.h.b16 %v2093
    %v2687 = vunpack.c.l.b16 %v2094
    %v2688 = vunpack.c.h.b16 %v2094
    %v2689 = vunpack.c.l.b16 %v2095
    %v2690 = vunpack.c.h.b16 %v2095
    %v2691 = vunpack.c.l.b16 %v2096
    %v2692 = vunpack.c.h.b16 %v2096
    %v2693 = vunpack.c.l.b16 %v2097
    %v2694 = vunpack.c.h.b16 %v2097
    %v2695 = vunpack.c.l.b16 %v2098
    %v2696 = vunpack.c.h.b16 %v2098
    %v2697 = vunpack.c.l.b16 %v2099
    %v2698 = vunpack.c.h.b16 %v2099
    %v2699 = vunpack.c.l.b16 %v2100
    %v2700 = vunpack.c.h.b16 %v2100
    %v2701 = vunpack.c.l.b16 %v2101
    %v2702 = vunpack.c.h.b16 %v2101
    %v2703 = vunpack.c.l.b16 %v2102
    %v2704 = vunpack.c.h.b16 %v2102
    %v2705 = vunpack.c.l.b16 %v2103
    %v2706 = vunpack.c.h.b16 %v2103
    %v2707 = vunpack.c.l.b16 %v2104
    %v2708 = vunpack.c.h.b16 %v2104
    %v2709 = vunpack.c.l.b16 %v2105
    %v2710 = vunpack.c.h.b16 %v2105
    %v2711 = vunpack.c.l.b16 %v2106
    %v2712 = vunpack.c.h.b16 %v2106
    %v2713 = vunpack.c.l.b16 %v2107
    %v2714 = vunpack.c.h.b16 %v2107
    %v2715 = vunpack.c.l.b16 %v2108
    %v2716 = vunpack.c.h.b16 %v2108
    %v2717 = vunpack.c.l.b16 %v2109
    %v2718 = vunpack.c.h.b16 %v2109
    %v2719 = vunpack.c.l.b16 %v2110
    %v2720 = vunpack.c.h.b16 %v2110
    %v2721 = vunpack.c.l.b16 %v2111
    %v2722 = vunpack.c.h.b16 %v2111
    %v2723 = vunpack.c.l.b16 %v2112
    %v2724 = vunpack.c.h.b16 %v2112
    %v2725 = vunpack.c.l.b16 %v2113
    %v2726 = vunpack.c.h.b16 %v2113
    %v2727 = vunpack.c.l.b16 %v2114
    %v2728 = vunpack.c.h.b16 %v2114
    %v2729 = vunpack.c.l.b16 %v2115
    %v2730 = vunpack.c.h.b16 %v2115
    %v2731 = vunpack.c.l.b16 %v2116
    %v2732 = vunpack.c.h.b16 %v2116
    %v2733 = vunpack.c.l.b16 %v2117
    %v2734 = vunpack.c.h.b16 %v2117
    %v2735 = vunpack.c.l.b16 %v2118
    %v2736 = vunpack.c.h.b16 %v2118
    %v2737 = vunpack.c.l.b16 %v2119
    %v2738 = vunpack.c.h.b16 %v2119
    %v2739 = vunpack.c.l.b16 %v2120
    %v2740 = vunpack.c.h.b16 %v2120
    %v2741 = vunpack.c.l.b16 %v2121
    %v2742 = vunpack.c.h.b16 %v2121
    %v2743 = vunpack.c.l.b16 %v2122
    %v2744 = vunpack.c.h.b16 %v2122
    %v2745 = vunpack.c.l.b16 %v2123
    %v2746 = vunpack.c.h.b16 %v2123
    %v2747 = vunpack.c.l.b16 %v2124
    %v2748 = vunpack.c.h.b16 %v2124
    %v2749 = vunpack.c.l.b16 %v2125
    %v2750 = vunpack.c.h.b16 %v2125
    %v2751 = vunpack.c.l.b16 %v2126
    %v2752 = vunpack.c.h.b16 %v2126
    %v2753 = vunpack.c.l.b16 %v2127
    %v2754 = vunpack.c.h.b16 %v2127
    %v2755 = vunpack.c.l.b16 %v2128
    %v2756 = vunpack.c.h.b16 %v2128
    %v2757 = vunpack.c.l.b16 %v2129
    %v2758 = vunpack.c.h.b16 %v2129
    %v2759 = vunpack.c.l.b16 %v2130
    %v2760 = vunpack.c.h.b16 %v2130
    %v2761 = vunpack.c.l.b16 %v2131
    %v2762 = vunpack.c.h.b16 %v2131
    %v2763 = vunpack.c.l.b16 %v2132
    %v2764 = vunpack.c.h.b16 %v2132
    %v2765 = vunpack.c.l.b16 %v2133
    %v2766 = vunpack.c.h.b16 %v2133
    %v2767 = vunpack.c.l.b16 %v2134
    %v2768 = vunpack.c.h.b16 %v2134
    %v2769 = vunpack.c.l.b16 %v2135
    %v2770 = vunpack.c.h.b16 %v2135
    %v2771 = vunpack.c.l.b16 %v2136
    %v2772 = vunpack.c.h.b16 %v2136
    %v2773 = vunpack.c.l.b16 %v2137
    %v2774 = vunpack.c.h.b16 %v2137
    %v2775 = vunpack.c.l.b16 %v2138
    %v2776 = vunpack.c.h.b16 %v2138
    %v2777 = vunpack.c.l.b16 %v2139
    %v2778 = vunpack.c.h.b16 %v2139
    %v2779 = vunpack.c.l.b16 %v2140
    %v2780 = vunpack.c.h.b16 %v2140
    %v2781 = vunpack.c.l.b16 %v2141
    %v2782 = vunpack.c.h.b16 %v2141
    %v2783 = vunpack.c.l.b16 %v2142
    %v2784 = vunpack.c.h.b16 %v2142
    %v2785 = vunpack.c.l.b16 %v2143
    %v2786 = vunpack.c.h.b16 %v2143
    %v2787 = vunpack.c.l.b16 %v2144
    %v2788 = vunpack.c.h.b16 %v2144
    %v2789 = vunpack.c.l.b16 %v2145
    %v2790 = vunpack.c.h.b16 %v2145
    %v2791 = vunpack.c.l.b16 %v2146
    %v2792 = vunpack.c.h.b16 %v2146
    %v2793 = vunpack.c.l.b16 %v2147
    %v2794 = vunpack.c.h.b16 %v2147
    %v2795 = vunpack.c.l.b16 %v2148
    %v2796 = vunpack.c.h.b16 %v2148
    %v2797 = vunpack.c.l.b16 %v2149
    %v2798 = vunpack.c.h.b16 %v2149
    %v2799 = vunpack.c.l.b16 %v2150
    %v2800 = vunpack.c.h.b16 %v2150
    %v2801 = vunpack.c.l.b16 %v2151
    %v2802 = vunpack.c.h.b16 %v2151
    %v2803 = vunpack.c.l.b16 %v2152
    %v2804 = vunpack.c.h.b16 %v2152
    %v2805 = vunpack.c.l.b16 %v2153
    %v2806 = vunpack.c.h.b16 %v2153
    %v2807 = vunpack.c.l.b16 %v2154
    %v2808 = vunpack.c.h.b16 %v2154
    %v2809 = vunpack.c.l.b16 %v2155
    %v2810 = vunpack.c.h.b16 %v2155
    %v2811 = vunpack.c.l.b16 %v2156
    %v2812 = vunpack.c.h.b16 %v2156
    %v2813 = vunpack.c.l.b16 %v2157
    %v2814 = vunpack.c.h.b16 %v2157
    %v2815 = vunpack.c.l.b16 %v2158
    %v2816 = vunpack.c.h.b16 %v2158
    %v2817 = vunpack.c.l.b16 %v2159
    %v2818 = vunpack.c.h.b16 %v2159
    %v2819 = vunpack.c.l.b16 %v2160
    %v2820 = vunpack.c.h.b16 %v2160
    %v2821 = vunpack.c.l.b16 %v2161
    %v2822 = vunpack.c.h.b16 %v2161
    %v2823 = vunpack.c.l.b16 %v2162
    %v2824 = vunpack.c.h.b16 %v2162
    %v2825 = vunpack.c.l.b16 %v2163
    %v2826 = vunpack.c.h.b16 %v2163
    %v2827 = vunpack.c.l.b16 %v2164
    %v2828 = vunpack.c.h.b16 %v2164
    %v2829 = vunpack.c.l.b16 %v2165
    %v2830 = vunpack.c.h.b16 %v2165
    %v2831 = vunpack.c.l.b16 %v2166
    %v2832 = vunpack.c.h.b16 %v2166
    %v2833 = vunpack.c.l.b16 %v2167
    %v2834 = vunpack.c.h.b16 %v2167
    %v2835 = vunpack.c.l.b16 %v2168
    %v2836 = vunpack.c.h.b16 %v2168
    %v2837 = vunpack.c.l.b16 %v2169
    %v2838 = vunpack.c.h.b16 %v2169
    %v2839 = vunpack.c.l.b16 %v2170
    %v2840 = vunpack.c.h.b16 %v2170
    %v2841 = vunpack.c.l.b16 %v2171
    %v2842 = vunpack.c.h.b16 %v2171
    %v2843 = vunpack.c.l.b16 %v2172
    %v2844 = vunpack.c.h.b16 %v2172
    %v2845 = vunpack.c.l.b16 %v2173
    %v2846 = vunpack.c.h.b16 %v2173
    %v2847 = vunpack.c.l.b16 %v2174
    %v2848 = vunpack.c.h.b16 %v2174
    %v2849 = vunpack.c.l.b16 %v2175
    %v2850 = vunpack.c.h.b16 %v2175
    %v2851 = vunpack.c.l.b16 %v2176
    %v2852 = vunpack.c.h.b16 %v2176
    %v2853 = vunpack.c.l.b16 %v2177
    %v2854 = vunpack.c.h.b16 %v2177
    %v2855 = vunpack.c.l.b16 %v2178
    %v2856 = vunpack.c.h.b16 %v2178
    %v2857 = vunpack.c.l.b16 %v2179
    %v2858 = vunpack.c.h.b16 %v2179
    %v2859 = vunpack.c.l.b16 %v2180
    %v2860 = vunpack.c.h.b16 %v2180
    %v2861 = vunpack.c.l.b16 %v2181
    %v2862 = vunpack.c.h.b16 %v2181
    %v2863 = vunpack.c.l.b16 %v2182
    %v2864 = vunpack.c.h.b16 %v2182
    %v2865 = vunpack.c.l.b16 %v2183
    %v2866 = vunpack.c.h.b16 %v2183
    %v2867 = vunpack.c.l.b16 %v2184
    %v2868 = vunpack.c.h.b16 %v2184
    %v2869 = vunpack.c.l.b16 %v2185
    %v2870 = vunpack.c.h.b16 %v2185
    %v2871 = vunpack.c.l.b16 %v2186
    %v2872 = vunpack.c.h.b16 %v2186
    %v2873 = vunpack.c.l.b16 %v2187
    %v2874 = vunpack.c.h.b16 %v2187
    %v2875 = vunpack.c.l.b16 %v2188
    %v2876 = vunpack.c.h.b16 %v2188
    %v2877 = vunpack.c.l.b16 %v2189
    %v2878 = vunpack.c.h.b16 %v2189
    %v2879 = vunpack.c.l.b16 %v2190
    %v2880 = vunpack.c.h.b16 %v2190
    %v2881 = vunpack.c.l.b16 %v2191
    %v2882 = vunpack.c.h.b16 %v2191
    %v2883 = vunpack.c.l.b16 %v2192
    %v2884 = vunpack.c.h.b16 %v2192
    %v2885 = vunpack.c.l.b16 %v2193
    %v2886 = vunpack.c.h.b16 %v2193
    %v2887 = vunpack.c.l.b16 %v2194
    %v2888 = vunpack.c.h.b16 %v2194
    %v2889 = vunpack.c.l.b16 %v2195
    %v2890 = vunpack.c.h.b16 %v2195
    %v2891 = vunpack.c.l.b16 %v2196
    %v2892 = vunpack.c.h.b16 %v2196
    %v2893 = vunpack.c.l.b16 %v2197
    %v2894 = vunpack.c.h.b16 %v2197
    %v2895 = vunpack.c.l.b16 %v2198
    %v2896 = vunpack.c.h.b16 %v2198
    %v2897 = vunpack.c.l.b16 %v2199
    %v2898 = vunpack.c.h.b16 %v2199
    %v2899 = vunpack.c.l.b16 %v2200
    %v2900 = vunpack.c.h.b16 %v2200
    %v2901 = vunpack.c.l.b16 %v2201
    %v2902 = vunpack.c.h.b16 %v2201
    %v2903 = vunpack.c.l.b16 %v2202
    %v2904 = vunpack.c.h.b16 %v2202
    %v2905 = vunpack.c.l.b16 %v2203
    %v2906 = vunpack.c.h.b16 %v2203
    %v2907 = vunpack.c.l.b16 %v2204
    %v2908 = vunpack.c.h.b16 %v2204
    %v2909 = vunpack.c.l.b16 %v2205
    %v2910 = vunpack.c.h.b16 %v2205
    %v2911 = vunpack.c.l.b16 %v2206
    %v2912 = vunpack.c.h.b16 %v2206
    %v2913 = vunpack.c.l.b16 %v2207
    %v2914 = vunpack.c.h.b16 %v2207
    %v2915 = vunpack.c.l.b16 %v2208
    %v2916 = vunpack.c.h.b16 %v2208
    %v2917 = vunpack.c.l.b16 %v2209
    %v2918 = vunpack.c.h.b16 %v2209
    %v2919 = vunpack.c.l.b16 %v2210
    %v2920 = vunpack.c.h.b16 %v2210
    %v2921 = vunpack.c.l.b16 %v2211
    %v2922 = vunpack.c.h.b16 %v2211
    %v2923 = vunpack.c.l.b16 %v2212
    %v2924 = vunpack.c.h.b16 %v2212
    %v2925 = vunpack.c.l.b16 %v2213
    %v2926 = vunpack.c.h.b16 %v2213
    %v2927 = vunpack.c.l.b16 %v2214
    %v2928 = vunpack.c.h.b16 %v2214
    %v2929 = vunpack.c.l.b16 %v2215
    %v2930 = vunpack.c.h.b16 %v2215
    %v2931 = vunpack.c.l.b16 %v2216
    %v2932 = vunpack.c.h.b16 %v2216
    %v2933 = vunpack.c.l.b16 %v2217
    %v2934 = vunpack.c.h.b16 %v2217
    %v2935 = vunpack.c.l.b16 %v2218
    %v2936 = vunpack.c.h.b16 %v2218
    %v2937 = vunpack.c.l.b16 %v2219
    %v2938 = vunpack.c.h.b16 %v2219
    %v2939 = vunpack.c.l.b16 %v2220
    %v2940 = vunpack.c.h.b16 %v2220
    %v2941 = vunpack.c.l.b16 %v2221
    %v2942 = vunpack.c.h.b16 %v2221
    %v2943 = vunpack.c.l.b16 %v2222
    %v2944 = vunpack.c.h.b16 %v2222
    %v2945 = vunpack.c.l.b16 %v2223
    %v2946 = vunpack.c.h.b16 %v2223
    %v2947 = vunpack.c.l.b16 %v2224
    %v2948 = vunpack.c.h.b16 %v2224
    %v2949 = vunpack.c.l.b16 %v2225
    %v2950 = vunpack.c.h.b16 %v2225
    %v2951 = vunpack.c.l.b16 %v2226
    %v2952 = vunpack.c.h.b16 %v2226
    %v2953 = vunpack.c.l.b16 %v2227
    %v2954 = vunpack.c.h.b16 %v2227
    %v2955 = vunpack.c.l.b16 %v2228
    %v2956 = vunpack.c.h.b16 %v2228
    %v2957 = vunpack.c.l.b16 %v2229
    %v2958 = vunpack.c.h.b16 %v2229
    %v2959 = vunpack.c.l.b16 %v2230
    %v2960 = vunpack.c.h.b16 %v2230
    %v2961 = vunpack.c.l.b16 %v2231
    %v2962 = vunpack.c.h.b16 %v2231
    %v2963 = vunpack.c.l.b16 %v2232
    %v2964 = vunpack.c.h.b16 %v2232
    %v2965 = vunpack.c.l.b16 %v2233
    %v2966 = vunpack.c.h.b16 %v2233
    %v2967 = vunpack.c.l.b16 %v2234
    %v2968 = vunpack.c.h.b16 %v2234
    %v2969 = vunpack.c.l.b16 %v2235
    %v2970 = vunpack.c.h.b16 %v2235
    %v2971 = vunpack.c.l.b16 %v2236
    %v2972 = vunpack.c.h.b16 %v2236
    %v2973 = vunpack.c.l.b16 %v2237
    %v2974 = vunpack.c.h.b16 %v2237
    %v2975 = vunpack.c.l.b16 %v2238
    %v2976 = vunpack.c.h.b16 %v2238
    %v2977 = vunpack.c.l.b16 %v2239
    %v2978 = vunpack.c.h.b16 %v2239
    %v2979 = vunpack.c.l.b16 %v2240
    %v2980 = vunpack.c.h.b16 %v2240
    %v2981 = vunpack.c.l.b16 %v2241
    %v2982 = vunpack.c.h.b16 %v2241
    %v2983 = vunpack.c.l.b16 %v2242
    %v2984 = vunpack.c.h.b16 %v2242
    %v2985 = vunpack.c.l.b16 %v2243
    %v2986 = vunpack.c.h.b16 %v2243
    %v2987 = vunpack.c.l.b16 %v2244
    %v2988 = vunpack.c.h.b16 %v2244
    %v2989 = vunpack.c.l.b16 %v2245
    %v2990 = vunpack.c.h.b16 %v2245
    %v2991 = vunpack.c.l.b16 %v2246
    %v2992 = vunpack.c.h.b16 %v2246
    %v2993 = vunpack.c.l.b16 %v2247
    %v2994 = vunpack.c.h.b16 %v2247
    %v2995 = vunpack.c.l.b16 %v2248
    %v2996 = vunpack.c.h.b16 %v2248
    %v2997 = vunpack.c.l.b16 %v2249
    %v2998 = vunpack.c.h.b16 %v2249
    %v2999 = vunpack.c.l.b16 %v2250
    %v3000 = vunpack.c.h.b16 %v2250
    %v3001 = vunpack.c.l.b16 %v2251
    %v3002 = vunpack.c.h.b16 %v2251
    %v3003 = vunpack.c.l.b16 %v2252
    %v3004 = vunpack.c.h.b16 %v2252
    %v3005 = vunpack.c.l.b16 %v2253
    %v3006 = vunpack.c.h.b16 %v2253
    %v3007 = vunpack.c.l.b16 %v2254
    %v3008 = vunpack.c.h.b16 %v2254
    %v3009 = vunpack.c.l.b16 %v2255
    %v3010 = vunpack.c.h.b16 %v2255
    %v3011 = vunpack.c.l.b16 %v2256
    %v3012 = vunpack.c.h.b16 %v2256
    %v3013 = vunpack.c.l.b16 %v2257
    %v3014 = vunpack.c.h.b16 %v2257
    %v3015 = vunpack.c.l.b16 %v2258
    %v3016 = vunpack.c.h.b16 %v2258
    %v3017 = vunpack.c.l.b16 %v2259
    %v3018 = vunpack.c.h.b16 %v2259
    %v3019 = vunpack.c.l.b16 %v2260
    %v3020 = vunpack.c.h.b16 %v2260
    %v3021 = vunpack.c.l.b16 %v2261
    %v3022 = vunpack.c.h.b16 %v2261
    %v3023 = vunpack.c.l.b16 %v2262
    %v3024 = vunpack.c.h.b16 %v2262
    %v3025 = vunpack.c.l.b16 %v2263
    %v3026 = vunpack.c.h.b16 %v2263
    %v3027 = vunpack.c.l.b16 %v2264
    %v3028 = vunpack.c.h.b16 %v2264
    %v3029 = vunpack.c.l.b16 %v2265
    %v3030 = vunpack.c.h.b16 %v2265
    %v3031 = vunpack.c.l.b16 %v2266
    %v3032 = vunpack.c.h.b16 %v2266
    %v3033 = vunpack.c.l.b16 %v2267
    %v3034 = vunpack.c.h.b16 %v2267
    %v3035 = vunpack.c.l.b16 %v2268
    %v3036 = vunpack.c.h.b16 %v2268
    %v3037 = vunpack.c.l.b16 %v2269
    %v3038 = vunpack.c.h.b16 %v2269
    %v3039 = vunpack.c.l.b16 %v2270
    %v3040 = vunpack.c.h.b16 %v2270
    %v3041 = vunpack.c.l.b16 %v2271
    %v3042 = vunpack.c.h.b16 %v2271
    %v3043 = vunpack.c.l.b16 %v2272
    %v3044 = vunpack.c.h.b16 %v2272
    %v3045 = vunpack.c.l.b16 %v2273
    %v3046 = vunpack.c.h.b16 %v2273
    %v3047 = vunpack.c.l.b16 %v2274
    %v3048 = vunpack.c.h.b16 %v2274
    %v3049 = vunpack.c.l.b16 %v2275
    %v3050 = vunpack.c.h.b16 %v2275
    %v3051 = vunpack.c.l.b16 %v2276
    %v3052 = vunpack.c.h.b16 %v2276
    %v3053 = vunpack.c.l.b16 %v2277
    %v3054 = vunpack.c.h.b16 %v2277
    %v3055 = vunpack.c.l.b16 %v2278
    %v3056 = vunpack.c.h.b16 %v2278
    %v3057 = vunpack.c.l.b16 %v2279
    %v3058 = vunpack.c.h.b16 %v2279
    %v3059 = vunpack.c.l.b16 %v2280
    %v3060 = vunpack.c.h.b16 %v2280
    %v3061 = vunpack.c.l.b16 %v2281
    %v3062 = vunpack.c.h.b16 %v2281
    %v3063 = vunpack.c.l.b16 %v2282
    %v3064 = vunpack.c.h.b16 %v2282
    %v3065 = vunpack.c.l.b16 %v2283
    %v3066 = vunpack.c.h.b16 %v2283
    %v3067 = vunpack.c.l.b16 %v2284
    %v3068 = vunpack.c.h.b16 %v2284
    %v3069 = vunpack.c.l.b16 %v2285
    %v3070 = vunpack.c.h.b16 %v2285
    %v3071 = vunpack.c.l.b16 %v2286
    %v3072 = vunpack.c.h.b16 %v2286
    %v3073 = vunpack.c.l.b16 %v2287
    %v3074 = vunpack.c.h.b16 %v2287
    %v3075 = vunpack.c.l.b16 %v2288
    %v3076 = vunpack.c.h.b16 %v2288
    %v3077 = vunpack.c.l.b16 %v2289
    %v3078 = vunpack.c.h.b16 %v2289
    %v3079 = vunpack.c.l.b16 %v2290
    %v3080 = vunpack.c.h.b16 %v2290
    %v3081 = vunpack.c.l.b16 %v2291
    %v3082 = vunpack.c.h.b16 %v2291
    %v3083 = vunpack.c.l.b16 %v2292
    %v3084 = vunpack.c.h.b16 %v2292
    %v3085 = vunpack.c.l.b16 %v2293
    %v3086 = vunpack.c.h.b16 %v2293
    %v3087 = vunpack.c.l.b16 %v2294
    %v3088 = vunpack.c.h.b16 %v2294
    %v3089 = vunpack.c.l.b16 %v2295
    %v3090 = vunpack.c.h.b16 %v2295
    %v3091 = vunpack.c.l.b16 %v2296
    %v3092 = vunpack.c.h.b16 %v2296
    %v3093 = vunpack.c.l.b16 %v2297
    %v3094 = vunpack.c.h.b16 %v2297
    %v3095 = vunpack.c.l.b16 %v2298
    %v3096 = vunpack.c.h.b16 %v2298
    %v3097 = vunpack.c.l.b16 %v2299
    %v3098 = vunpack.c.h.b16 %v2299
    %v3099 = vunpack.c.l.b16 %v2300
    %v3100 = vunpack.c.h.b16 %v2300
    %v3101 = vunpack.c.l.b16 %v2301
    %v3102 = vunpack.c.h.b16 %v2301
    %v3103 = vunpack.c.l.b16 %v2302
    %v3104 = vunpack.c.h.b16 %v2302
    %v3105 = vunpack.c.l.b16 %v2303
    %v3106 = vunpack.c.h.b16 %v2303
    %v3107 = vunpack.c.l.b16 %v2304
    %v3108 = vunpack.c.h.b16 %v2304
    %v3109 = vunpack.c.l.b16 %v2305
    %v3110 = vunpack.c.h.b16 %v2305
    %v3111 = vunpack.c.l.b16 %v2306
    %v3112 = vunpack.c.h.b16 %v2306
    %v3113 = vunpack.c.l.b16 %v2307
    %v3114 = vunpack.c.h.b16 %v2307
    %v3115 = vunpack.c.l.b16 %v2308
    %v3116 = vunpack.c.h.b16 %v2308
    %v3117 = vunpack.c.l.b16 %v2309
    %v3118 = vunpack.c.h.b16 %v2309
    %v3119 = vunpack.c.l.b16 %v2310
    %v3120 = vunpack.c.h.b16 %v2310
    %v3121 = vunpack.c.l.b16 %v2311
    %v3122 = vunpack.c.h.b16 %v2311
    %v3123 = vunpack.c.l.b16 %v2312
    %v3124 = vunpack.c.h.b16 %v2312
    %v3125 = vunpack.c.l.b16 %v2313
    %v3126 = vunpack.c.h.b16 %v2313
    %v3127 = vunpack.c.l.b16 %v2314
    %v3128 = vunpack.c.h.b16 %v2314
    %v3129 = vpack.c.b16 %v2625, %v2617
    %v3130 = vpack.c.b16 %v2626, %v2618
    %v3131 = vpack.c.b16 %v2627, %v2619
    %v3132 = vpack.c.b16 %v2628, %v2620
    %v3133 = vpack.c.b16 %v2629, %v2621
    %v3134 = vpack.c.b16 %v2630, %v2622
    %v3135 = vpack.c.b16 %v2631, %v2623
    %v3136 = vpack.c.b16 %v2632, %v2624
    %v3137 = vpack.c.b16 %v2641, %v2633
    %v3138 = vpack.c.b16 %v2642, %v2634
    %v3139 = vpack.c.b16 %v2643, %v2635
    %v3140 = vpack.c.b16 %v2644, %v2636
    %v3141 = vpack.c.b16 %v2645, %v2637
    %v3142 = vpack.c.b16 %v2646, %v2638
    %v3143 = vpack.c.b16 %v2647, %v2639
    %v3144 = vpack.c.b16 %v2648, %v2640
    %v3145 = vpack.c.b16 %v2657, %v2649
    %v3146 = vpack.c.b16 %v2658, %v2650
    %v3147 = vpack.c.b16 %v2659, %v2651
    %v3148 = vpack.c.b16 %v2660, %v2652
    %v3149 = vpack.c.b16 %v2661, %v2653
    %v3150 = vpack.c.b16 %v2662, %v2654
    %v3151 = vpack.c.b16 %v2663, %v2655
    %v3152 = vpack.c.b16 %v2664, %v2656
    %v3153 = vpack.c.b16 %v2673, %v2665
    %v3154 = vpack.c.b16 %v2674, %v2666
    %v3155 = vpack.c.b16 %v2675, %v2667
    %v3156 = vpack.c.b16 %v2676, %v2668
    %v3157 = vpack.c.b16 %v2677, %v2669
    %v3158 = vpack.c.b16 %v2678, %v2670
    %v3159 = vpack.c.b16 %v2679, %v2671
    %v3160 = vpack.c.b16 %v2680, %v2672
    %v3161 = vpack.c.b16 %v2689, %v2681
    %v3162 = vpack.c.b16 %v2690, %v2682
    %v3163 = vpack.c.b16 %v2691, %v2683
    %v3164 = vpack.c.b16 %v2692, %v2684
    %v3165 = vpack.c.b16 %v2693, %v2685
    %v3166 = vpack.c.b16 %v2694, %v2686
    %v3167 = vpack.c.b16 %v2695, %v2687
    %v3168 = vpack.c.b16 %v2696, %v2688
    %v3169 = vpack.c.b16 %v2705, %v2697
    %v3170 = vpack.c.b16 %v2706, %v2698
    %v3171 = vpack.c.b16 %v2707, %v2699
    %v3172 = vpack.c.b16 %v2708, %v2700
    %v3173 = vpack.c.b16 %v2709, %v2701
    %v3174 = vpack.c.b16 %v2710, %v2702
    %v3175 = vpack.c.b16 %v2711, %v2703
    %v3176 = vpack.c.b16 %v2712, %v2704
    %v3177 = vpack.c.b16 %v2721, %v2713
    %v3178 = vpack.c.b16 %v2722, %v2714
    %v3179 = vpack.c.b16 %v2723, %v2715
    %v3180 = vpack.c.b16 %v2724, %v2716
    %v3181 = vpack.c.b16 %v2725, %v2717
    %v3182 = vpack.c.b16 %v2726, %v2718
    %v3183 = vpack.c.b16 %v2727, %v2719
    %v3184 = vpack.c.b16 %v2728, %v2720
    %v3185 = vpack.c.b16 %v2737, %v2729
    %v3186 = vpack.c.b16 %v2738, %v2730
    %v3187 = vpack.c.b16 %v2739, %v2731
    %v3188 = vpack.c.b16 %v2740, %v2732
    %v3189 = vpack.c.b16 %v2741, %v2733
    %v3190 = vpack.c.b16 %v2742, %v2734
    %v3191 = vpack.c.b16 %v2743, %v2735
    %v3192 = vpack.c.b16 %v2744, %v2736
    %v3193 = vpack.c.b16 %v2753, %v2745
    %v3194 = vpack.c.b16 %v2754, %v2746
    %v3195 = vpack.c.b16 %v2755, %v2747
    %v3196 = vpack.c.b16 %v2756, %v2748
    %v3197 = vpack.c.b16 %v2757, %v2749
    %v3198 = vpack.c.b16 %v2758, %v2750
    %v3199 = vpack.c.b16 %v2759, %v2751
    %v3200 = vpack.c.b16 %v2760, %v2752
    %v3201 = vpack.c.b16 %v2769, %v2761
    %v3202 = vpack.c.b16 %v2770, %v2762
    %v3203 = vpack.c.b16 %v2771, %v2763
    %v3204 = vpack.c.b16 %v2772, %v2764
    %v3205 = vpack.c.b16 %v2773, %v2765
    %v3206 = vpack.c.b16 %v2774, %v2766
    %v3207 = vpack.c.b16 %v2775, %v2767
    %v3208 = vpack.c.b16 %v2776, %v2768
    %v3209 = vpack.c.b16 %v2785, %v2777
    %v3210 = vpack.c.b16 %v2786, %v2778
    %v3211 = vpack.c.b16 %v2787, %v2779
    %v3212 = vpack.c.b16 %v2788, %v2780
    %v3213 = vpack.c.b16 %v2789, %v2781
    %v3214 = vpack.c.b16 %v2790, %v2782
    %v3215 = vpack.c.b16 %v2791, %v2783
    %v3216 = vpack.c.b16 %v2792, %v2784
    %v3217 = vpack.c.b16 %v2801, %v2793
    %v3218 = vpack.c.b16 %v2802, %v2794
    %v3219 = vpack.c.b16 %v2803, %v2795
    %v3220 = vpack.c.b16 %v2804, %v2796
    %v3221 = vpack.c.b16 %v2805, %v2797
    %v3222 = vpack.c.b16 %v2806, %v2798
    %v3223 = vpack.c.b16 %v2807, %v2799
    %v3224 = vpack.c.b16 %v2808, %v2800
    %v3225 = vpack.c.b16 %v2817, %v2809
    %v3226 = vpack.c.b16 %v2818, %v2810
    %v3227 = vpack.c.b16 %v2819, %v2811
    %v3228 = vpack.c.b16 %v2820, %v2812
    %v3229 = vpack.c.b16 %v2821, %v2813
    %v3230 = vpack.c.b16 %v2822, %v2814
    %v3231 = vpack.c.b16 %v2823, %v2815
    %v3232 = vpack.c.b16 %v2824, %v2816
    %v3233 = vpack.c.b16 %v2833, %v2825
    %v3234 = vpack.c.b16 %v2834, %v2826
    %v3235 = vpack.c.b16 %v2835, %v2827
    %v3236 = vpack.c.b16 %v2836, %v2828
    %v3237 = vpack.c.b16 %v2837, %v2829
    %v3238 = vpack.c.b16 %v2838, %v2830
    %v3239 = vpack.c.b16 %v2839, %v2831
    %v3240 = vpack.c.b16 %v2840, %v2832
    %v3241 = vpack.c.b16 %v2849, %v2841
    %v3242 = vpack.c.b16 %v2850, %v2842
    %v3243 = vpack.c.b16 %v2851, %v2843
    %v3244 = vpack.c.b16 %v2852, %v2844
    %v3245 = vpack.c.b16 %v2853, %v2845
    %v3246 = vpack.c.b16 %v2854, %v2846
    %v3247 = vpack.c.b16 %v2855, %v2847
    %v3248 = vpack.c.b16 %v2856, %v2848
    %v3249 = vpack.c.b16 %v2865, %v2857
    %v3250 = vpack.c.b16 %v2866, %v2858
    %v3251 = vpack.c.b16 %v2867, %v2859
    %v3252 = vpack.c.b16 %v2868, %v2860
    %v3253 = vpack.c.b16 %v2869, %v2861
    %v3254 = vpack.c.b16 %v2870, %v2862
    %v3255 = vpack.c.b16 %v2871, %v2863
    %v3256 = vpack.c.b16 %v2872, %v2864
    %v3257 = vpack.c.b16 %v2881, %v2873
    %v3258 = vpack.c.b16 %v2882, %v2874
    %v3259 = vpack.c.b16 %v2883, %v2875
    %v3260 = vpack.c.b16 %v2884, %v2876
    %v3261 = vpack.c.b16 %v2885, %v2877
    %v3262 = vpack.c.b16 %v2886, %v2878
    %v3263 = vpack.c.b16 %v2887, %v2879
    %v3264 = vpack.c.b16 %v2888, %v2880
    %v3265 = vpack.c.b16 %v2897, %v2889
    %v3266 = vpack.c.b16 %v2898, %v2890
    %v3267 = vpack.c.b16 %v2899, %v2891
    %v3268 = vpack.c.b16 %v2900, %v2892
    %v3269 = vpack.c.b16 %v2901, %v2893
    %v3270 = vpack.c.b16 %v2902, %v2894
    %v3271 = vpack.c.b16 %v2903, %v2895
    %v3272 = vpack.c.b16 %v2904, %v2896
    %v3273 = vpack.c.b16 %v2913, %v2905
    %v3274 = vpack.c.b16 %v2914, %v2906
    %v3275 = vpack.c.b16 %v2915, %v2907
    %v3276 = vpack.c.b16 %v2916, %v2908
    %v3277 = vpack.c.b16 %v2917, %v2909
    %v3278 = vpack.c.b16 %v2918, %v2910
    %v3279 = vpack.c.b16 %v2919, %v2911
    %v3280 = vpack.c.b16 %v2920, %v2912
    %v3281 = vpack.c.b16 %v2929, %v2921
    %v3282 = vpack.c.b16 %v2930, %v2922
    %v3283 = vpack.c.b16 %v2931, %v2923
    %v3284 = vpack.c.b16 %v2932, %v2924
    %v3285 = vpack.c.b16 %v2933, %v2925
    %v3286 = vpack.c.b16 %v2934, %v2926
    %v3287 = vpack.c.b16 %v2935, %v2927
    %v3288 = vpack.c.b16 %v2936, %v2928
    %v3289 = vpack.c.b16 %v2945, %v2937
    %v3290 = vpack.c.b16 %v2946, %v2938
    %v3291 = vpack.c.b16 %v2947, %v2939
    %v3292 = vpack.c.b16 %v2948, %v2940
    %v3293 = vpack.c.b16 %v2949, %v2941
    %v3294 = vpack.c.b16 %v2950, %v2942
    %v3295 = vpack.c.b16 %v2951, %v2943
    %v3296 = vpack.c.b16 %v2952, %v2944
    %v3297 = vpack.c.b16 %v2961, %v2953
    %v3298 = vpack.c.b16 %v2962, %v2954
    %v3299 = vpack.c.b16 %v2963, %v2955
    %v3300 = vpack.c.b16 %v2964, %v2956
    %v3301 = vpack.c.b16 %v2965, %v2957
    %v3302 = vpack.c.b16 %v2966, %v2958
    %v3303 = vpack.c.b16 %v2967, %v2959
    %v3304 = vpack.c.b16 %v2968, %v2960
    %v3305 = vpack.c.b16 %v2977, %v2969
    %v3306 = vpack.c.b16 %v2978, %v2970
    %v3307 = vpack.c.b16 %v2979, %v2971
    %v3308 = vpack.c.b16 %v2980, %v2972
    %v3309 = vpack.c.b16 %v2981, %v2973
    %v3310 = vpack.c.b16 %v2982, %v2974
    %v3311 = vpack.c.b16 %v2983, %v2975
    %v3312 = vpack.c.b16 %v2984, %v2976
    %v3313 = vpack.c.b16 %v2993, %v2985
    %v3314 = vpack.c.b16 %v2994, %v2986
    %v3315 = vpack.c.b16 %v2995, %v2987
    %v3316 = vpack.c.b16 %v2996, %v2988
    %v3317 = vpack.c.b16 %v2997, %v2989
    %v3318 = vpack.c.b16 %v2998, %v2990
    %v3319 = vpack.c.b16 %v2999, %v2991
    %v3320 = vpack.c.b16 %v3000, %v2992
    %v3321 = vpack.c.b16 %v3009, %v3001
    %v3322 = vpack.c.b16 %v3010, %v3002
    %v3323 = vpack.c.b16 %v3011, %v3003
    %v3324 = vpack.c.b16 %v3012, %v3004
    %v3325 = vpack.c.b16 %v3013, %v3005
    %v3326 = vpack.c.b16 %v3014, %v3006
    %v3327 = vpack.c.b16 %v3015, %v3007
    %v3328 = vpack.c.b16 %v3016, %v3008
    %v3329 = vpack.c.b16 %v3025, %v3017
    %v3330 = vpack.c.b16 %v3026, %v3018
    %v3331 = vpack.c.b16 %v3027, %v3019
    %v3332 = vpack.c.b16 %v3028, %v3020
    %v3333 = vpack.c.b16 %v3029, %v3021
    %v3334 = vpack.c.b16 %v3030, %v3022
    %v3335 = vpack.c.b16 %v3031, %v3023
    %v3336 = vpack.c.b16 %v3032, %v3024
    %v3337 = vpack.c.b16 %v3041, %v3033
    %v3338 = vpack.c.b16 %v3042, %v3034
    %v3339 = vpack.c.b16 %v3043, %v3035
    %v3340 = vpack.c.b16 %v3044, %v3036
    %v3341 = vpack.c.b16 %v3045, %v3037
    %v3342 = vpack.c.b16 %v3046, %v3038
    %v3343 = vpack.c.b16 %v3047, %v3039
    %v3344 = vpack.c.b16 %v3048, %v3040
    %v3345 = vpack.c.b16 %v3057, %v3049
    %v3346 = vpack.c.b16 %v3058, %v3050
    %v3347 = vpack.c.b16 %v3059, %v3051
    %v3348 = vpack.c.b16 %v3060, %v3052
    %v3349 = vpack.c.b16 %v3061, %v3053
    %v3350 = vpack.c.b16 %v3062, %v3054
    %v3351 = vpack.c.b16 %v3063, %v3055
    %v3352 = vpack.c.b16 %v3064, %v3056
    %v3353 = vpack.c.b16 %v3073, %v3065
    %v3354 = vpack.c.b16 %v3074, %v3066
    %v3355 = vpack.c.b16 %v3075, %v3067
    %v3356 = vpack.c.b16 %v3076, %v3068
    %v3357 = vpack.c.b16 %v3077, %v3069
    %v3358 = vpack.c.b16 %v3078, %v3070
    %v3359 = vpack.c.b16 %v3079, %v3071
    %v3360 = vpack.c.b16 %v3080, %v3072
    %v3361 = vpack.c.b16 %v3089, %v3081
    %v3362 = vpack.c.b16 %v3090, %v3082
    %v3363 = vpack.c.b16 %v3091, %v3083
    %v3364 = vpack.c.b16 %v3092, %v3084
    %v3365 = vpack.c.b16 %v3093, %v3085
    %v3366 = vpack.c.b16 %v3094, %v3086
    %v3367 = vpack.c.b16 %v3095, %v3087
    %v3368 = vpack.c.b16 %v3096, %v3088
    %v3369 = vpack.c.b16 %v3105, %v3097
    %v3370 = vpack.c.b16 %v3106, %v3098
    %v3371 = vpack.c.b16 %v3107, %v3099
    %v3372 = vpack.c.b16 %v3108, %v3100
    %v3373 = vpack.c.b16 %v3109, %v3101
    %v3374 = vpack.c.b16 %v3110, %v3102
    %v3375 = vpack.c.b16 %v3111, %v3103
    %v3376 = vpack.c.b16 %v3112, %v3104
    %v3377 = vpack.c.b16 %v3121, %v3113
    %v3378 = vpack.c.b16 %v3122, %v3114
    %v3379 = vpack.c.b16 %v3123, %v3115
    %v3380 = vpack.c.b16 %v3124, %v3116
    %v3381 = vpack.c.b16 %v3125, %v3117
    %v3382 = vpack.c.b16 %v3126, %v3118
    %v3383 = vpack.c.b16 %v3127, %v3119
    %v3384 = vpack.c.b16 %v3128, %v3120
    %3641 = vmatprep.subr.bf16.mxu0 %v3186
    %3642 = vmatpush1.bf16.msra.mxu0 %v3185
    %3643 = vmatprep.subr.bf16.mxu0 %v3178
    %3644 = vmatpush1.bf16.msra.mxu0 %v3177
    %3645 = vmatprep.subr.bf16.mxu0 %v3170
    %3646 = vmatpush1.bf16.msra.mxu0 %v3169
    %3647 = vmatprep.subr.bf16.mxu0 %v3162
    %3648 = vmatpush1.bf16.msra.mxu0 %v3161
    %3649 = vmatprep.subr.bf16.mxu0 %v3154
    %3650 = vmatpush1.bf16.msra.mxu0 %v3153
    %3651 = vmatprep.subr.bf16.mxu0 %v3146
    %3652 = vmatpush1.bf16.msra.mxu0 %v3145
    %3653 = vmatprep.subr.bf16.mxu0 %v3138
    %3654 = vmatpush1.bf16.msra.mxu0 %v3137
    %3655 = vmatprep.subr.bf16.mxu0 %v3130
    %3656 = vmatpush1.bf16.msra.mxu0 %v3129
    %3657 = vmatprep.subr.bf16.mxu0 %v3250
    %3658 = vmatpush2.bf16.msra.mxu0 %v3249
    %3659 = vmatprep.subr.bf16.mxu0 %v3242
    %3660 = vmatpush2.bf16.msra.mxu0 %v3241
    %3661 = vmatprep.subr.bf16.mxu0 %v3234
    %3662 = vmatpush2.bf16.msra.mxu0 %v3233
    %3663 = vmatprep.subr.bf16.mxu0 %v3226
    %3664 = vmatpush2.bf16.msra.mxu0 %v3225
    %3665 = vmatprep.subr.bf16.mxu0 %v3218
    %3666 = vmatpush2.bf16.msra.mxu0 %v3217
    %3667 = vmatprep.subr.bf16.mxu0 %v3210
    %3668 = vmatpush2.bf16.msra.mxu0 %v3209
    %3669 = vmatprep.subr.bf16.mxu0 %v3202
    %3670 = vmatpush2.bf16.msra.mxu0 %v3201
    %3671 = vmatprep.subr.bf16.mxu0 %v3194
    %3672 = vmatpush2.bf16.msra.mxu0 %v3193
    %3673 = vmatprep.mubr.bf16.mxu0 %v2316
    %3674 = vmatmul.mubr.bf16.gmra.mxu0 %v2315
    %v3675 = vpop.f32.mrf.mxu0
    %v3676 = vadd.f32 %v2324, %v3675
    %v3677 = vpop.f32.mrf.mxu0
    %v3678 = vadd.f32 %v2328, %v3677
    %v3679 = vpop.f32.mrf.mxu0
    %v3680 = vpop.f32.mrf.mxu0
    %3681 = vdwg.mxu0
    %3682 = vmatprep.subr.bf16.mxu0 %v3314
    %3683 = vmatpush1.bf16.msra.mxu0 %v3313
    %3684 = vmatprep.subr.bf16.mxu0 %v3306
    %3685 = vmatpush1.bf16.msra.mxu0 %v3305
    %3686 = vmatprep.subr.bf16.mxu0 %v3298
    %3687 = vmatpush1.bf16.msra.mxu0 %v3297
    %3688 = vmatprep.subr.bf16.mxu0 %v3290
    %3689 = vmatpush1.bf16.msra.mxu0 %v3289
    %3690 = vmatprep.subr.bf16.mxu0 %v3282
    %3691 = vmatpush1.bf16.msra.mxu0 %v3281
    %3692 = vmatprep.subr.bf16.mxu0 %v3274
    %3693 = vmatpush1.bf16.msra.mxu0 %v3273
    %3694 = vmatprep.subr.bf16.mxu0 %v3266
    %3695 = vmatpush1.bf16.msra.mxu0 %v3265
    %3696 = vmatprep.subr.bf16.mxu0 %v3258
    %3697 = vmatpush1.bf16.msra.mxu0 %v3257
    %3698 = vmatprep.subr.bf16.mxu0 %v3378
    %3699 = vmatpush2.bf16.msra.mxu0 %v3377
    %3700 = vmatprep.subr.bf16.mxu0 %v3370
    %3701 = vmatpush2.bf16.msra.mxu0 %v3369
    %3702 = vmatprep.subr.bf16.mxu0 %v3362
    %3703 = vmatpush2.bf16.msra.mxu0 %v3361
    %3704 = vmatprep.subr.bf16.mxu0 %v3354
    %3705 = vmatpush2.bf16.msra.mxu0 %v3353
    %3706 = vmatprep.subr.bf16.mxu0 %v3346
    %3707 = vmatpush2.bf16.msra.mxu0 %v3345
    %3708 = vmatprep.subr.bf16.mxu0 %v3338
    %3709 = vmatpush2.bf16.msra.mxu0 %v3337
    %3710 = vmatprep.subr.bf16.mxu0 %v3330
    %3711 = vmatpush2.bf16.msra.mxu0 %v3329
    %3712 = vmatprep.subr.bf16.mxu0 %v3322
    %3713 = vmatpush2.bf16.msra.mxu0 %v3321
    %3714 = vmatprep.mubr.bf16.mxu0 %v2318
    %3715 = vmatmul.mubr.bf16.gmra.mxu0 %v2317
    %v3716 = vpop.f32.mrf.mxu0
    %v3717 = vadd.f32 %v3676, %v3716
    %v3718 = vpop.f32.mrf.mxu0
    %v3719 = vadd.f32 %v3678, %v3718
    %v3720 = vpop.f32.mrf.mxu0
    %v3721 = vpop.f32.mrf.mxu0
    %3722 = vdwg.mxu0
    %3723 = vmatprep.subr.bf16.mxu0 %v3188
    %3724 = vmatpush1.bf16.msra.mxu0 %v3187
    %3725 = vmatprep.subr.bf16.mxu0 %v3180
    %3726 = vmatpush1.bf16.msra.mxu0 %v3179
    %3727 = vmatprep.subr.bf16.mxu0 %v3172
    %3728 = vmatpush1.bf16.msra.mxu0 %v3171
    %3729 = vmatprep.subr.bf16.mxu0 %v3164
    %3730 = vmatpush1.bf16.msra.mxu0 %v3163
    %3731 = vmatprep.subr.bf16.mxu0 %v3156
    %3732 = vmatpush1.bf16.msra.mxu0 %v3155
    %3733 = vmatprep.subr.bf16.mxu0 %v3148
    %3734 = vmatpush1.bf16.msra.mxu0 %v3147
    %3735 = vmatprep.subr.bf16.mxu0 %v3140
    %3736 = vmatpush1.bf16.msra.mxu0 %v3139
    %3737 = vmatprep.subr.bf16.mxu0 %v3132
    %3738 = vmatpush1.bf16.msra.mxu0 %v3131
    %3739 = vmatprep.subr.bf16.mxu0 %v3252
    %3740 = vmatpush2.bf16.msra.mxu0 %v3251
    %3741 = vmatprep.subr.bf16.mxu0 %v3244
    %3742 = vmatpush2.bf16.msra.mxu0 %v3243
    %3743 = vmatprep.subr.bf16.mxu0 %v3236
    %3744 = vmatpush2.bf16.msra.mxu0 %v3235
    %3745 = vmatprep.subr.bf16.mxu0 %v3228
    %3746 = vmatpush2.bf16.msra.mxu0 %v3227
    %3747 = vmatprep.subr.bf16.mxu0 %v3220
    %3748 = vmatpush2.bf16.msra.mxu0 %v3219
    %3749 = vmatprep.subr.bf16.mxu0 %v3212
    %3750 = vmatpush2.bf16.msra.mxu0 %v3211
    %3751 = vmatprep.subr.bf16.mxu0 %v3204
    %3752 = vmatpush2.bf16.msra.mxu0 %v3203
    %3753 = vmatprep.subr.bf16.mxu0 %v3196
    %3754 = vmatpush2.bf16.msra.mxu0 %v3195
    %3755 = vmatprep.mubr.bf16.mxu0 %v2316
    %3756 = vmatmul.mubr.bf16.gmra.mxu0 %v2315
    %v3757 = vpop.f32.mrf.mxu0
    %v3758 = vadd.f32 %v2332, %v3757
    %v3759 = vpop.f32.mrf.mxu0
    %v3760 = vadd.f32 %v2336, %v3759
    %v3761 = vpop.f32.mrf.mxu0
    %v3762 = vpop.f32.mrf.mxu0
    %3763 = vdwg.mxu0
    %3764 = vmatprep.subr.bf16.mxu0 %v3316
    %3765 = vmatpush1.bf16.msra.mxu0 %v3315
    %3766 = vmatprep.subr.bf16.mxu0 %v3308
    %3767 = vmatpush1.bf16.msra.mxu0 %v3307
    %3768 = vmatprep.subr.bf16.mxu0 %v3300
    %3769 = vmatpush1.bf16.msra.mxu0 %v3299
    %3770 = vmatprep.subr.bf16.mxu0 %v3292
    %3771 = vmatpush1.bf16.msra.mxu0 %v3291
    %3772 = vmatprep.subr.bf16.mxu0 %v3284
    %3773 = vmatpush1.bf16.msra.mxu0 %v3283
    %3774 = vmatprep.subr.bf16.mxu0 %v3276
    %3775 = vmatpush1.bf16.msra.mxu0 %v3275
    %3776 = vmatprep.subr.bf16.mxu0 %v3268
    %3777 = vmatpush1.bf16.msra.mxu0 %v3267
    %3778 = vmatprep.subr.bf16.mxu0 %v3260
    %3779 = vmatpush1.bf16.msra.mxu0 %v3259
    %3780 = vmatprep.subr.bf16.mxu0 %v3380
    %3781 = vmatpush2.bf16.msra.mxu0 %v3379
    %3782 = vmatprep.subr.bf16.mxu0 %v3372
    %3783 = vmatpush2.bf16.msra.mxu0 %v3371
    %3784 = vmatprep.subr.bf16.mxu0 %v3364
    %3785 = vmatpush2.bf16.msra.mxu0 %v3363
    %3786 = vmatprep.subr.bf16.mxu0 %v3356
    %3787 = vmatpush2.bf16.msra.mxu0 %v3355
    %3788 = vmatprep.subr.bf16.mxu0 %v3348
    %3789 = vmatpush2.bf16.msra.mxu0 %v3347
    %3790 = vmatprep.subr.bf16.mxu0 %v3340
    %3791 = vmatpush2.bf16.msra.mxu0 %v3339
    %3792 = vmatprep.subr.bf16.mxu0 %v3332
    %3793 = vmatpush2.bf16.msra.mxu0 %v3331
    %3794 = vmatprep.subr.bf16.mxu0 %v3324
    %3795 = vmatpush2.bf16.msra.mxu0 %v3323
    %3796 = vmatprep.mubr.bf16.mxu0 %v2318
    %3797 = vmatmul.mubr.bf16.gmra.mxu0 %v2317
    %v3798 = vpop.f32.mrf.mxu0
    %v3799 = vadd.f32 %v3758, %v3798
    %v3800 = vpop.f32.mrf.mxu0
    %v3801 = vadd.f32 %v3760, %v3800
    %v3802 = vpop.f32.mrf.mxu0
    %v3803 = vpop.f32.mrf.mxu0
    %3804 = vdwg.mxu0
    %3805 = vmatprep.subr.bf16.mxu0 %v3190
    %3806 = vmatpush1.bf16.msra.mxu0 %v3189
    %3807 = vmatprep.subr.bf16.mxu0 %v3182
    %3808 = vmatpush1.bf16.msra.mxu0 %v3181
    %3809 = vmatprep.subr.bf16.mxu0 %v3174
    %3810 = vmatpush1.bf16.msra.mxu0 %v3173
    %3811 = vmatprep.subr.bf16.mxu0 %v3166
    %3812 = vmatpush1.bf16.msra.mxu0 %v3165
    %3813 = vmatprep.subr.bf16.mxu0 %v3158
    %3814 = vmatpush1.bf16.msra.mxu0 %v3157
    %3815 = vmatprep.subr.bf16.mxu0 %v3150
    %3816 = vmatpush1.bf16.msra.mxu0 %v3149
    %3817 = vmatprep.subr.bf16.mxu0 %v3142
    %3818 = vmatpush1.bf16.msra.mxu0 %v3141
    %3819 = vmatprep.subr.bf16.mxu0 %v3134
    %3820 = vmatpush1.bf16.msra.mxu0 %v3133
    %3821 = vmatprep.subr.bf16.mxu0 %v3254
    %3822 = vmatpush2.bf16.msra.mxu0 %v3253
    %3823 = vmatprep.subr.bf16.mxu0 %v3246
    %3824 = vmatpush2.bf16.msra.mxu0 %v3245
    %3825 = vmatprep.subr.bf16.mxu0 %v3238
    %3826 = vmatpush2.bf16.msra.mxu0 %v3237
    %3827 = vmatprep.subr.bf16.mxu0 %v3230
    %3828 = vmatpush2.bf16.msra.mxu0 %v3229
    %3829 = vmatprep.subr.bf16.mxu0 %v3222
    %3830 = vmatpush2.bf16.msra.mxu0 %v3221
    %3831 = vmatprep.subr.bf16.mxu0 %v3214
    %3832 = vmatpush2.bf16.msra.mxu0 %v3213
    %3833 = vmatprep.subr.bf16.mxu0 %v3206
    %3834 = vmatpush2.bf16.msra.mxu0 %v3205
    %3835 = vmatprep.subr.bf16.mxu0 %v3198
    %3836 = vmatpush2.bf16.msra.mxu0 %v3197
    %3837 = vmatprep.mubr.bf16.mxu0 %v2316
    %3838 = vmatmul.mubr.bf16.gmra.mxu0 %v2315
    %v3839 = vpop.f32.mrf.mxu0
    %v3840 = vadd.f32 %v2340, %v3839
    %v3841 = vpop.f32.mrf.mxu0
    %v3842 = vadd.f32 %v2344, %v3841
    %v3843 = vpop.f32.mrf.mxu0
    %v3844 = vpop.f32.mrf.mxu0
    %3845 = vdwg.mxu0
    %3846 = vmatprep.subr.bf16.mxu0 %v3318
    %3847 = vmatpush1.bf16.msra.mxu0 %v3317
    %3848 = vmatprep.subr.bf16.mxu0 %v3310
    %3849 = vmatpush1.bf16.msra.mxu0 %v3309
    %3850 = vmatprep.subr.bf16.mxu0 %v3302
    %3851 = vmatpush1.bf16.msra.mxu0 %v3301
    %3852 = vmatprep.subr.bf16.mxu0 %v3294
    %3853 = vmatpush1.bf16.msra.mxu0 %v3293
    %3854 = vmatprep.subr.bf16.mxu0 %v3286
    %3855 = vmatpush1.bf16.msra.mxu0 %v3285
    %3856 = vmatprep.subr.bf16.mxu0 %v3278
    %3857 = vmatpush1.bf16.msra.mxu0 %v3277
    %3858 = vmatprep.subr.bf16.mxu0 %v3270
    %3859 = vmatpush1.bf16.msra.mxu0 %v3269
    %3860 = vmatprep.subr.bf16.mxu0 %v3262
    %3861 = vmatpush1.bf16.msra.mxu0 %v3261
    %3862 = vmatprep.subr.bf16.mxu0 %v3382
    %3863 = vmatpush2.bf16.msra.mxu0 %v3381
    %3864 = vmatprep.subr.bf16.mxu0 %v3374
    %3865 = vmatpush2.bf16.msra.mxu0 %v3373
    %3866 = vmatprep.subr.bf16.mxu0 %v3366
    %3867 = vmatpush2.bf16.msra.mxu0 %v3365
    %3868 = vmatprep.subr.bf16.mxu0 %v3358
    %3869 = vmatpush2.bf16.msra.mxu0 %v3357
    %3870 = vmatprep.subr.bf16.mxu0 %v3350
    %3871 = vmatpush2.bf16.msra.mxu0 %v3349
    %3872 = vmatprep.subr.bf16.mxu0 %v3342
    %3873 = vmatpush2.bf16.msra.mxu0 %v3341
    %3874 = vmatprep.subr.bf16.mxu0 %v3334
    %3875 = vmatpush2.bf16.msra.mxu0 %v3333
    %3876 = vmatprep.subr.bf16.mxu0 %v3326
    %3877 = vmatpush2.bf16.msra.mxu0 %v3325
    %3878 = vmatprep.mubr.bf16.mxu0 %v2318
    %3879 = vmatmul.mubr.bf16.gmra.mxu0 %v2317
    %v3880 = vpop.f32.mrf.mxu0
    %v3881 = vadd.f32 %v3840, %v3880
    %v3882 = vpop.f32.mrf.mxu0
    %v3883 = vadd.f32 %v3842, %v3882
    %v3884 = vpop.f32.mrf.mxu0
    %v3885 = vpop.f32.mrf.mxu0
    %3886 = vdwg.mxu0
    %3887 = vmatprep.subr.bf16.mxu0 %v3192
    %3888 = vmatpush1.bf16.msra.mxu0 %v3191
    %3889 = vmatprep.subr.bf16.mxu0 %v3184
    %3890 = vmatpush1.bf16.msra.mxu0 %v3183
    %3891 = vmatprep.subr.bf16.mxu0 %v3176
    %3892 = vmatpush1.bf16.msra.mxu0 %v3175
    %3893 = vmatprep.subr.bf16.mxu0 %v3168
    %3894 = vmatpush1.bf16.msra.mxu0 %v3167
    %3895 = vmatprep.subr.bf16.mxu0 %v3160
    %3896 = vmatpush1.bf16.msra.mxu0 %v3159
    %3897 = vmatprep.subr.bf16.mxu0 %v3152
    %3898 = vmatpush1.bf16.msra.mxu0 %v3151
    %3899 = vmatprep.subr.bf16.mxu0 %v3144
    %3900 = vmatpush1.bf16.msra.mxu0 %v3143
    %3901 = vmatprep.subr.bf16.mxu0 %v3136
    %3902 = vmatpush1.bf16.msra.mxu0 %v3135
    %3903 = vmatprep.subr.bf16.mxu0 %v3256
    %3904 = vmatpush2.bf16.msra.mxu0 %v3255
    %3905 = vmatprep.subr.bf16.mxu0 %v3248
    %3906 = vmatpush2.bf16.msra.mxu0 %v3247
    %3907 = vmatprep.subr.bf16.mxu0 %v3240
    %3908 = vmatpush2.bf16.msra.mxu0 %v3239
    %3909 = vmatprep.subr.bf16.mxu0 %v3232
    %3910 = vmatpush2.bf16.msra.mxu0 %v3231
    %3911 = vmatprep.subr.bf16.mxu0 %v3224
    %3912 = vmatpush2.bf16.msra.mxu0 %v3223
    %3913 = vmatprep.subr.bf16.mxu0 %v3216
    %3914 = vmatpush2.bf16.msra.mxu0 %v3215
    %3915 = vmatprep.subr.bf16.mxu0 %v3208
    %3916 = vmatpush2.bf16.msra.mxu0 %v3207
    %3917 = vmatprep.subr.bf16.mxu0 %v3200
    %3918 = vmatpush2.bf16.msra.mxu0 %v3199
    %3919 = vmatprep.mubr.bf16.mxu0 %v2316
    %3920 = vmatmul.mubr.bf16.gmra.mxu0 %v2315
    %v3921 = vpop.f32.mrf.mxu0
    %v3922 = vadd.f32 %v2348, %v3921
    %v3923 = vpop.f32.mrf.mxu0
    %v3924 = vadd.f32 %v2352, %v3923
    %v3925 = vpop.f32.mrf.mxu0
    %v3926 = vpop.f32.mrf.mxu0
    %3927 = vdwg.mxu0
    %3928 = vmatprep.subr.bf16.mxu0 %v3320
    %3929 = vmatpush1.bf16.msra.mxu0 %v3319
    %3930 = vmatprep.subr.bf16.mxu0 %v3312
    %3931 = vmatpush1.bf16.msra.mxu0 %v3311
    %3932 = vmatprep.subr.bf16.mxu0 %v3304
    %3933 = vmatpush1.bf16.msra.mxu0 %v3303
    %3934 = vmatprep.subr.bf16.mxu0 %v3296
    %3935 = vmatpush1.bf16.msra.mxu0 %v3295
    %3936 = vmatprep.subr.bf16.mxu0 %v3288
    %3937 = vmatpush1.bf16.msra.mxu0 %v3287
    %3938 = vmatprep.subr.bf16.mxu0 %v3280
    %3939 = vmatpush1.bf16.msra.mxu0 %v3279
    %3940 = vmatprep.subr.bf16.mxu0 %v3272
    %3941 = vmatpush1.bf16.msra.mxu0 %v3271
    %3942 = vmatprep.subr.bf16.mxu0 %v3264
    %3943 = vmatpush1.bf16.msra.mxu0 %v3263
    %3944 = vmatprep.subr.bf16.mxu0 %v3384
    %3945 = vmatpush2.bf16.msra.mxu0 %v3383
    %3946 = vmatprep.subr.bf16.mxu0 %v3376
    %3947 = vmatpush2.bf16.msra.mxu0 %v3375
    %3948 = vmatprep.subr.bf16.mxu0 %v3368
    %3949 = vmatpush2.bf16.msra.mxu0 %v3367
    %3950 = vmatprep.subr.bf16.mxu0 %v3360
    %3951 = vmatpush2.bf16.msra.mxu0 %v3359
    %3952 = vmatprep.subr.bf16.mxu0 %v3352
    %3953 = vmatpush2.bf16.msra.mxu0 %v3351
    %3954 = vmatprep.subr.bf16.mxu0 %v3344
    %3955 = vmatpush2.bf16.msra.mxu0 %v3343
    %3956 = vmatprep.subr.bf16.mxu0 %v3336
    %3957 = vmatpush2.bf16.msra.mxu0 %v3335
    %3958 = vmatprep.subr.bf16.mxu0 %v3328
    %3959 = vmatpush2.bf16.msra.mxu0 %v3327
    %3960 = vmatprep.mubr.bf16.mxu0 %v2318
    %3961 = vmatmul.mubr.bf16.gmra.mxu0 %v2317
    %v3962 = vpop.f32.mrf.mxu0
    %v3963 = vadd.f32 %v3922, %v3962
    %v3964 = vpop.f32.mrf.mxu0
    %v3965 = vadd.f32 %v3924, %v3964
    %v3966 = vpop.f32.mrf.mxu0
    %v3967 = vpop.f32.mrf.mxu0
    %3968 = vdwg.mxu0
    %v3969 = vmax.f32 %v3717, 0.0
    %v3970 = vmax.f32 %v3719, 0.0
    %v3971 = vmax.f32 %v3799, 0.0
    %v3972 = vmax.f32 %v3801, 0.0
    %v3973 = vmax.f32 %v3881, 0.0
    %v3974 = vmax.f32 %v3883, 0.0
    %v3975 = vmax.f32 %v3963, 0.0
    %v3976 = vmax.f32 %v3965, 0.0
    %v3977 = vld [vmem:[#allocation23] sm:$0xf]
    %v3978 = vld [vmem:[#allocation23 + $0x4] sm:$0xf]
    %v3979 = vld [vmem:[#allocation23 + $0x8] sm:$0xf]
    %v3980 = vld [vmem:[#allocation23 + $0xc] sm:$0xf]
    %v3981 = vld [vmem:[#allocation23 + $0x10] sm:$0xf]
    %v3982 = vld [vmem:[#allocation23 + $0x14] sm:$0xf]
    %v3983 = vld [vmem:[#allocation23 + $0x18] sm:$0xf]
    %v3984 = vld [vmem:[#allocation23 + $0x1c] sm:$0xf]
    %v3985 = vld [vmem:[#allocation23 + $0x20] sm:$0xf]
    %v3986 = vld [vmem:[#allocation23 + $0x24] sm:$0xf]
    %v3987 = vld [vmem:[#allocation23 + $0x28] sm:$0xf]
    %v3988 = vld [vmem:[#allocation23 + $0x2c] sm:$0xf]
    %v3989 = vld [vmem:[#allocation23 + $0x30] sm:$0xf]
    %v3990 = vld [vmem:[#allocation23 + $0x34] sm:$0xf]
    %v3991 = vld [vmem:[#allocation23 + $0x38] sm:$0xf]
    %v3992 = vld [vmem:[#allocation23 + $0x3c] sm:$0xf]
    %v3993 = vld [vmem:[#allocation23 + $0x40] sm:$0xf]
    %v3994 = vld [vmem:[#allocation23 + $0x44] sm:$0xf]
    %v3995 = vld [vmem:[#allocation23 + $0x48] sm:$0xf]
    %v3996 = vld [vmem:[#allocation23 + $0x4c] sm:$0xf]
    %v3997 = vld [vmem:[#allocation23 + $0x50] sm:$0xf]
    %v3998 = vld [vmem:[#allocation23 + $0x54] sm:$0xf]
    %v3999 = vld [vmem:[#allocation23 + $0x58] sm:$0xf]
    %v4000 = vld [vmem:[#allocation23 + $0x5c] sm:$0xf]
    %v4001 = vld [vmem:[#allocation23 + $0x60] sm:$0xf]
    %v4002 = vld [vmem:[#allocation23 + $0x64] sm:$0xf]
    %v4003 = vld [vmem:[#allocation23 + $0x68] sm:$0xf]
    %v4004 = vld [vmem:[#allocation23 + $0x6c] sm:$0xf]
    %v4005 = vld [vmem:[#allocation23 + $0x70] sm:$0xf]
    %v4006 = vld [vmem:[#allocation23 + $0x74] sm:$0xf]
    %v4007 = vld [vmem:[#allocation23 + $0x78] sm:$0xf]
    %v4008 = vld [vmem:[#allocation23 + $0x7c] sm:$0xf]
    %v4009 = vld [vmem:[#allocation23 + $0x80] sm:$0xf]
    %v4010 = vld [vmem:[#allocation23 + $0x84] sm:$0xf]
    %v4011 = vld [vmem:[#allocation23 + $0x88] sm:$0xf]
    %v4012 = vld [vmem:[#allocation23 + $0x8c] sm:$0xf]
    %v4013 = vld [vmem:[#allocation23 + $0x90] sm:$0xf]
    %v4014 = vld [vmem:[#allocation23 + $0x94] sm:$0xf]
    %v4015 = vld [vmem:[#allocation23 + $0x98] sm:$0xf]
    %v4016 = vld [vmem:[#allocation23 + $0x9c] sm:$0xf]
    %v4017 = vld [vmem:[#allocation23 + $0xa0] sm:$0xf]
    %v4018 = vld [vmem:[#allocation23 + $0xa4] sm:$0xf]
    %v4019 = vld [vmem:[#allocation23 + $0xa8] sm:$0xf]
    %v4020 = vld [vmem:[#allocation23 + $0xac] sm:$0xf]
    %v4021 = vld [vmem:[#allocation23 + $0xb0] sm:$0xf]
    %v4022 = vld [vmem:[#allocation23 + $0xb4] sm:$0xf]
    %v4023 = vld [vmem:[#allocation23 + $0xb8] sm:$0xf]
    %v4024 = vld [vmem:[#allocation23 + $0xbc] sm:$0xf]
    %v4025 = vld [vmem:[#allocation23 + $0xc0] sm:$0xf]
    %v4026 = vld [vmem:[#allocation23 + $0xc4] sm:$0xf]
    %v4027 = vld [vmem:[#allocation23 + $0xc8] sm:$0xf]
    %v4028 = vld [vmem:[#allocation23 + $0xcc] sm:$0xf]
    %v4029 = vld [vmem:[#allocation23 + $0xd0] sm:$0xf]
    %v4030 = vld [vmem:[#allocation23 + $0xd4] sm:$0xf]
    %v4031 = vld [vmem:[#allocation23 + $0xd8] sm:$0xf]
    %v4032 = vld [vmem:[#allocation23 + $0xdc] sm:$0xf]
    %v4033 = vld [vmem:[#allocation23 + $0xe0] sm:$0xf]
    %v4034 = vld [vmem:[#allocation23 + $0xe4] sm:$0xf]
    %v4035 = vld [vmem:[#allocation23 + $0xe8] sm:$0xf]
    %v4036 = vld [vmem:[#allocation23 + $0xec] sm:$0xf]
    %v4037 = vld [vmem:[#allocation23 + $0xf0] sm:$0xf]
    %v4038 = vld [vmem:[#allocation23 + $0xf4] sm:$0xf]
    %v4039 = vld [vmem:[#allocation23 + $0xf8] sm:$0xf]
    %v4040 = vld [vmem:[#allocation23 + $0xfc] sm:$0xf]
    %v4041 = vld [vmem:[#allocation23 + $0x100] sm:$0xf]
    %v4042 = vld [vmem:[#allocation23 + $0x104] sm:$0xf]
    %v4043 = vld [vmem:[#allocation23 + $0x108] sm:$0xf]
    %v4044 = vld [vmem:[#allocation23 + $0x10c] sm:$0xf]
    %v4045 = vld [vmem:[#allocation23 + $0x110] sm:$0xf]
    %v4046 = vld [vmem:[#allocation23 + $0x114] sm:$0xf]
    %v4047 = vld [vmem:[#allocation23 + $0x118] sm:$0xf]
    %v4048 = vld [vmem:[#allocation23 + $0x11c] sm:$0xf]
    %v4049 = vld [vmem:[#allocation23 + $0x120] sm:$0xf]
    %v4050 = vld [vmem:[#allocation23 + $0x124] sm:$0xf]
    %v4051 = vld [vmem:[#allocation23 + $0x128] sm:$0xf]
    %v4052 = vld [vmem:[#allocation23 + $0x12c] sm:$0xf]
    %v4053 = vld [vmem:[#allocation23 + $0x130] sm:$0xf]
    %v4054 = vld [vmem:[#allocation23 + $0x134] sm:$0xf]
    %v4055 = vld [vmem:[#allocation23 + $0x138] sm:$0xf]
    %v4056 = vld [vmem:[#allocation23 + $0x13c] sm:$0xf]
    %v4057 = vld [vmem:[#allocation23 + $0x140] sm:$0xf]
    %v4058 = vld [vmem:[#allocation23 + $0x144] sm:$0xf]
    %v4059 = vld [vmem:[#allocation23 + $0x148] sm:$0xf]
    %v4060 = vld [vmem:[#allocation23 + $0x14c] sm:$0xf]
    %v4061 = vld [vmem:[#allocation23 + $0x150] sm:$0xf]
    %v4062 = vld [vmem:[#allocation23 + $0x154] sm:$0xf]
    %v4063 = vld [vmem:[#allocation23 + $0x158] sm:$0xf]
    %v4064 = vld [vmem:[#allocation23 + $0x15c] sm:$0xf]
    %v4065 = vld [vmem:[#allocation23 + $0x160] sm:$0xf]
    %v4066 = vld [vmem:[#allocation23 + $0x164] sm:$0xf]
    %v4067 = vld [vmem:[#allocation23 + $0x168] sm:$0xf]
    %v4068 = vld [vmem:[#allocation23 + $0x16c] sm:$0xf]
    %v4069 = vld [vmem:[#allocation23 + $0x170] sm:$0xf]
    %v4070 = vld [vmem:[#allocation23 + $0x174] sm:$0xf]
    %v4071 = vld [vmem:[#allocation23 + $0x178] sm:$0xf]
    %v4072 = vld [vmem:[#allocation23 + $0x17c] sm:$0xf]
    %v4073 = vld [vmem:[#allocation23 + $0x180] sm:$0xf]
    %v4074 = vld [vmem:[#allocation23 + $0x184] sm:$0xf]
    %v4075 = vld [vmem:[#allocation23 + $0x188] sm:$0xf]
    %v4076 = vld [vmem:[#allocation23 + $0x18c] sm:$0xf]
    %v4077 = vld [vmem:[#allocation23 + $0x190] sm:$0xf]
    %v4078 = vld [vmem:[#allocation23 + $0x194] sm:$0xf]
    %v4079 = vld [vmem:[#allocation23 + $0x198] sm:$0xf]
    %v4080 = vld [vmem:[#allocation23 + $0x19c] sm:$0xf]
    %v4081 = vld [vmem:[#allocation23 + $0x1a0] sm:$0xf]
    %v4082 = vld [vmem:[#allocation23 + $0x1a4] sm:$0xf]
    %v4083 = vld [vmem:[#allocation23 + $0x1a8] sm:$0xf]
    %v4084 = vld [vmem:[#allocation23 + $0x1ac] sm:$0xf]
    %v4085 = vld [vmem:[#allocation23 + $0x1b0] sm:$0xf]
    %v4086 = vld [vmem:[#allocation23 + $0x1b4] sm:$0xf]
    %v4087 = vld [vmem:[#allocation23 + $0x1b8] sm:$0xf]
    %v4088 = vld [vmem:[#allocation23 + $0x1bc] sm:$0xf]
    %v4089 = vld [vmem:[#allocation23 + $0x1c0] sm:$0xf]
    %v4090 = vld [vmem:[#allocation23 + $0x1c4] sm:$0xf]
    %v4091 = vld [vmem:[#allocation23 + $0x1c8] sm:$0xf]
    %v4092 = vld [vmem:[#allocation23 + $0x1cc] sm:$0xf]
    %v4093 = vld [vmem:[#allocation23 + $0x1d0] sm:$0xf]
    %v4094 = vld [vmem:[#allocation23 + $0x1d4] sm:$0xf]
    %v4095 = vld [vmem:[#allocation23 + $0x1d8] sm:$0xf]
    %v4096 = vld [vmem:[#allocation23 + $0x1dc] sm:$0xf]
    %v4097 = vld [vmem:[#allocation23 + $0x1e0] sm:$0xf]
    %v4098 = vld [vmem:[#allocation23 + $0x1e4] sm:$0xf]
    %v4099 = vld [vmem:[#allocation23 + $0x1e8] sm:$0xf]
    %v4100 = vld [vmem:[#allocation23 + $0x1ec] sm:$0xf]
    %v4101 = vld [vmem:[#allocation23 + $0x1f0] sm:$0xf]
    %v4102 = vld [vmem:[#allocation23 + $0x1f4] sm:$0xf]
    %v4103 = vld [vmem:[#allocation23 + $0x1f8] sm:$0xf]
    %v4104 = vld [vmem:[#allocation23 + $0x1fc] sm:$0xf]
    %v4105 = vpack.c.bf16 %v3969, %v3969
    %v4106 = vpack.c.bf16 %v3970, %v3970
    %v4107 = vpack.c.bf16 %v3971, %v3971
    %v4108 = vpack.c.bf16 %v3972, %v3972
    %v4109 = vpack.c.bf16 %v3973, %v3973
    %v4110 = vpack.c.bf16 %v3974, %v3974
    %v4111 = vpack.c.bf16 %v3975, %v3975
    %v4112 = vpack.c.bf16 %v3976, %v3976
    %v4113 = vld [vmem:[#allocation25] sm:$0x1]
    %v4115 = vlaneseq
    %v4116 = vshrl.u32 %v4115, 7
    %v4117 = vsub.s32 0, %v4116
    %v4118 = vrot.slane %v4113, %v4117
    %v4248 = vunpack.c.l.b16 %v3977
    %v4249 = vunpack.c.l.b16 %v3978
    %v4250 = vunpack.c.l.b16 %v3979
    %v4251 = vunpack.c.l.b16 %v3980
    %v4252 = vunpack.c.l.b16 %v3981
    %v4253 = vunpack.c.l.b16 %v3982
    %v4254 = vunpack.c.l.b16 %v3983
    %v4255 = vunpack.c.l.b16 %v3984
    %v4256 = vunpack.c.l.b16 %v3985
    %v4257 = vunpack.c.l.b16 %v3986
    %v4258 = vunpack.c.l.b16 %v3987
    %v4259 = vunpack.c.l.b16 %v3988
    %v4260 = vunpack.c.l.b16 %v3989
    %v4261 = vunpack.c.l.b16 %v3990
    %v4262 = vunpack.c.l.b16 %v3991
    %v4263 = vunpack.c.l.b16 %v3992
    %v4264 = vunpack.c.l.b16 %v3993
    %v4265 = vunpack.c.l.b16 %v3994
    %v4266 = vunpack.c.l.b16 %v3995
    %v4267 = vunpack.c.l.b16 %v3996
    %v4268 = vunpack.c.l.b16 %v3997
    %v4269 = vunpack.c.l.b16 %v3998
    %v4270 = vunpack.c.l.b16 %v3999
    %v4271 = vunpack.c.l.b16 %v4000
    %v4272 = vunpack.c.l.b16 %v4001
    %v4273 = vunpack.c.l.b16 %v4002
    %v4274 = vunpack.c.l.b16 %v4003
    %v4275 = vunpack.c.l.b16 %v4004
    %v4276 = vunpack.c.l.b16 %v4005
    %v4277 = vunpack.c.l.b16 %v4006
    %v4278 = vunpack.c.l.b16 %v4007
    %v4279 = vunpack.c.l.b16 %v4008
    %v4280 = vunpack.c.l.b16 %v4009
    %v4281 = vunpack.c.l.b16 %v4010
    %v4282 = vunpack.c.l.b16 %v4011
    %v4283 = vunpack.c.l.b16 %v4012
    %v4284 = vunpack.c.l.b16 %v4013
    %v4285 = vunpack.c.l.b16 %v4014
    %v4286 = vunpack.c.l.b16 %v4015
    %v4287 = vunpack.c.l.b16 %v4016
    %v4288 = vunpack.c.l.b16 %v4017
    %v4289 = vunpack.c.l.b16 %v4018
    %v4290 = vunpack.c.l.b16 %v4019
    %v4291 = vunpack.c.l.b16 %v4020
    %v4292 = vunpack.c.l.b16 %v4021
    %v4293 = vunpack.c.l.b16 %v4022
    %v4294 = vunpack.c.l.b16 %v4023
    %v4295 = vunpack.c.l.b16 %v4024
    %v4296 = vunpack.c.l.b16 %v4025
    %v4297 = vunpack.c.l.b16 %v4026
    %v4298 = vunpack.c.l.b16 %v4027
    %v4299 = vunpack.c.l.b16 %v4028
    %v4300 = vunpack.c.l.b16 %v4029
    %v4301 = vunpack.c.l.b16 %v4030
    %v4302 = vunpack.c.l.b16 %v4031
    %v4303 = vunpack.c.l.b16 %v4032
    %v4304 = vunpack.c.l.b16 %v4033
    %v4305 = vunpack.c.l.b16 %v4034
    %v4306 = vunpack.c.l.b16 %v4035
    %v4307 = vunpack.c.l.b16 %v4036
    %v4308 = vunpack.c.l.b16 %v4037
    %v4309 = vunpack.c.l.b16 %v4038
    %v4310 = vunpack.c.l.b16 %v4039
    %v4311 = vunpack.c.l.b16 %v4040
    %v4312 = vunpack.c.l.b16 %v4041
    %v4313 = vunpack.c.l.b16 %v4042
    %v4314 = vunpack.c.l.b16 %v4043
    %v4315 = vunpack.c.l.b16 %v4044
    %v4316 = vunpack.c.l.b16 %v4045
    %v4317 = vunpack.c.l.b16 %v4046
    %v4318 = vunpack.c.l.b16 %v4047
    %v4319 = vunpack.c.l.b16 %v4048
    %v4320 = vunpack.c.l.b16 %v4049
    %v4321 = vunpack.c.l.b16 %v4050
    %v4322 = vunpack.c.l.b16 %v4051
    %v4323 = vunpack.c.l.b16 %v4052
    %v4324 = vunpack.c.l.b16 %v4053
    %v4325 = vunpack.c.l.b16 %v4054
    %v4326 = vunpack.c.l.b16 %v4055
    %v4327 = vunpack.c.l.b16 %v4056
    %v4328 = vunpack.c.l.b16 %v4057
    %v4329 = vunpack.c.l.b16 %v4058
    %v4330 = vunpack.c.l.b16 %v4059
    %v4331 = vunpack.c.l.b16 %v4060
    %v4332 = vunpack.c.l.b16 %v4061
    %v4333 = vunpack.c.l.b16 %v4062
    %v4334 = vunpack.c.l.b16 %v4063
    %v4335 = vunpack.c.l.b16 %v4064
    %v4336 = vunpack.c.l.b16 %v4065
    %v4337 = vunpack.c.l.b16 %v4066
    %v4338 = vunpack.c.l.b16 %v4067
    %v4339 = vunpack.c.l.b16 %v4068
    %v4340 = vunpack.c.l.b16 %v4069
    %v4341 = vunpack.c.l.b16 %v4070
    %v4342 = vunpack.c.l.b16 %v4071
    %v4343 = vunpack.c.l.b16 %v4072
    %v4344 = vunpack.c.l.b16 %v4073
    %v4345 = vunpack.c.l.b16 %v4074
    %v4346 = vunpack.c.l.b16 %v4075
    %v4347 = vunpack.c.l.b16 %v4076
    %v4348 = vunpack.c.l.b16 %v4077
    %v4349 = vunpack.c.l.b16 %v4078
    %v4350 = vunpack.c.l.b16 %v4079
    %v4351 = vunpack.c.l.b16 %v4080
    %v4352 = vunpack.c.l.b16 %v4081
    %v4353 = vunpack.c.l.b16 %v4082
    %v4354 = vunpack.c.l.b16 %v4083
    %v4355 = vunpack.c.l.b16 %v4084
    %v4356 = vunpack.c.l.b16 %v4085
    %v4357 = vunpack.c.l.b16 %v4086
    %v4358 = vunpack.c.l.b16 %v4087
    %v4359 = vunpack.c.l.b16 %v4088
    %v4360 = vunpack.c.l.b16 %v4089
    %v4361 = vunpack.c.l.b16 %v4090
    %v4362 = vunpack.c.l.b16 %v4091
    %v4363 = vunpack.c.l.b16 %v4092
    %v4364 = vunpack.c.l.b16 %v4093
    %v4365 = vunpack.c.l.b16 %v4094
    %v4366 = vunpack.c.l.b16 %v4095
    %v4367 = vunpack.c.l.b16 %v4096
    %v4368 = vunpack.c.l.b16 %v4097
    %v4369 = vunpack.c.l.b16 %v4098
    %v4370 = vunpack.c.l.b16 %v4099
    %v4371 = vunpack.c.l.b16 %v4100
    %v4372 = vunpack.c.l.b16 %v4101
    %v4373 = vunpack.c.l.b16 %v4102
    %v4374 = vunpack.c.l.b16 %v4103
    %v4375 = vunpack.c.l.b16 %v4104
    %v4376 = vpack.c.b16 %v4249, %v4248
    %v4377 = vpack.c.b16 %v4251, %v4250
    %v4378 = vpack.c.b16 %v4253, %v4252
    %v4379 = vpack.c.b16 %v4255, %v4254
    %v4380 = vpack.c.b16 %v4257, %v4256
    %v4381 = vpack.c.b16 %v4259, %v4258
    %v4382 = vpack.c.b16 %v4261, %v4260
    %v4383 = vpack.c.b16 %v4263, %v4262
    %v4384 = vpack.c.b16 %v4265, %v4264
    %v4385 = vpack.c.b16 %v4267, %v4266
    %v4386 = vpack.c.b16 %v4269, %v4268
    %v4387 = vpack.c.b16 %v4271, %v4270
    %v4388 = vpack.c.b16 %v4273, %v4272
    %v4389 = vpack.c.b16 %v4275, %v4274
    %v4390 = vpack.c.b16 %v4277, %v4276
    %v4391 = vpack.c.b16 %v4279, %v4278
    %v4392 = vpack.c.b16 %v4281, %v4280
    %v4393 = vpack.c.b16 %v4283, %v4282
    %v4394 = vpack.c.b16 %v4285, %v4284
    %v4395 = vpack.c.b16 %v4287, %v4286
    %v4396 = vpack.c.b16 %v4289, %v4288
    %v4397 = vpack.c.b16 %v4291, %v4290
    %v4398 = vpack.c.b16 %v4293, %v4292
    %v4399 = vpack.c.b16 %v4295, %v4294
    %v4400 = vpack.c.b16 %v4297, %v4296
    %v4401 = vpack.c.b16 %v4299, %v4298
    %v4402 = vpack.c.b16 %v4301, %v4300
    %v4403 = vpack.c.b16 %v4303, %v4302
    %v4404 = vpack.c.b16 %v4305, %v4304
    %v4405 = vpack.c.b16 %v4307, %v4306
    %v4406 = vpack.c.b16 %v4309, %v4308
    %v4407 = vpack.c.b16 %v4311, %v4310
    %v4408 = vpack.c.b16 %v4313, %v4312
    %v4409 = vpack.c.b16 %v4315, %v4314
    %v4410 = vpack.c.b16 %v4317, %v4316
    %v4411 = vpack.c.b16 %v4319, %v4318
    %v4412 = vpack.c.b16 %v4321, %v4320
    %v4413 = vpack.c.b16 %v4323, %v4322
    %v4414 = vpack.c.b16 %v4325, %v4324
    %v4415 = vpack.c.b16 %v4327, %v4326
    %v4416 = vpack.c.b16 %v4329, %v4328
    %v4417 = vpack.c.b16 %v4331, %v4330
    %v4418 = vpack.c.b16 %v4333, %v4332
    %v4419 = vpack.c.b16 %v4335, %v4334
    %v4420 = vpack.c.b16 %v4337, %v4336
    %v4421 = vpack.c.b16 %v4339, %v4338
    %v4422 = vpack.c.b16 %v4341, %v4340
    %v4423 = vpack.c.b16 %v4343, %v4342
    %v4424 = vpack.c.b16 %v4345, %v4344
    %v4425 = vpack.c.b16 %v4347, %v4346
    %v4426 = vpack.c.b16 %v4349, %v4348
    %v4427 = vpack.c.b16 %v4351, %v4350
    %v4428 = vpack.c.b16 %v4353, %v4352
    %v4429 = vpack.c.b16 %v4355, %v4354
    %v4430 = vpack.c.b16 %v4357, %v4356
    %v4431 = vpack.c.b16 %v4359, %v4358
    %v4432 = vpack.c.b16 %v4361, %v4360
    %v4433 = vpack.c.b16 %v4363, %v4362
    %v4434 = vpack.c.b16 %v4365, %v4364
    %v4435 = vpack.c.b16 %v4367, %v4366
    %v4436 = vpack.c.b16 %v4369, %v4368
    %v4437 = vpack.c.b16 %v4371, %v4370
    %v4438 = vpack.c.b16 %v4373, %v4372
    %v4439 = vpack.c.b16 %v4375, %v4374
    %4504 = vmatprep.subr.bf16.mxu0 0
    %4505 = vmatpush1.bf16.msra.mxu0 %v4383
    %4506 = vmatprep.subr.bf16.mxu0 0
    %4507 = vmatpush1.bf16.msra.mxu0 %v4382
    %4508 = vmatprep.subr.bf16.mxu0 0
    %4509 = vmatpush1.bf16.msra.mxu0 %v4381
    %4510 = vmatprep.subr.bf16.mxu0 0
    %4511 = vmatpush1.bf16.msra.mxu0 %v4380
    %4512 = vmatprep.subr.bf16.mxu0 0
    %4513 = vmatpush1.bf16.msra.mxu0 %v4379
    %4514 = vmatprep.subr.bf16.mxu0 0
    %4515 = vmatpush1.bf16.msra.mxu0 %v4378
    %4516 = vmatprep.subr.bf16.mxu0 0
    %4517 = vmatpush1.bf16.msra.mxu0 %v4377
    %4518 = vmatprep.subr.bf16.mxu0 0
    %4519 = vmatpush1.bf16.msra.mxu0 %v4376
    %4520 = vmatprep.subr.bf16.mxu0 0
    %4521 = vmatpush2.bf16.msra.mxu0 %v4391
    %4522 = vmatprep.subr.bf16.mxu0 0
    %4523 = vmatpush2.bf16.msra.mxu0 %v4390
    %4524 = vmatprep.subr.bf16.mxu0 0
    %4525 = vmatpush2.bf16.msra.mxu0 %v4389
    %4526 = vmatprep.subr.bf16.mxu0 0
    %4527 = vmatpush2.bf16.msra.mxu0 %v4388
    %4528 = vmatprep.subr.bf16.mxu0 0
    %4529 = vmatpush2.bf16.msra.mxu0 %v4387
    %4530 = vmatprep.subr.bf16.mxu0 0
    %4531 = vmatpush2.bf16.msra.mxu0 %v4386
    %4532 = vmatprep.subr.bf16.mxu0 0
    %4533 = vmatpush2.bf16.msra.mxu0 %v4385
    %4534 = vmatprep.subr.bf16.mxu0 0
    %4535 = vmatpush2.bf16.msra.mxu0 %v4384
    %4536 = vmatprep.mubr.bf16.mxu0 %v4106
    %4537 = vmatmul.mubr.bf16.gmra.mxu0 %v4105
    %v4538 = vpop.f32.mrf.mxu0
    %v4539 = vadd.f32 %v4118, %v4538
    %v4540 = vpop.f32.mrf.mxu0
    %v4541 = vpop.f32.mrf.mxu0
    %v4542 = vpop.f32.mrf.mxu0
    %4543 = vdwg.mxu0
    %4544 = vmatprep.subr.bf16.mxu0 0
    %4545 = vmatpush1.bf16.msra.mxu0 %v4399
    %4546 = vmatprep.subr.bf16.mxu0 0
    %4547 = vmatpush1.bf16.msra.mxu0 %v4398
    %4548 = vmatprep.subr.bf16.mxu0 0
    %4549 = vmatpush1.bf16.msra.mxu0 %v4397
    %4550 = vmatprep.subr.bf16.mxu0 0
    %4551 = vmatpush1.bf16.msra.mxu0 %v4396
    %4552 = vmatprep.subr.bf16.mxu0 0
    %4553 = vmatpush1.bf16.msra.mxu0 %v4395
    %4554 = vmatprep.subr.bf16.mxu0 0
    %4555 = vmatpush1.bf16.msra.mxu0 %v4394
    %4556 = vmatprep.subr.bf16.mxu0 0
    %4557 = vmatpush1.bf16.msra.mxu0 %v4393
    %4558 = vmatprep.subr.bf16.mxu0 0
    %4559 = vmatpush1.bf16.msra.mxu0 %v4392
    %4560 = vmatprep.subr.bf16.mxu0 0
    %4561 = vmatpush2.bf16.msra.mxu0 %v4407
    %4562 = vmatprep.subr.bf16.mxu0 0
    %4563 = vmatpush2.bf16.msra.mxu0 %v4406
    %4564 = vmatprep.subr.bf16.mxu0 0
    %4565 = vmatpush2.bf16.msra.mxu0 %v4405
    %4566 = vmatprep.subr.bf16.mxu0 0
    %4567 = vmatpush2.bf16.msra.mxu0 %v4404
    %4568 = vmatprep.subr.bf16.mxu0 0
    %4569 = vmatpush2.bf16.msra.mxu0 %v4403
    %4570 = vmatprep.subr.bf16.mxu0 0
    %4571 = vmatpush2.bf16.msra.mxu0 %v4402
    %4572 = vmatprep.subr.bf16.mxu0 0
    %4573 = vmatpush2.bf16.msra.mxu0 %v4401
    %4574 = vmatprep.subr.bf16.mxu0 0
    %4575 = vmatpush2.bf16.msra.mxu0 %v4400
    %4576 = vmatprep.mubr.bf16.mxu0 %v4108
    %4577 = vmatmul.mubr.bf16.gmra.mxu0 %v4107
    %v4578 = vpop.f32.mrf.mxu0
    %v4579 = vadd.f32 %v4539, %v4578
    %v4580 = vpop.f32.mrf.mxu0
    %v4581 = vpop.f32.mrf.mxu0
    %v4582 = vpop.f32.mrf.mxu0
    %4583 = vdwg.mxu0
    %4584 = vmatprep.subr.bf16.mxu0 0
    %4585 = vmatpush1.bf16.msra.mxu0 %v4415
    %4586 = vmatprep.subr.bf16.mxu0 0
    %4587 = vmatpush1.bf16.msra.mxu0 %v4414
    %4588 = vmatprep.subr.bf16.mxu0 0
    %4589 = vmatpush1.bf16.msra.mxu0 %v4413
    %4590 = vmatprep.subr.bf16.mxu0 0
    %4591 = vmatpush1.bf16.msra.mxu0 %v4412
    %4592 = vmatprep.subr.bf16.mxu0 0
    %4593 = vmatpush1.bf16.msra.mxu0 %v4411
    %4594 = vmatprep.subr.bf16.mxu0 0
    %4595 = vmatpush1.bf16.msra.mxu0 %v4410
    %4596 = vmatprep.subr.bf16.mxu0 0
    %4597 = vmatpush1.bf16.msra.mxu0 %v4409
    %4598 = vmatprep.subr.bf16.mxu0 0
    %4599 = vmatpush1.bf16.msra.mxu0 %v4408
    %4600 = vmatprep.subr.bf16.mxu0 0
    %4601 = vmatpush2.bf16.msra.mxu0 %v4423
    %4602 = vmatprep.subr.bf16.mxu0 0
    %4603 = vmatpush2.bf16.msra.mxu0 %v4422
    %4604 = vmatprep.subr.bf16.mxu0 0
    %4605 = vmatpush2.bf16.msra.mxu0 %v4421
    %4606 = vmatprep.subr.bf16.mxu0 0
    %4607 = vmatpush2.bf16.msra.mxu0 %v4420
    %4608 = vmatprep.subr.bf16.mxu0 0
    %4609 = vmatpush2.bf16.msra.mxu0 %v4419
    %4610 = vmatprep.subr.bf16.mxu0 0
    %4611 = vmatpush2.bf16.msra.mxu0 %v4418
    %4612 = vmatprep.subr.bf16.mxu0 0
    %4613 = vmatpush2.bf16.msra.mxu0 %v4417
    %4614 = vmatprep.subr.bf16.mxu0 0
    %4615 = vmatpush2.bf16.msra.mxu0 %v4416
    %4616 = vmatprep.mubr.bf16.mxu0 %v4110
    %4617 = vmatmul.mubr.bf16.gmra.mxu0 %v4109
    %v4618 = vpop.f32.mrf.mxu0
    %v4619 = vadd.f32 %v4579, %v4618
    %v4620 = vpop.f32.mrf.mxu0
    %v4621 = vpop.f32.mrf.mxu0
    %v4622 = vpop.f32.mrf.mxu0
    %4623 = vdwg.mxu0
    %4624 = vmatprep.subr.bf16.mxu0 0
    %4625 = vmatpush1.bf16.msra.mxu0 %v4431
    %4626 = vmatprep.subr.bf16.mxu0 0
    %4627 = vmatpush1.bf16.msra.mxu0 %v4430
    %4628 = vmatprep.subr.bf16.mxu0 0
    %4629 = vmatpush1.bf16.msra.mxu0 %v4429
    %4630 = vmatprep.subr.bf16.mxu0 0
    %4631 = vmatpush1.bf16.msra.mxu0 %v4428
    %4632 = vmatprep.subr.bf16.mxu0 0
    %4633 = vmatpush1.bf16.msra.mxu0 %v4427
    %4634 = vmatprep.subr.bf16.mxu0 0
    %4635 = vmatpush1.bf16.msra.mxu0 %v4426
    %4636 = vmatprep.subr.bf16.mxu0 0
    %4637 = vmatpush1.bf16.msra.mxu0 %v4425
    %4638 = vmatprep.subr.bf16.mxu0 0
    %4639 = vmatpush1.bf16.msra.mxu0 %v4424
    %4640 = vmatprep.subr.bf16.mxu0 0
    %4641 = vmatpush2.bf16.msra.mxu0 %v4439
    %4642 = vmatprep.subr.bf16.mxu0 0
    %4643 = vmatpush2.bf16.msra.mxu0 %v4438
    %4644 = vmatprep.subr.bf16.mxu0 0
    %4645 = vmatpush2.bf16.msra.mxu0 %v4437
    %4646 = vmatprep.subr.bf16.mxu0 0
    %4647 = vmatpush2.bf16.msra.mxu0 %v4436
    %4648 = vmatprep.subr.bf16.mxu0 0
    %4649 = vmatpush2.bf16.msra.mxu0 %v4435
    %4650 = vmatprep.subr.bf16.mxu0 0
    %4651 = vmatpush2.bf16.msra.mxu0 %v4434
    %4652 = vmatprep.subr.bf16.mxu0 0
    %4653 = vmatpush2.bf16.msra.mxu0 %v4433
    %4654 = vmatprep.subr.bf16.mxu0 0
    %4655 = vmatpush2.bf16.msra.mxu0 %v4432
    %4656 = vmatprep.mubr.bf16.mxu0 %v4112
    %4657 = vmatmul.mubr.bf16.gmra.mxu0 %v4111
    %v4658 = vpop.f32.mrf.mxu0
    %v4659 = vadd.f32 %v4619, %v4658
    %v4660 = vpop.f32.mrf.mxu0
    %v4661 = vpop.f32.mrf.mxu0
    %v4662 = vpop.f32.mrf.mxu0
    %4663 = vdwg.mxu0
    %v4664 = vxor.u32 %v4659, 2147483648
    %v4665 = vmul.f32 %v4664, 1.442695
    %v4666 = vpow.pop %v4665
    %v4667 = vadd.f32 %v4666, 1.0
    %v4668 = vrcp.pop %v4667
    %v4669 = vmul.f32 1.0, %v4668
    %4670 = vst [vmem:[#allocation26] sm:$0x3] %v4669
    // Predicated region
    $region146: #{tpu_custom_call.1} parent=1 // pred_check
      _
    $region147: #{tpu_custom_call.1} parent=1 // pred_check_branch
      %4672 = sbr.rel (0) target = $region149
    $region148: #{tpu_custom_call.1} parent=1 // pred_region
      %s4674 = ssub.s32 32, 32
      %4675 = vsyncadd [#allocation4], %s4674
      %s4677 = sshll.u32 [#allocation26], 4
      %s4678 = int_to_ptr.vmem [resolvable:$true] %s4677
      %4680 = dma.vmem_to_hbm [thread:$0]  %s4678, 32, %s21, [#allocation4]
    $region149: #{tpu_custom_call.1} parent=1 // pred_fallthru
      _
    // Predicated region
    $region150: #{tpu_custom_call.1} parent=1 // pred_check
      _
    $region151: #{tpu_custom_call.1} parent=1 // pred_check_branch
      %4682 = sbr.rel (0) target = $region153
    $region152: #{tpu_custom_call.1} parent=1 // pred_region
      %s4684 = ssub.s32 32, 32
      %4685 = vsyncadd [#allocation28], %s4684
      %s4687 = sshll.u32 [#allocation27], 4
      %s4688 = int_to_ptr.vmem [resolvable:$true] %s4687
      %4690 = dma.vmem_to_hbm [thread:$0]  %s4688, 32, %s22, [#allocation28]
    $region153: #{tpu_custom_call.1} parent=1 // pred_fallthru
      _
    // Predicated region
    $region154: #{tpu_custom_call.1} parent=1 // pred_check
      _
    $region155: #{tpu_custom_call.1} parent=1 // pred_check_branch
      %4692 = sbr.rel (0) target = $region157
    $region156: #{tpu_custom_call.1} parent=1 // pred_region
      %4693 = dma.done [#allocation4], 32
    $region157: #{tpu_custom_call.1} parent=1 // pred_fallthru
      _
    // Predicated region
    $region158: #{tpu_custom_call.1} parent=1 // pred_check
      _
    $region159: #{tpu_custom_call.1} parent=1 // pred_check_branch
      %4695 = sbr.rel (0) target = $region161
    $region160: #{tpu_custom_call.1} parent=1 // pred_region
      %4696 = dma.done [#allocation28], 32
    $region161: #{tpu_custom_call.1} parent=1 // pred_fallthru
      _
    %4697 = vsyncpa [#allocation3], 1
    %4698 = vsyncpa [#allocation6], 1
    %4699 = vsyncpa [#allocation9], 1
    %4700 = vsyncpa [#allocation12], 1
    %4701 = vsyncpa [#allocation15], 1
    %4702 = vsyncpa [#allocation18], 1
    %4703 = vsyncpa [#allocation21], 1
    %4704 = vsyncpa [#allocation24], 1
    %4705 = vsyncpa [#allocation4], 1
    %4706 = vsyncpa [#allocation28], 1

</llo_original>
